<compile_context>
chip_gen: v7x
topology: tpu7x:2x2x1
jax: 0.10.0
libtpu: 0.0.40
codegen_flags: <defaults>
</compile_context>

<pallas_src>
import jax
import jax.numpy as jnp
from jax.experimental import pallas as pl
from jax.experimental.pallas import tpu as pltpu


# ---------------------------------------------------------------------------
# One fused kernel: conv1 -> relu -> pool -> conv2 -> relu -> pool -> fc1/2/3
# ---------------------------------------------------------------------------
def _net_kernel(x_ref, w1k_ref, b1_ref, rs1_ref, cs1_ref,
                w2k_ref, b2_ref, rs2_ref, cs2_ref,
                wf1_ref, bf1_ref, wf2_ref, bf2_ref, wf3_ref, bf3_ref,
                out_ref):
    f32 = jnp.float32
    img = x_ref[0, 0]                                   # (28, 28)

    def band_conv_relu(inp, wk_ref, b_ref):
        # inp: (H_in, Cin*W_in), wk_ref: (KH, Cin*W_in, Cout*W_out)
        kh = wk_ref.shape[0]
        rows_out = inp.shape[0] - kh + 1
        acc = jnp.dot(inp[0:rows_out, :], wk_ref[0], preferred_element_type=f32)
        for ki in range(1, kh):
            acc = acc + jnp.dot(inp[ki:ki + rows_out, :], wk_ref[ki],
                                preferred_element_type=f32)
        return jnp.maximum(acc + b_ref[...], 0.0)        # bias + ReLU

    def maxpool_2x2(a, rs_ref, cs_ref):
        # 0/1 selection matmuls commute with elementwise max -> exact 2x2 pool.
        r = jnp.maximum(jnp.dot(rs_ref[0], a, preferred_element_type=f32),
                        jnp.dot(rs_ref[1], a, preferred_element_type=f32))
        return jnp.maximum(jnp.dot(r, cs_ref[0], preferred_element_type=f32),
                           jnp.dot(r, cs_ref[1], preferred_element_type=f32))

    a1 = maxpool_2x2(band_conv_relu(img, w1k_ref, b1_ref), rs1_ref, cs1_ref)
    #   a1: (12, 6*12)   layout [h, ci*12 + w]
    a2 = maxpool_2x2(band_conv_relu(a1, w2k_ref, b2_ref), rs2_ref, cs2_ref)
    #   a2: (4, 16*4)    layout [h, co*4 + w]

    # fc1: torch's .view(-1, 256) flatten is folded into wf1's layout.
    acc = jnp.dot(a2[0:1, :], wf1_ref[0], preferred_element_type=f32)
    for h in range(1, wf1_ref.shape[0]):
        acc = acc + jnp.dot(a2[h:h + 1, :], wf1_ref[h],
                            preferred_element_type=f32)
    z = jnp.maximum(acc + bf1_ref[...], 0.0)                              # (1,120)
    z = jnp.maximum(jnp.dot(z, wf2_ref[...], preferred_element_type=f32)
                    + bf2_ref[...], 0.0)                                  # (1,84)
    z = jnp.dot(z, wf3_ref[...], preferred_element_type=f32) + bf3_ref[...]
    out_ref[0] = z                                                        # (1,10)


# ---------------------------------------------------------------------------
# One-time weight preparation (outside the forward pass)
# ---------------------------------------------------------------------------
def _conv_band_weights(w, w_in, w_out):
    """torch conv weight (Cout, Cin, KH, KW) -> (KH, Cin*w_in, Cout*w_out) with
    W[ki, ci*w_in + iw, co*w_out + ox] = w[co, ci, ki, iw-ox] (banded, else 0)."""
    co_n, ci_n, kh, kw = w.shape
    diff = jnp.arange(w_in)[:, None] - jnp.arange(w_out)[None, :]   # (w_in, w_out)
    mask = ((diff >= 0) & (diff < kw)).astype(w.dtype)
    vals = w[:, :, :, jnp.clip(diff, 0, kw - 1)]                    # (co,ci,kh,w_in,w_out)
    vals = vals * mask[None, None, None]
    vals = vals.transpose(2, 1, 3, 0, 4)                            # (kh,ci,w_in,co,w_out)
    return vals.reshape(kh, ci_n * w_in, co_n * w_out)


def _pool_row_selectors(h_out):
    """(2, h_out, 2*h_out): RS[d, r, y] = 1 if y == 2r + d."""
    y = jnp.arange(2 * h_out)[None, None, :]
    r = jnp.arange(h_out)[None, :, None]
    d = jnp.arange(2)[:, None, None]
    return (y == 2 * r + d).astype(jnp.float32)


def _pool_col_selectors(n_ch, w_in):
    """(2, n_ch*w_in, n_ch*w_in//2): per-channel column decimation by 2."""
    w_out = w_in // 2
    rows = jnp.arange(n_ch * w_in)
    cols = jnp.arange(n_ch * w_out)
    r_c, r_x = rows // w_in, rows % w_in
    c_c, c_p = cols // w_out, cols % w_out
    d = jnp.arange(2)[:, None, None]
    sel = (r_c[None, :, None] == c_c[None, None, :]) & \
          (r_x[None, :, None] == (2 * c_p[None, None, :] + d))
    return sel.astype(jnp.float32)


def prepare_kernel_params(p):
    """Convert torch-layout params into the structured operands used by the kernel."""
    f32 = jnp.float32
    w1, b1 = p["w1"].astype(f32), p["b1"].astype(f32)
    w2, b2 = p["w2"].astype(f32), p["b2"].astype(f32)
    kp = {
        "W1k": _conv_band_weights(w1, 28, 24),                # (5, 28, 144)
        "b1": jnp.repeat(b1, 24)[None, :],                    # (1, 144)
        "RS1": _pool_row_selectors(12),                       # (2, 12, 24)
        "CS1": _pool_col_selectors(6, 24),                    # (2, 144, 72)
        "W2k": _conv_band_weights(w2, 12, 8),                 # (5, 72, 128)
        "b2": jnp.repeat(b2, 8)[None, :],                     # (1, 128)
        "RS2": _pool_row_selectors(4),                        # (2, 4, 8)
        "CS2": _pool_col_selectors(16, 8),                    # (2, 128, 64)
        # fc1: feature f = co*16 + h*4 + px  ->  Wf1[h, co*4+px, j]
        "Wf1": p["fc1_w"].astype(f32).reshape(120, 16, 4, 4)
                  .transpose(2, 1, 3, 0).reshape(4, 64, 120),
        "bf1": p["fc1_b"].astype(f32)[None, :],               # (1, 120)
        "Wf2": p["fc2_w"].astype(f32).T,                      # (120, 84)
        "bf2": p["fc2_b"].astype(f32)[None, :],               # (1, 84)
        "Wf3": p["fc3_w"].astype(f32).T,                      # (84, 10)
        "bf3": p["fc3_b"].astype(f32)[None, :],               # (1, 10)
    }
    return kp


# ---------------------------------------------------------------------------
# Forward pass: one pallas_call, grid over batch
# ---------------------------------------------------------------------------
def _const_spec(shape):
    nd = len(shape)
    return pl.BlockSpec(shape, lambda i, _nd=nd: (0,) * _nd)


def net_forward(x, kp):
    n = x.shape[0]
    consts = [kp["W1k"], kp["b1"], kp["RS1"], kp["CS1"],
              kp["W2k"], kp["b2"], kp["RS2"], kp["CS2"],
              kp["Wf1"], kp["bf1"], kp["Wf2"], kp["bf2"],
              kp["Wf3"], kp["bf3"]]
    in_specs = [pl.BlockSpec((1, 1, 28, 28), lambda i: (i, 0, 0, 0))]
    in_specs += [_const_spec(a.shape) for a in consts]
    out = pl.pallas_call(
        _net_kernel,
        grid=(n,),
        in_specs=in_specs,
        out_specs=pl.BlockSpec((1, 1, 10), lambda i: (i, 0, 0)),
        out_shape=jax.ShapeDtypeStruct((n, 1, 10), jnp.float32),
        compiler_params=pltpu.CompilerParams(
            dimension_semantics=("parallel",)),
    )(x.astype(jnp.float32), *consts)
    return out.reshape(n, 10)


net_forward_jit = jax.jit(net_forward)


# ---------------------------------------------------------------------------
# Pure-JAX reference (same math as the torch module) for a sanity check
# ---------------------------------------------------------------------------
def net_forward_reference(x, p):
    dn = ("NCHW", "OIHW", "NCHW")
    y = jax.lax.conv_general_dilated(x, p["w1"], (1, 1), "VALID",
                                     dimension_numbers=dn)
    y = jax.nn.relu(y + p["b1"][None, :, None, None])
    y = jax.lax.reduce_window(y, -jnp.inf, jax.lax.max,
                              (1, 1, 2, 2), (1, 1, 2, 2), "VALID")
    y = jax.lax.conv_general_dilated(y, p["w2"], (1, 1), "VALID",
                                     dimension_numbers=dn)
    y = jax.nn.relu(y + p["b2"][None, :, None, None])
    y = jax.lax.reduce_window(y, -jnp.inf, jax.lax.max,
                              (1, 1, 2, 2), (1, 1, 2, 2), "VALID")
    y = y.reshape(y.shape[0], -1)
    y = jax.nn.relu(y @ p["fc1_w"].T + p["fc1_b"])
    y = jax.nn.relu(y @ p["fc2_w"].T + p["fc2_b"])
    return y @ p["fc3_w"].T + p["fc3_b"]


def init_params(key):
    ks = jax.random.split(key, 10)

    def rnd(k, shape, scale=0.1):
        return (scale * jax.random.normal(k, shape)).astype(jnp.float32)

    return {
        "w1": rnd(ks[0], (6, 1, 5, 5)),   "b1": rnd(ks[1], (6,)),
        "w2": rnd(ks[2], (16, 6, 5, 5)),  "b2": rnd(ks[3], (16,)),
        "fc1_w": rnd(ks[4], (120, 256)),  "fc1_b": rnd(ks[5], (120,)),
        "fc2_w": rnd(ks[6], (84, 120)),   "fc2_b": rnd(ks[7], (84,)),
        "fc3_w": rnd(ks[8], (10, 84)),    "fc3_b": rnd(ks[9], (10,)),
    }


if __name__ == "__main__":
    key = jax.random.PRNGKey(0)
    k_in, k_par = jax.random.split(key)
    # Input consistent with fc1 = 16*4*4: 28x28 single-channel images, batch=2.
    x = jax.random.normal(k_in, (2, 1, 28, 28), dtype=jnp.float32)
    params = init_params(k_par)

    kparams = prepare_kernel_params(params)          # one-time weight prep
    out = jax.block_until_ready(net_forward_jit(x, kparams))
    assert out.shape == (2, 10), out.shape

    ref = jax.block_until_ready(net_forward_reference(x, params))
    err = float(jnp.max(jnp.abs(out - ref)))
    assert err < 5e-2, f"mismatch vs reference: max abs err = {err}"

    print("KERNEL_OK")
</pallas_src>

<mosaic_0001>
module attributes {stable_mosaic.version = 11 : i64} {
  func.func @_net_kernel(%arg0: i32, %arg1: memref<1x1x28x28xf32, #tpu.memory_space<vmem>>, %arg2: memref<5x28x144xf32, #tpu.memory_space<vmem>>, %arg3: memref<1x144xf32, #tpu.memory_space<vmem>>, %arg4: memref<2x12x24xf32, #tpu.memory_space<vmem>>, %arg5: memref<2x144x72xf32, #tpu.memory_space<vmem>>, %arg6: memref<5x72x128xf32, #tpu.memory_space<vmem>>, %arg7: memref<1x128xf32, #tpu.memory_space<vmem>>, %arg8: memref<2x4x8xf32, #tpu.memory_space<vmem>>, %arg9: memref<2x128x64xf32, #tpu.memory_space<vmem>>, %arg10: memref<4x64x120xf32, #tpu.memory_space<vmem>>, %arg11: memref<1x120xf32, #tpu.memory_space<vmem>>, %arg12: memref<120x84xf32, #tpu.memory_space<vmem>>, %arg13: memref<1x84xf32, #tpu.memory_space<vmem>>, %arg14: memref<84x10xf32, #tpu.memory_space<vmem>>, %arg15: memref<1x10xf32, #tpu.memory_space<vmem>>, %arg16: memref<1x1x10xf32, #tpu.memory_space<vmem>>) attributes {dimension_semantics = [#tpu.dimension_semantics<parallel>], iteration_bounds = array<i64: 2>, scalar_prefetch = 0 : i64, scratch_operands = 0 : i64, tpu.core_type = #tpu.core_type<tc>, window_params = [{transform_indices = @transform_0, window_bounds = array<i64: 1, 1, 28, 28>}, {pipeline_mode = #tpu.pipeline_mode<synchronous>, transform_indices = @transform_1, window_bounds = array<i64: 5, 28, 144>}, {pipeline_mode = #tpu.pipeline_mode<synchronous>, transform_indices = @transform_2, window_bounds = array<i64: 1, 144>}, {pipeline_mode = #tpu.pipeline_mode<synchronous>, transform_indices = @transform_3, window_bounds = array<i64: 2, 12, 24>}, {pipeline_mode = #tpu.pipeline_mode<synchronous>, transform_indices = @transform_4, window_bounds = array<i64: 2, 144, 72>}, {pipeline_mode = #tpu.pipeline_mode<synchronous>, transform_indices = @transform_5, window_bounds = array<i64: 5, 72, 128>}, {pipeline_mode = #tpu.pipeline_mode<synchronous>, transform_indices = @transform_6, window_bounds = array<i64: 1, 128>}, {pipeline_mode = #tpu.pipeline_mode<synchronous>, transform_indices = @transform_7, window_bounds = array<i64: 2, 4, 8>}, {pipeline_mode = #tpu.pipeline_mode<synchronous>, transform_indices = @transform_8, window_bounds = array<i64: 2, 128, 64>}, {pipeline_mode = #tpu.pipeline_mode<synchronous>, transform_indices = @transform_9, window_bounds = array<i64: 4, 64, 120>}, {pipeline_mode = #tpu.pipeline_mode<synchronous>, transform_indices = @transform_10, window_bounds = array<i64: 1, 120>}, {pipeline_mode = #tpu.pipeline_mode<synchronous>, transform_indices = @transform_11, window_bounds = array<i64: 120, 84>}, {pipeline_mode = #tpu.pipeline_mode<synchronous>, transform_indices = @transform_12, window_bounds = array<i64: 1, 84>}, {pipeline_mode = #tpu.pipeline_mode<synchronous>, transform_indices = @transform_13, window_bounds = array<i64: 84, 10>}, {pipeline_mode = #tpu.pipeline_mode<synchronous>, transform_indices = @transform_14, window_bounds = array<i64: 1, 10>}, {transform_indices = @transform_15, window_bounds = array<i64: 1, 1, 10>}]} {
    %c0 = arith.constant 0 : index
    %c0_0 = arith.constant 0 : index
    %c0_1 = arith.constant 0 : index
    %c0_2 = arith.constant 0 : index
    %0 = vector.load %arg1[%c0, %c0_0, %c0_1, %c0_2] : memref<1x1x28x28xf32, #tpu.memory_space<vmem>>, vector<1x1x28x28xf32>
    %1 = vector.shape_cast %0 : vector<1x1x28x28xf32> to vector<28x28xf32>
    %2 = vector.extract_strided_slice %1 {offsets = [0, 0], sizes = [24, 28], strides = [1, 1]} : vector<28x28xf32> to vector<24x28xf32>
    %c0_3 = arith.constant 0 : index
    %c0_4 = arith.constant 0 : index
    %c0_5 = arith.constant 0 : index
    %3 = vector.load %arg2[%c0_3, %c0_4, %c0_5] : memref<5x28x144xf32, #tpu.memory_space<vmem>>, vector<1x28x144xf32>
    %4 = vector.shape_cast %3 : vector<1x28x144xf32> to vector<28x144xf32>
    %cst = arith.constant dense<0.000000e+00> : vector<24x144xf32>
    %5 = tpu.matmul %2, %4, %cst {dimension_numbers = #tpu.dot_dimension_numbers<[1], [0], [0], [1], [0, 0, 1, 1], [], []>} : vector<24x28xf32>, vector<28x144xf32>, vector<24x144xf32> -> vector<24x144xf32>
    %6 = vector.extract_strided_slice %1 {offsets = [1, 0], sizes = [24, 28], strides = [1, 1]} : vector<28x28xf32> to vector<24x28xf32>
    %c1 = arith.constant 1 : index
    %c0_6 = arith.constant 0 : index
    %c0_7 = arith.constant 0 : index
    %7 = vector.load %arg2[%c1, %c0_6, %c0_7] : memref<5x28x144xf32, #tpu.memory_space<vmem>>, vector<1x28x144xf32>
    %8 = vector.shape_cast %7 : vector<1x28x144xf32> to vector<28x144xf32>
    %cst_8 = arith.constant dense<0.000000e+00> : vector<24x144xf32>
    %9 = tpu.matmul %6, %8, %cst_8 {dimension_numbers = #tpu.dot_dimension_numbers<[1], [0], [0], [1], [0, 0, 1, 1], [], []>} : vector<24x28xf32>, vector<28x144xf32>, vector<24x144xf32> -> vector<24x144xf32>
    %10 = arith.addf %5, %9 : vector<24x144xf32>
    %11 = vector.extract_strided_slice %1 {offsets = [2, 0], sizes = [24, 28], strides = [1, 1]} : vector<28x28xf32> to vector<24x28xf32>
    %c2 = arith.constant 2 : index
    %c0_9 = arith.constant 0 : index
    %c0_10 = arith.constant 0 : index
    %12 = vector.load %arg2[%c2, %c0_9, %c0_10] : memref<5x28x144xf32, #tpu.memory_space<vmem>>, vector<1x28x144xf32>
    %13 = vector.shape_cast %12 : vector<1x28x144xf32> to vector<28x144xf32>
    %cst_11 = arith.constant dense<0.000000e+00> : vector<24x144xf32>
    %14 = tpu.matmul %11, %13, %cst_11 {dimension_numbers = #tpu.dot_dimension_numbers<[1], [0], [0], [1], [0, 0, 1, 1], [], []>} : vector<24x28xf32>, vector<28x144xf32>, vector<24x144xf32> -> vector<24x144xf32>
    %15 = arith.addf %10, %14 : vector<24x144xf32>
    %16 = vector.extract_strided_slice %1 {offsets = [3, 0], sizes = [24, 28], strides = [1, 1]} : vector<28x28xf32> to vector<24x28xf32>
    %c3 = arith.constant 3 : index
    %c0_12 = arith.constant 0 : index
    %c0_13 = arith.constant 0 : index
    %17 = vector.load %arg2[%c3, %c0_12, %c0_13] : memref<5x28x144xf32, #tpu.memory_space<vmem>>, vector<1x28x144xf32>
    %18 = vector.shape_cast %17 : vector<1x28x144xf32> to vector<28x144xf32>
    %cst_14 = arith.constant dense<0.000000e+00> : vector<24x144xf32>
    %19 = tpu.matmul %16, %18, %cst_14 {dimension_numbers = #tpu.dot_dimension_numbers<[1], [0], [0], [1], [0, 0, 1, 1], [], []>} : vector<24x28xf32>, vector<28x144xf32>, vector<24x144xf32> -> vector<24x144xf32>
    %20 = arith.addf %15, %19 : vector<24x144xf32>
    %21 = vector.extract_strided_slice %1 {offsets = [4, 0], sizes = [24, 28], strides = [1, 1]} : vector<28x28xf32> to vector<24x28xf32>
    %c4 = arith.constant 4 : index
    %c0_15 = arith.constant 0 : index
    %c0_16 = arith.constant 0 : index
    %22 = vector.load %arg2[%c4, %c0_15, %c0_16] : memref<5x28x144xf32, #tpu.memory_space<vmem>>, vector<1x28x144xf32>
    %23 = vector.shape_cast %22 : vector<1x28x144xf32> to vector<28x144xf32>
    %cst_17 = arith.constant dense<0.000000e+00> : vector<24x144xf32>
    %24 = tpu.matmul %21, %23, %cst_17 {dimension_numbers = #tpu.dot_dimension_numbers<[1], [0], [0], [1], [0, 0, 1, 1], [], []>} : vector<24x28xf32>, vector<28x144xf32>, vector<24x144xf32> -> vector<24x144xf32>
    %25 = arith.addf %20, %24 : vector<24x144xf32>
    %c0_18 = arith.constant 0 : index
    %c0_19 = arith.constant 0 : index
    %26 = vector.load %arg3[%c0_18, %c0_19] : memref<1x144xf32, #tpu.memory_space<vmem>>, vector<1x144xf32>
    %27 = vector.broadcast %26 : vector<1x144xf32> to vector<24x144xf32>
    %28 = arith.addf %25, %27 : vector<24x144xf32>
    %cst_20 = arith.constant 0.000000e+00 : f32
    %29 = vector.broadcast %cst_20 : f32 to vector<24x144xf32>
    %30 = arith.maximumf %28, %29 : vector<24x144xf32>
    %c0_21 = arith.constant 0 : index
    %c0_22 = arith.constant 0 : index
    %c0_23 = arith.constant 0 : index
    %31 = vector.load %arg4[%c0_21, %c0_22, %c0_23] : memref<2x12x24xf32, #tpu.memory_space<vmem>>, vector<1x12x24xf32>
    %32 = vector.shape_cast %31 : vector<1x12x24xf32> to vector<12x24xf32>
    %cst_24 = arith.constant dense<0.000000e+00> : vector<12x144xf32>
    %33 = tpu.matmul %32, %30, %cst_24 {dimension_numbers = #tpu.dot_dimension_numbers<[1], [0], [0], [1], [0, 0, 1, 1], [], []>} : vector<12x24xf32>, vector<24x144xf32>, vector<12x144xf32> -> vector<12x144xf32>
    %c1_25 = arith.constant 1 : index
    %c0_26 = arith.constant 0 : index
    %c0_27 = arith.constant 0 : index
    %34 = vector.load %arg4[%c1_25, %c0_26, %c0_27] : memref<2x12x24xf32, #tpu.memory_space<vmem>>, vector<1x12x24xf32>
    %35 = vector.shape_cast %34 : vector<1x12x24xf32> to vector<12x24xf32>
    %cst_28 = arith.constant dense<0.000000e+00> : vector<12x144xf32>
    %36 = tpu.matmul %35, %30, %cst_28 {dimension_numbers = #tpu.dot_dimension_numbers<[1], [0], [0], [1], [0, 0, 1, 1], [], []>} : vector<12x24xf32>, vector<24x144xf32>, vector<12x144xf32> -> vector<12x144xf32>
    %37 = arith.maximumf %33, %36 : vector<12x144xf32>
    %c0_29 = arith.constant 0 : index
    %c0_30 = arith.constant 0 : index
    %c0_31 = arith.constant 0 : index
    %38 = vector.load %arg5[%c0_29, %c0_30, %c0_31] : memref<2x144x72xf32, #tpu.memory_space<vmem>>, vector<1x144x72xf32>
    %39 = vector.shape_cast %38 : vector<1x144x72xf32> to vector<144x72xf32>
    %cst_32 = arith.constant dense<0.000000e+00> : vector<12x72xf32>
    %40 = tpu.matmul %37, %39, %cst_32 {dimension_numbers = #tpu.dot_dimension_numbers<[1], [0], [0], [1], [0, 0, 1, 1], [], []>} : vector<12x144xf32>, vector<144x72xf32>, vector<12x72xf32> -> vector<12x72xf32>
    %c1_33 = arith.constant 1 : index
    %c0_34 = arith.constant 0 : index
    %c0_35 = arith.constant 0 : index
    %41 = vector.load %arg5[%c1_33, %c0_34, %c0_35] : memref<2x144x72xf32, #tpu.memory_space<vmem>>, vector<1x144x72xf32>
    %42 = vector.shape_cast %41 : vector<1x144x72xf32> to vector<144x72xf32>
    %cst_36 = arith.constant dense<0.000000e+00> : vector<12x72xf32>
    %43 = tpu.matmul %37, %42, %cst_36 {dimension_numbers = #tpu.dot_dimension_numbers<[1], [0], [0], [1], [0, 0, 1, 1], [], []>} : vector<12x144xf32>, vector<144x72xf32>, vector<12x72xf32> -> vector<12x72xf32>
    %44 = arith.maximumf %40, %43 : vector<12x72xf32>
    %45 = vector.extract_strided_slice %44 {offsets = [0, 0], sizes = [8, 72], strides = [1, 1]} : vector<12x72xf32> to vector<8x72xf32>
    %c0_37 = arith.constant 0 : index
    %c0_38 = arith.constant 0 : index
    %c0_39 = arith.constant 0 : index
    %46 = vector.load %arg6[%c0_37, %c0_38, %c0_39] : memref<5x72x128xf32, #tpu.memory_space<vmem>>, vector<1x72x128xf32>
    %47 = vector.shape_cast %46 : vector<1x72x128xf32> to vector<72x128xf32>
    %cst_40 = arith.constant dense<0.000000e+00> : vector<8x128xf32>
    %48 = tpu.matmul %45, %47, %cst_40 {dimension_numbers = #tpu.dot_dimension_numbers<[1], [0], [0], [1], [0, 0, 1, 1], [], []>} : vector<8x72xf32>, vector<72x128xf32>, vector<8x128xf32> -> vector<8x128xf32>
    %49 = vector.extract_strided_slice %44 {offsets = [1, 0], sizes = [8, 72], strides = [1, 1]} : vector<12x72xf32> to vector<8x72xf32>
    %c1_41 = arith.constant 1 : index
    %c0_42 = arith.constant 0 : index
    %c0_43 = arith.constant 0 : index
    %50 = vector.load %arg6[%c1_41, %c0_42, %c0_43] : memref<5x72x128xf32, #tpu.memory_space<vmem>>, vector<1x72x128xf32>
    %51 = vector.shape_cast %50 : vector<1x72x128xf32> to vector<72x128xf32>
    %cst_44 = arith.constant dense<0.000000e+00> : vector<8x128xf32>
    %52 = tpu.matmul %49, %51, %cst_44 {dimension_numbers = #tpu.dot_dimension_numbers<[1], [0], [0], [1], [0, 0, 1, 1], [], []>} : vector<8x72xf32>, vector<72x128xf32>, vector<8x128xf32> -> vector<8x128xf32>
    %53 = arith.addf %48, %52 : vector<8x128xf32>
    %54 = vector.extract_strided_slice %44 {offsets = [2, 0], sizes = [8, 72], strides = [1, 1]} : vector<12x72xf32> to vector<8x72xf32>
    %c2_45 = arith.constant 2 : index
    %c0_46 = arith.constant 0 : index
    %c0_47 = arith.constant 0 : index
    %55 = vector.load %arg6[%c2_45, %c0_46, %c0_47] : memref<5x72x128xf32, #tpu.memory_space<vmem>>, vector<1x72x128xf32>
    %56 = vector.shape_cast %55 : vector<1x72x128xf32> to vector<72x128xf32>
    %cst_48 = arith.constant dense<0.000000e+00> : vector<8x128xf32>
    %57 = tpu.matmul %54, %56, %cst_48 {dimension_numbers = #tpu.dot_dimension_numbers<[1], [0], [0], [1], [0, 0, 1, 1], [], []>} : vector<8x72xf32>, vector<72x128xf32>, vector<8x128xf32> -> vector<8x128xf32>
    %58 = arith.addf %53, %57 : vector<8x128xf32>
    %59 = vector.extract_strided_slice %44 {offsets = [3, 0], sizes = [8, 72], strides = [1, 1]} : vector<12x72xf32> to vector<8x72xf32>
    %c3_49 = arith.constant 3 : index
    %c0_50 = arith.constant 0 : index
    %c0_51 = arith.constant 0 : index
    %60 = vector.load %arg6[%c3_49, %c0_50, %c0_51] : memref<5x72x128xf32, #tpu.memory_space<vmem>>, vector<1x72x128xf32>
    %61 = vector.shape_cast %60 : vector<1x72x128xf32> to vector<72x128xf32>
    %cst_52 = arith.constant dense<0.000000e+00> : vector<8x128xf32>
    %62 = tpu.matmul %59, %61, %cst_52 {dimension_numbers = #tpu.dot_dimension_numbers<[1], [0], [0], [1], [0, 0, 1, 1], [], []>} : vector<8x72xf32>, vector<72x128xf32>, vector<8x128xf32> -> vector<8x128xf32>
    %63 = arith.addf %58, %62 : vector<8x128xf32>
    %64 = vector.extract_strided_slice %44 {offsets = [4, 0], sizes = [8, 72], strides = [1, 1]} : vector<12x72xf32> to vector<8x72xf32>
    %c4_53 = arith.constant 4 : index
    %c0_54 = arith.constant 0 : index
    %c0_55 = arith.constant 0 : index
    %65 = vector.load %arg6[%c4_53, %c0_54, %c0_55] : memref<5x72x128xf32, #tpu.memory_space<vmem>>, vector<1x72x128xf32>
    %66 = vector.shape_cast %65 : vector<1x72x128xf32> to vector<72x128xf32>
    %cst_56 = arith.constant dense<0.000000e+00> : vector<8x128xf32>
    %67 = tpu.matmul %64, %66, %cst_56 {dimension_numbers = #tpu.dot_dimension_numbers<[1], [0], [0], [1], [0, 0, 1, 1], [], []>} : vector<8x72xf32>, vector<72x128xf32>, vector<8x128xf32> -> vector<8x128xf32>
    %68 = arith.addf %63, %67 : vector<8x128xf32>
    %c0_57 = arith.constant 0 : index
    %c0_58 = arith.constant 0 : index
    %69 = vector.load %arg7[%c0_57, %c0_58] : memref<1x128xf32, #tpu.memory_space<vmem>>, vector<1x128xf32>
    %70 = vector.broadcast %69 : vector<1x128xf32> to vector<8x128xf32>
    %71 = arith.addf %68, %70 : vector<8x128xf32>
    %cst_59 = arith.constant 0.000000e+00 : f32
    %72 = vector.broadcast %cst_59 : f32 to vector<8x128xf32>
    %73 = arith.maximumf %71, %72 : vector<8x128xf32>
    %c0_60 = arith.constant 0 : index
    %c0_61 = arith.constant 0 : index
    %c0_62 = arith.constant 0 : index
    %74 = vector.load %arg8[%c0_60, %c0_61, %c0_62] : memref<2x4x8xf32, #tpu.memory_space<vmem>>, vector<1x4x8xf32>
    %75 = vector.shape_cast %74 : vector<1x4x8xf32> to vector<4x8xf32>
    %cst_63 = arith.constant dense<0.000000e+00> : vector<4x128xf32>
    %76 = tpu.matmul %75, %73, %cst_63 {dimension_numbers = #tpu.dot_dimension_numbers<[1], [0], [0], [1], [0, 0, 1, 1], [], []>} : vector<4x8xf32>, vector<8x128xf32>, vector<4x128xf32> -> vector<4x128xf32>
    %c1_64 = arith.constant 1 : index
    %c0_65 = arith.constant 0 : index
    %c0_66 = arith.constant 0 : index
    %77 = vector.load %arg8[%c1_64, %c0_65, %c0_66] : memref<2x4x8xf32, #tpu.memory_space<vmem>>, vector<1x4x8xf32>
    %78 = vector.shape_cast %77 : vector<1x4x8xf32> to vector<4x8xf32>
    %cst_67 = arith.constant dense<0.000000e+00> : vector<4x128xf32>
    %79 = tpu.matmul %78, %73, %cst_67 {dimension_numbers = #tpu.dot_dimension_numbers<[1], [0], [0], [1], [0, 0, 1, 1], [], []>} : vector<4x8xf32>, vector<8x128xf32>, vector<4x128xf32> -> vector<4x128xf32>
    %80 = arith.maximumf %76, %79 : vector<4x128xf32>
    %c0_68 = arith.constant 0 : index
    %c0_69 = arith.constant 0 : index
    %c0_70 = arith.constant 0 : index
    %81 = vector.load %arg9[%c0_68, %c0_69, %c0_70] : memref<2x128x64xf32, #tpu.memory_space<vmem>>, vector<1x128x64xf32>
    %82 = vector.shape_cast %81 : vector<1x128x64xf32> to vector<128x64xf32>
    %cst_71 = arith.constant dense<0.000000e+00> : vector<4x64xf32>
    %83 = tpu.matmul %80, %82, %cst_71 {dimension_numbers = #tpu.dot_dimension_numbers<[1], [0], [0], [1], [0, 0, 1, 1], [], []>} : vector<4x128xf32>, vector<128x64xf32>, vector<4x64xf32> -> vector<4x64xf32>
    %c1_72 = arith.constant 1 : index
    %c0_73 = arith.constant 0 : index
    %c0_74 = arith.constant 0 : index
    %84 = vector.load %arg9[%c1_72, %c0_73, %c0_74] : memref<2x128x64xf32, #tpu.memory_space<vmem>>, vector<1x128x64xf32>
    %85 = vector.shape_cast %84 : vector<1x128x64xf32> to vector<128x64xf32>
    %cst_75 = arith.constant dense<0.000000e+00> : vector<4x64xf32>
    %86 = tpu.matmul %80, %85, %cst_75 {dimension_numbers = #tpu.dot_dimension_numbers<[1], [0], [0], [1], [0, 0, 1, 1], [], []>} : vector<4x128xf32>, vector<128x64xf32>, vector<4x64xf32> -> vector<4x64xf32>
    %87 = arith.maximumf %83, %86 : vector<4x64xf32>
    %88 = vector.extract_strided_slice %87 {offsets = [0, 0], sizes = [1, 64], strides = [1, 1]} : vector<4x64xf32> to vector<1x64xf32>
    %c0_76 = arith.constant 0 : index
    %c0_77 = arith.constant 0 : index
    %c0_78 = arith.constant 0 : index
    %89 = vector.load %arg10[%c0_76, %c0_77, %c0_78] : memref<4x64x120xf32, #tpu.memory_space<vmem>>, vector<1x64x120xf32>
    %90 = vector.shape_cast %89 : vector<1x64x120xf32> to vector<64x120xf32>
    %cst_79 = arith.constant dense<0.000000e+00> : vector<1x120xf32>
    %91 = tpu.matmul %88, %90, %cst_79 {dimension_numbers = #tpu.dot_dimension_numbers<[1], [0], [0], [1], [0, 0, 1, 1], [], []>} : vector<1x64xf32>, vector<64x120xf32>, vector<1x120xf32> -> vector<1x120xf32>
    %92 = vector.extract_strided_slice %87 {offsets = [1, 0], sizes = [1, 64], strides = [1, 1]} : vector<4x64xf32> to vector<1x64xf32>
    %c1_80 = arith.constant 1 : index
    %c0_81 = arith.constant 0 : index
    %c0_82 = arith.constant 0 : index
    %93 = vector.load %arg10[%c1_80, %c0_81, %c0_82] : memref<4x64x120xf32, #tpu.memory_space<vmem>>, vector<1x64x120xf32>
    %94 = vector.shape_cast %93 : vector<1x64x120xf32> to vector<64x120xf32>
    %cst_83 = arith.constant dense<0.000000e+00> : vector<1x120xf32>
    %95 = tpu.matmul %92, %94, %cst_83 {dimension_numbers = #tpu.dot_dimension_numbers<[1], [0], [0], [1], [0, 0, 1, 1], [], []>} : vector<1x64xf32>, vector<64x120xf32>, vector<1x120xf32> -> vector<1x120xf32>
    %96 = arith.addf %91, %95 : vector<1x120xf32>
    %97 = vector.extract_strided_slice %87 {offsets = [2, 0], sizes = [1, 64], strides = [1, 1]} : vector<4x64xf32> to vector<1x64xf32>
    %c2_84 = arith.constant 2 : index
    %c0_85 = arith.constant 0 : index
    %c0_86 = arith.constant 0 : index
    %98 = vector.load %arg10[%c2_84, %c0_85, %c0_86] : memref<4x64x120xf32, #tpu.memory_space<vmem>>, vector<1x64x120xf32>
    %99 = vector.shape_cast %98 : vector<1x64x120xf32> to vector<64x120xf32>
    %cst_87 = arith.constant dense<0.000000e+00> : vector<1x120xf32>
    %100 = tpu.matmul %97, %99, %cst_87 {dimension_numbers = #tpu.dot_dimension_numbers<[1], [0], [0], [1], [0, 0, 1, 1], [], []>} : vector<1x64xf32>, vector<64x120xf32>, vector<1x120xf32> -> vector<1x120xf32>
    %101 = arith.addf %96, %100 : vector<1x120xf32>
    %102 = vector.extract_strided_slice %87 {offsets = [3, 0], sizes = [1, 64], strides = [1, 1]} : vector<4x64xf32> to vector<1x64xf32>
    %c3_88 = arith.constant 3 : index
    %c0_89 = arith.constant 0 : index
    %c0_90 = arith.constant 0 : index
    %103 = vector.load %arg10[%c3_88, %c0_89, %c0_90] : memref<4x64x120xf32, #tpu.memory_space<vmem>>, vector<1x64x120xf32>
    %104 = vector.shape_cast %103 : vector<1x64x120xf32> to vector<64x120xf32>
    %cst_91 = arith.constant dense<0.000000e+00> : vector<1x120xf32>
    %105 = tpu.matmul %102, %104, %cst_91 {dimension_numbers = #tpu.dot_dimension_numbers<[1], [0], [0], [1], [0, 0, 1, 1], [], []>} : vector<1x64xf32>, vector<64x120xf32>, vector<1x120xf32> -> vector<1x120xf32>
    %106 = arith.addf %101, %105 : vector<1x120xf32>
    %c0_92 = arith.constant 0 : index
    %c0_93 = arith.constant 0 : index
    %107 = vector.load %arg11[%c0_92, %c0_93] : memref<1x120xf32, #tpu.memory_space<vmem>>, vector<1x120xf32>
    %108 = arith.addf %106, %107 : vector<1x120xf32>
    %cst_94 = arith.constant 0.000000e+00 : f32
    %109 = vector.broadcast %cst_94 : f32 to vector<1x120xf32>
    %110 = arith.maximumf %108, %109 : vector<1x120xf32>
    %c0_95 = arith.constant 0 : index
    %c0_96 = arith.constant 0 : index
    %111 = vector.load %arg12[%c0_95, %c0_96] : memref<120x84xf32, #tpu.memory_space<vmem>>, vector<120x84xf32>
    %cst_97 = arith.constant dense<0.000000e+00> : vector<1x84xf32>
    %112 = tpu.matmul %110, %111, %cst_97 {dimension_numbers = #tpu.dot_dimension_numbers<[1], [0], [0], [1], [0, 0, 1, 1], [], []>} : vector<1x120xf32>, vector<120x84xf32>, vector<1x84xf32> -> vector<1x84xf32>
    %c0_98 = arith.constant 0 : index
    %c0_99 = arith.constant 0 : index
    %113 = vector.load %arg13[%c0_98, %c0_99] : memref<1x84xf32, #tpu.memory_space<vmem>>, vector<1x84xf32>
    %114 = arith.addf %112, %113 : vector<1x84xf32>
    %cst_100 = arith.constant 0.000000e+00 : f32
    %115 = vector.broadcast %cst_100 : f32 to vector<1x84xf32>
    %116 = arith.maximumf %114, %115 : vector<1x84xf32>
    %c0_101 = arith.constant 0 : index
    %c0_102 = arith.constant 0 : index
    %117 = vector.load %arg14[%c0_101, %c0_102] : memref<84x10xf32, #tpu.memory_space<vmem>>, vector<84x10xf32>
    %cst_103 = arith.constant dense<0.000000e+00> : vector<1x10xf32>
    %118 = tpu.matmul %116, %117, %cst_103 {dimension_numbers = #tpu.dot_dimension_numbers<[1], [0], [0], [1], [0, 0, 1, 1], [], []>} : vector<1x84xf32>, vector<84x10xf32>, vector<1x10xf32> -> vector<1x10xf32>
    %c0_104 = arith.constant 0 : index
    %c0_105 = arith.constant 0 : index
    %119 = vector.load %arg15[%c0_104, %c0_105] : memref<1x10xf32, #tpu.memory_space<vmem>>, vector<1x10xf32>
    %120 = arith.addf %118, %119 : vector<1x10xf32>
    %c0_106 = arith.constant 0 : index
    %c0_107 = arith.constant 0 : index
    %c0_108 = arith.constant 0 : index
    %121 = vector.load %arg16[%c0_106, %c0_107, %c0_108] : memref<1x1x10xf32, #tpu.memory_space<vmem>>, vector<1x1x10xf32>
    %122 = vector.shape_cast %121 : vector<1x1x10xf32> to vector<1x10xf32>
    %123 = vector.shape_cast %120 : vector<1x10xf32> to vector<1x1x10xf32>
    tpu.vector_store %arg16[%c0_106, %c0_107, %c0_108], %123 {strides = array<i32>} : memref<1x1x10xf32, #tpu.memory_space<vmem>>, vector<1x1x10xf32>,
    return
  }
  func.func @transform_0(%arg0: i32) -> (i32, i32, i32, i32) {
    %c0_i32 = arith.constant 0 : i32
    %c0_i32_0 = arith.constant 0 : i32
    %c0_i32_1 = arith.constant 0 : i32
    %c0_i32_2 = arith.constant 0 : i32
    return %arg0, %c0_i32, %c0_i32_0, %c0_i32_1 : i32, i32, i32, i32
  }
  func.func @transform_1(%arg0: i32) -> (i32, i32, i32) {
    %c0_i32 = arith.constant 0 : i32
    %c0_i32_0 = arith.constant 0 : i32
    %c0_i32_1 = arith.constant 0 : i32
    %c0_i32_2 = arith.constant 0 : i32
    return %c0_i32, %c0_i32_0, %c0_i32_1 : i32, i32, i32
  }
  func.func @transform_2(%arg0: i32) -> (i32, i32) {
    %c0_i32 = arith.constant 0 : i32
    %c0_i32_0 = arith.constant 0 : i32
    %c0_i32_1 = arith.constant 0 : i32
    return %c0_i32, %c0_i32_0 : i32, i32
  }
  func.func @transform_3(%arg0: i32) -> (i32, i32, i32) {
    %c0_i32 = arith.constant 0 : i32
    %c0_i32_0 = arith.constant 0 : i32
    %c0_i32_1 = arith.constant 0 : i32
    %c0_i32_2 = arith.constant 0 : i32
    return %c0_i32, %c0_i32_0, %c0_i32_1 : i32, i32, i32
  }
  func.func @transform_4(%arg0: i32) -> (i32, i32, i32) {
    %c0_i32 = arith.constant 0 : i32
    %c0_i32_0 = arith.constant 0 : i32
    %c0_i32_1 = arith.constant 0 : i32
    %c0_i32_2 = arith.constant 0 : i32
    return %c0_i32, %c0_i32_0, %c0_i32_1 : i32, i32, i32
  }
  func.func @transform_5(%arg0: i32) -> (i32, i32, i32) {
    %c0_i32 = arith.constant 0 : i32
    %c0_i32_0 = arith.constant 0 : i32
    %c0_i32_1 = arith.constant 0 : i32
    %c0_i32_2 = arith.constant 0 : i32
    return %c0_i32, %c0_i32_0, %c0_i32_1 : i32, i32, i32
  }
  func.func @transform_6(%arg0: i32) -> (i32, i32) {
    %c0_i32 = arith.constant 0 : i32
    %c0_i32_0 = arith.constant 0 : i32
    %c0_i32_1 = arith.constant 0 : i32
    return %c0_i32, %c0_i32_0 : i32, i32
  }
  func.func @transform_7(%arg0: i32) -> (i32, i32, i32) {
    %c0_i32 = arith.constant 0 : i32
    %c0_i32_0 = arith.constant 0 : i32
    %c0_i32_1 = arith.constant 0 : i32
    %c0_i32_2 = arith.constant 0 : i32
    return %c0_i32, %c0_i32_0, %c0_i32_1 : i32, i32, i32
  }
  func.func @transform_8(%arg0: i32) -> (i32, i32, i32) {
    %c0_i32 = arith.constant 0 : i32
    %c0_i32_0 = arith.constant 0 : i32
    %c0_i32_1 = arith.constant 0 : i32
    %c0_i32_2 = arith.constant 0 : i32
    return %c0_i32, %c0_i32_0, %c0_i32_1 : i32, i32, i32
  }
  func.func @transform_9(%arg0: i32) -> (i32, i32, i32) {
    %c0_i32 = arith.constant 0 : i32
    %c0_i32_0 = arith.constant 0 : i32
    %c0_i32_1 = arith.constant 0 : i32
    %c0_i32_2 = arith.constant 0 : i32
    return %c0_i32, %c0_i32_0, %c0_i32_1 : i32, i32, i32
  }
  func.func @transform_10(%arg0: i32) -> (i32, i32) {
    %c0_i32 = arith.constant 0 : i32
    %c0_i32_0 = arith.constant 0 : i32
    %c0_i32_1 = arith.constant 0 : i32
    return %c0_i32, %c0_i32_0 : i32, i32
  }
  func.func @transform_11(%arg0: i32) -> (i32, i32) {
    %c0_i32 = arith.constant 0 : i32
    %c0_i32_0 = arith.constant 0 : i32
    %c0_i32_1 = arith.constant 0 : i32
    return %c0_i32, %c0_i32_0 : i32, i32
  }
  func.func @transform_12(%arg0: i32) -> (i32, i32) {
    %c0_i32 = arith.constant 0 : i32
    %c0_i32_0 = arith.constant 0 : i32
    %c0_i32_1 = arith.constant 0 : i32
    return %c0_i32, %c0_i32_0 : i32, i32
  }
  func.func @transform_13(%arg0: i32) -> (i32, i32) {
    %c0_i32 = arith.constant 0 : i32
    %c0_i32_0 = arith.constant 0 : i32
    %c0_i32_1 = arith.constant 0 : i32
    return %c0_i32, %c0_i32_0 : i32, i32
  }
  func.func @transform_14(%arg0: i32) -> (i32, i32) {
    %c0_i32 = arith.constant 0 : i32
    %c0_i32_0 = arith.constant 0 : i32
    %c0_i32_1 = arith.constant 0 : i32
    return %c0_i32, %c0_i32_0 : i32, i32
  }
  func.func @transform_15(%arg0: i32) -> (i32, i32, i32) {
    %c0_i32 = arith.constant 0 : i32
    %c0_i32_0 = arith.constant 0 : i32
    %c0_i32_1 = arith.constant 0 : i32
    return %arg0, %c0_i32, %c0_i32_0 : i32, i32, i32
  }
}

</mosaic_0001>

<llo_original>
// kernel: net_forward.1
$region0: #{net_forward.1}
  #allocation0 [shape = 'u32[]', space=smem, size = 0x4, offset = 0x4, fixed_abs, tag = 'smem constant byte address 0x4 - core index']
  #allocation1 [shape = 'u32[144,128]{1,0:T(1,128)}', space=vmem, size = 0x12000, scoped, tag = 'internal scratch']
  %s0 = inlined_call_operand.vmem [shape: f32[2,1,28,28], index: 0, kind: input, shape index: {}]
  %s1 = inlined_call_operand.vmem [shape: f32[5,28,144], index: 1, kind: input, shape index: {}]
  %s2 = inlined_call_operand.vmem [shape: f32[1,144], index: 2, kind: input, shape index: {}]
  %s3 = inlined_call_operand.vmem [shape: f32[2,12,24], index: 3, kind: input, shape index: {}]
  %s4 = inlined_call_operand.hbm [shape: f32[2,144,72], index: 4, kind: input, shape index: {}]
  %s5 = inlined_call_operand.vmem [shape: f32[5,72,128], index: 5, kind: input, shape index: {}]
  %s6 = inlined_call_operand.vmem [shape: f32[1,128], index: 6, kind: input, shape index: {}]
  %s7 = inlined_call_operand.hbm [shape: f32[2,4,8], index: 7, kind: input, shape index: {}]
  %s8 = inlined_call_operand.vmem [shape: f32[2,128,64], index: 8, kind: input, shape index: {}]
  %s9 = inlined_call_operand.hbm [shape: f32[4,64,120], index: 9, kind: input, shape index: {}]
  %s10 = inlined_call_operand.vmem [shape: f32[1,120], index: 10, kind: input, shape index: {}]
  %s11 = inlined_call_operand.vmem [shape: f32[120,84], index: 11, kind: input, shape index: {}]
  %s12 = inlined_call_operand.vmem [shape: f32[1,84], index: 12, kind: input, shape index: {}]
  %s13 = inlined_call_operand.vmem [shape: f32[84,10], index: 13, kind: input, shape index: {}]
  %s14 = inlined_call_operand.vmem [shape: f32[1,10], index: 14, kind: input, shape index: {}]
  %s15 = inlined_call_operand.hbm [shape: f32[2,1,10], index: 15, kind: output, shape index: {}]
  %s16 = sld [smem:[#allocation0]]
  $region105: #{net_forward.1} parent=0
    _
  %s18 = ssub.s32 1, %s16
  %s19 = scalar_select 0, %s18, %s16
  $region1: #{net_forward.1} parent=0
    #allocation2 [shape = 'u8[147456]{0}', space=vmem, size = 0x24000, scoped, tag = 'input window, operand 4, single buffered']
    #allocation3 [shape = 's32[2]{0}', space=sflag, size = 0x8, scoped, tag = 'scoped memory for net_forward.1']
    #allocation4 [shape = 's32[2]{0}', space=sflag, size = 0x8, scoped, tag = 'scoped memory for net_forward.1']
    #allocation5 [shape = 'u8[4096]{0}', space=vmem, size = 0x1000, scoped, tag = 'input window, operand 7, single buffered']
    #allocation6 [shape = 's32[1]{0}', space=sflag, size = 0x4, scoped, tag = 'scoped memory for net_forward.1']
    #allocation7 [shape = 'u8[131072]{0}', space=vmem, size = 0x20000, scoped, tag = 'input window, operand 9, single buffered']
    #allocation8 [shape = 'u8[1024]{0}', space=vmem, size = 0x400, scoped, tag = 'output window, operand 0']
    %20 = vsyncpa [#allocation3], 0
    %21 = vsyncpa [#allocation6], 0
    %22 = vsyncpa [#allocation4], 0
    %s23 = scalar_lea.sflag [#allocation4], 1
    %24 = vsyncpa %s23, 0
    loop: start=0, step=1, limit=4
    $region2: #{net_forward.1} parent=1 // loop_pre_header
      _
    $region3: #{net_forward.1} parent=1 // loop_header
      %s26 = sphi 0, %s30
      %p27 = scmp.ge.s32.totalorder %s26, 4
      %s36 = sphi 0, %s38
      %s39 = sphi 0, %s36
      %s40 = sphi 0, %s39
      %s56 = sphi 0, %s40
      %s60 = sphi 0, %s60
      %s62 = sphi 0, %s60
      %s63 = sphi 0, %s62
      %s77 = sphi 0, %s63
      %s81 = sphi 0, %s81
      %s83 = sphi 0, %s81
      %s84 = sphi 0, %s83
      %s98 = sphi 0, %s84
      %s102 = sphi 0, %s102
      %s104 = sphi 0, %s102
      %s105 = sphi 0, %s104
      %s119 = sphi 0, %s105
      %s123 = sphi 0, %s123
      %s125 = sphi 0, %s123
      %s126 = sphi 0, %s125
      %s140 = sphi 0, %s126
      %s144 = sphi 0, %s144
      %s146 = sphi 0, %s144
      %s147 = sphi 0, %s146
      %s161 = sphi 0, %s147
      %s165 = sphi 0, %s165
      %s167 = sphi 0, %s165
      %s168 = sphi 0, %s167
      %s182 = sphi 0, %s168
      %s186 = sphi 0, %s186
      %s188 = sphi 0, %s186
      %s189 = sphi 0, %s188
      %s203 = sphi 0, %s189
      %s207 = sphi 0, %s207
      %s209 = sphi 0, %s207
      %s210 = sphi 0, %s209
      %s224 = sphi 0, %s210
      %s228 = sphi 0, %s228
      %s230 = sphi 0, %s228
      %s231 = sphi 0, %s230
      %s245 = sphi 0, %s231
      %s249 = sphi 0, %s249
      %s251 = sphi 0, %s249
      %s252 = sphi 0, %s251
      %s266 = sphi 0, %s252
      %s270 = sphi 0, %s270
      %s272 = sphi 0, %s270
      %s273 = sphi 0, %s272
      %s287 = sphi 0, %s273
      %s291 = sphi 0, %s291
      %s293 = sphi 0, %s291
      %s294 = sphi 0, %s293
      %s308 = sphi 0, %s294
      %s312 = sphi 0, %s312
      %s314 = sphi 0, %s312
      %s315 = sphi 0, %s314
      %s329 = sphi 0, %s315
      %s333 = sphi 0, %s333
      %s335 = sphi 0, %s333
      %s336 = sphi 0, %s335
      %s350 = sphi 0, %s336
      %s356 = sphi 0, %s358
      %s359 = sphi 0, %s356
      %s360 = sphi 0, %s359
      %s376 = sphi 0, %s360
    $region4: #{net_forward.1} parent=1 // loop_header_branch
      %29 = sbr.rel (%p27) target = $region8
    $region5: #{net_forward.1} parent=1 // loop_body
      %s31 = ssub.s32 %s26, 1
      %s32 = ssub.s32 %s26, 2
      %s33 = sadd.s32 %s26, 1
      %s34 = ssub.s32 %s26, %s33
      %p35 = scmp.eq.s32.totalorder %s34, 0
      %s37 = sadd.s32 %s36, 1
      %s38 = scalar_select %p35, %s36, %s37
      %p41 = pneg %p35
      %p42 = scmp.eq.s32.totalorder %s26, 1
      %p43 = por %p41, %p42
      %p44 = scmp.ne.s32.totalorder %s36, %s39
      %p45 = scmp.eq.s32.totalorder %s26, 0
      %p46 = por %p44, %p45
      %p47 = scmp.ne.s32.totalorder %s36, %s39
      %p48 = scmp.eq.s32.totalorder %s31, 1
      %p49 = por %p47, %p48
      %p50 = scmp.ne.s32.totalorder %s39, %s40
      %p51 = scmp.eq.s32.totalorder %s31, 0
      %p52 = por %p50, %p51
      %p53 = scmp.ne.s32.totalorder %s39, %s40
      %p54 = scmp.eq.s32.totalorder %s32, 1
      %p55 = por %p53, %p54
      %p57 = scmp.ne.s32.totalorder %s40, %s56
      %p58 = scmp.eq.s32.totalorder %s32, 0
      %p59 = por %p57, %p58
      %s61 = sadd.s32 %s60, 1
      %p64 = scmp.eq.s32.totalorder %s26, 1
      %p65 = scmp.ne.s32.totalorder %s60, %s62
      %p66 = scmp.eq.s32.totalorder %s26, 0
      %p67 = por %p65, %p66
      %p68 = scmp.ne.s32.totalorder %s60, %s62
      %p69 = scmp.eq.s32.totalorder %s31, 1
      %p70 = por %p68, %p69
      %p71 = scmp.ne.s32.totalorder %s62, %s63
      %p72 = scmp.eq.s32.totalorder %s31, 0
      %p73 = por %p71, %p72
      %p74 = scmp.ne.s32.totalorder %s62, %s63
      %p75 = scmp.eq.s32.totalorder %s32, 1
      %p76 = por %p74, %p75
      %p78 = scmp.ne.s32.totalorder %s63, %s77
      %p79 = scmp.eq.s32.totalorder %s32, 0
      %p80 = por %p78, %p79
      %s82 = sadd.s32 %s81, 1
      %p85 = scmp.eq.s32.totalorder %s26, 1
      %p86 = scmp.ne.s32.totalorder %s81, %s83
      %p87 = scmp.eq.s32.totalorder %s26, 0
      %p88 = por %p86, %p87
      %p89 = scmp.ne.s32.totalorder %s81, %s83
      %p90 = scmp.eq.s32.totalorder %s31, 1
      %p91 = por %p89, %p90
      %p92 = scmp.ne.s32.totalorder %s83, %s84
      %p93 = scmp.eq.s32.totalorder %s31, 0
      %p94 = por %p92, %p93
      %p95 = scmp.ne.s32.totalorder %s83, %s84
      %p96 = scmp.eq.s32.totalorder %s32, 1
      %p97 = por %p95, %p96
      %p99 = scmp.ne.s32.totalorder %s84, %s98
      %p100 = scmp.eq.s32.totalorder %s32, 0
      %p101 = por %p99, %p100
      %s103 = sadd.s32 %s102, 1
      %p106 = scmp.eq.s32.totalorder %s26, 1
      %p107 = scmp.ne.s32.totalorder %s102, %s104
      %p108 = scmp.eq.s32.totalorder %s26, 0
      %p109 = por %p107, %p108
      %p110 = scmp.ne.s32.totalorder %s102, %s104
      %p111 = scmp.eq.s32.totalorder %s31, 1
      %p112 = por %p110, %p111
      %p113 = scmp.ne.s32.totalorder %s104, %s105
      %p114 = scmp.eq.s32.totalorder %s31, 0
      %p115 = por %p113, %p114
      %p116 = scmp.ne.s32.totalorder %s104, %s105
      %p117 = scmp.eq.s32.totalorder %s32, 1
      %p118 = por %p116, %p117
      %p120 = scmp.ne.s32.totalorder %s105, %s119
      %p121 = scmp.eq.s32.totalorder %s32, 0
      %p122 = por %p120, %p121
      %s124 = sadd.s32 %s123, 1
      %p127 = scmp.eq.s32.totalorder %s26, 1
      %p128 = scmp.ne.s32.totalorder %s123, %s125
      %p129 = scmp.eq.s32.totalorder %s26, 0
      %p130 = por %p128, %p129
      %p131 = scmp.ne.s32.totalorder %s123, %s125
      %p132 = scmp.eq.s32.totalorder %s31, 1
      %p133 = por %p131, %p132
      %p134 = scmp.ne.s32.totalorder %s125, %s126
      %p135 = scmp.eq.s32.totalorder %s31, 0
      %p136 = por %p134, %p135
      %p137 = scmp.ne.s32.totalorder %s125, %s126
      %p138 = scmp.eq.s32.totalorder %s32, 1
      %p139 = por %p137, %p138
      %p141 = scmp.ne.s32.totalorder %s126, %s140
      %p142 = scmp.eq.s32.totalorder %s32, 0
      %p143 = por %p141, %p142
      %s145 = sadd.s32 %s144, 1
      %p148 = scmp.eq.s32.totalorder %s26, 1
      %p149 = scmp.ne.s32.totalorder %s144, %s146
      %p150 = scmp.eq.s32.totalorder %s26, 0
      %p151 = por %p149, %p150
      %p152 = scmp.ne.s32.totalorder %s144, %s146
      %p153 = scmp.eq.s32.totalorder %s31, 1
      %p154 = por %p152, %p153
      %p155 = scmp.ne.s32.totalorder %s146, %s147
      %p156 = scmp.eq.s32.totalorder %s31, 0
      %p157 = por %p155, %p156
      %p158 = scmp.ne.s32.totalorder %s146, %s147
      %p159 = scmp.eq.s32.totalorder %s32, 1
      %p160 = por %p158, %p159
      %p162 = scmp.ne.s32.totalorder %s147, %s161
      %p163 = scmp.eq.s32.totalorder %s32, 0
      %p164 = por %p162, %p163
      %s166 = sadd.s32 %s165, 1
      %p169 = scmp.eq.s32.totalorder %s26, 1
      %p170 = scmp.ne.s32.totalorder %s165, %s167
      %p171 = scmp.eq.s32.totalorder %s26, 0
      %p172 = por %p170, %p171
      %p173 = scmp.ne.s32.totalorder %s165, %s167
      %p174 = scmp.eq.s32.totalorder %s31, 1
      %p175 = por %p173, %p174
      %p176 = scmp.ne.s32.totalorder %s167, %s168
      %p177 = scmp.eq.s32.totalorder %s31, 0
      %p178 = por %p176, %p177
      %p179 = scmp.ne.s32.totalorder %s167, %s168
      %p180 = scmp.eq.s32.totalorder %s32, 1
      %p181 = por %p179, %p180
      %p183 = scmp.ne.s32.totalorder %s168, %s182
      %p184 = scmp.eq.s32.totalorder %s32, 0
      %p185 = por %p183, %p184
      %s187 = sadd.s32 %s186, 1
      %p190 = scmp.eq.s32.totalorder %s26, 1
      %p191 = scmp.ne.s32.totalorder %s186, %s188
      %p192 = scmp.eq.s32.totalorder %s26, 0
      %p193 = por %p191, %p192
      %p194 = scmp.ne.s32.totalorder %s186, %s188
      %p195 = scmp.eq.s32.totalorder %s31, 1
      %p196 = por %p194, %p195
      %p197 = scmp.ne.s32.totalorder %s188, %s189
      %p198 = scmp.eq.s32.totalorder %s31, 0
      %p199 = por %p197, %p198
      %p200 = scmp.ne.s32.totalorder %s188, %s189
      %p201 = scmp.eq.s32.totalorder %s32, 1
      %p202 = por %p200, %p201
      %p204 = scmp.ne.s32.totalorder %s189, %s203
      %p205 = scmp.eq.s32.totalorder %s32, 0
      %p206 = por %p204, %p205
      %s208 = sadd.s32 %s207, 1
      %p211 = scmp.eq.s32.totalorder %s26, 1
      %p212 = scmp.ne.s32.totalorder %s207, %s209
      %p213 = scmp.eq.s32.totalorder %s26, 0
      %p214 = por %p212, %p213
      %p215 = scmp.ne.s32.totalorder %s207, %s209
      %p216 = scmp.eq.s32.totalorder %s31, 1
      %p217 = por %p215, %p216
      %p218 = scmp.ne.s32.totalorder %s209, %s210
      %p219 = scmp.eq.s32.totalorder %s31, 0
      %p220 = por %p218, %p219
      %p221 = scmp.ne.s32.totalorder %s209, %s210
      %p222 = scmp.eq.s32.totalorder %s32, 1
      %p223 = por %p221, %p222
      %p225 = scmp.ne.s32.totalorder %s210, %s224
      %p226 = scmp.eq.s32.totalorder %s32, 0
      %p227 = por %p225, %p226
      %s229 = sadd.s32 %s228, 1
      %p232 = scmp.eq.s32.totalorder %s26, 1
      %p233 = scmp.ne.s32.totalorder %s228, %s230
      %p234 = scmp.eq.s32.totalorder %s26, 0
      %p235 = por %p233, %p234
      %p236 = scmp.ne.s32.totalorder %s228, %s230
      %p237 = scmp.eq.s32.totalorder %s31, 1
      %p238 = por %p236, %p237
      %p239 = scmp.ne.s32.totalorder %s230, %s231
      %p240 = scmp.eq.s32.totalorder %s31, 0
      %p241 = por %p239, %p240
      %p242 = scmp.ne.s32.totalorder %s230, %s231
      %p243 = scmp.eq.s32.totalorder %s32, 1
      %p244 = por %p242, %p243
      %p246 = scmp.ne.s32.totalorder %s231, %s245
      %p247 = scmp.eq.s32.totalorder %s32, 0
      %p248 = por %p246, %p247
      %s250 = sadd.s32 %s249, 1
      %p253 = scmp.eq.s32.totalorder %s26, 1
      %p254 = scmp.ne.s32.totalorder %s249, %s251
      %p255 = scmp.eq.s32.totalorder %s26, 0
      %p256 = por %p254, %p255
      %p257 = scmp.ne.s32.totalorder %s249, %s251
      %p258 = scmp.eq.s32.totalorder %s31, 1
      %p259 = por %p257, %p258
      %p260 = scmp.ne.s32.totalorder %s251, %s252
      %p261 = scmp.eq.s32.totalorder %s31, 0
      %p262 = por %p260, %p261
      %p263 = scmp.ne.s32.totalorder %s251, %s252
      %p264 = scmp.eq.s32.totalorder %s32, 1
      %p265 = por %p263, %p264
      %p267 = scmp.ne.s32.totalorder %s252, %s266
      %p268 = scmp.eq.s32.totalorder %s32, 0
      %p269 = por %p267, %p268
      %s271 = sadd.s32 %s270, 1
      %p274 = scmp.eq.s32.totalorder %s26, 1
      %p275 = scmp.ne.s32.totalorder %s270, %s272
      %p276 = scmp.eq.s32.totalorder %s26, 0
      %p277 = por %p275, %p276
      %p278 = scmp.ne.s32.totalorder %s270, %s272
      %p279 = scmp.eq.s32.totalorder %s31, 1
      %p280 = por %p278, %p279
      %p281 = scmp.ne.s32.totalorder %s272, %s273
      %p282 = scmp.eq.s32.totalorder %s31, 0
      %p283 = por %p281, %p282
      %p284 = scmp.ne.s32.totalorder %s272, %s273
      %p285 = scmp.eq.s32.totalorder %s32, 1
      %p286 = por %p284, %p285
      %p288 = scmp.ne.s32.totalorder %s273, %s287
      %p289 = scmp.eq.s32.totalorder %s32, 0
      %p290 = por %p288, %p289
      %s292 = sadd.s32 %s291, 1
      %p295 = scmp.eq.s32.totalorder %s26, 1
      %p296 = scmp.ne.s32.totalorder %s291, %s293
      %p297 = scmp.eq.s32.totalorder %s26, 0
      %p298 = por %p296, %p297
      %p299 = scmp.ne.s32.totalorder %s291, %s293
      %p300 = scmp.eq.s32.totalorder %s31, 1
      %p301 = por %p299, %p300
      %p302 = scmp.ne.s32.totalorder %s293, %s294
      %p303 = scmp.eq.s32.totalorder %s31, 0
      %p304 = por %p302, %p303
      %p305 = scmp.ne.s32.totalorder %s293, %s294
      %p306 = scmp.eq.s32.totalorder %s32, 1
      %p307 = por %p305, %p306
      %p309 = scmp.ne.s32.totalorder %s294, %s308
      %p310 = scmp.eq.s32.totalorder %s32, 0
      %p311 = por %p309, %p310
      %s313 = sadd.s32 %s312, 1
      %p316 = scmp.eq.s32.totalorder %s26, 1
      %p317 = scmp.ne.s32.totalorder %s312, %s314
      %p318 = scmp.eq.s32.totalorder %s26, 0
      %p319 = por %p317, %p318
      %p320 = scmp.ne.s32.totalorder %s312, %s314
      %p321 = scmp.eq.s32.totalorder %s31, 1
      %p322 = por %p320, %p321
      %p323 = scmp.ne.s32.totalorder %s314, %s315
      %p324 = scmp.eq.s32.totalorder %s31, 0
      %p325 = por %p323, %p324
      %p326 = scmp.ne.s32.totalorder %s314, %s315
      %p327 = scmp.eq.s32.totalorder %s32, 1
      %p328 = por %p326, %p327
      %p330 = scmp.ne.s32.totalorder %s315, %s329
      %p331 = scmp.eq.s32.totalorder %s32, 0
      %p332 = por %p330, %p331
      %s334 = sadd.s32 %s333, 1
      %p337 = scmp.eq.s32.totalorder %s26, 1
      %p338 = scmp.ne.s32.totalorder %s333, %s335
      %p339 = scmp.eq.s32.totalorder %s26, 0
      %p340 = por %p338, %p339
      %p341 = scmp.ne.s32.totalorder %s333, %s335
      %p342 = scmp.eq.s32.totalorder %s31, 1
      %p343 = por %p341, %p342
      %p344 = scmp.ne.s32.totalorder %s335, %s336
      %p345 = scmp.eq.s32.totalorder %s31, 0
      %p346 = por %p344, %p345
      %p347 = scmp.ne.s32.totalorder %s335, %s336
      %p348 = scmp.eq.s32.totalorder %s32, 1
      %p349 = por %p347, %p348
      %p351 = scmp.ne.s32.totalorder %s336, %s350
      %p352 = scmp.eq.s32.totalorder %s32, 0
      %p353 = por %p351, %p352
      %s354 = ssub.s32 %s26, %s33
      %p355 = scmp.eq.s32.totalorder %s354, 0
      %s357 = sadd.s32 %s356, 1
      %s358 = scalar_select %p355, %s356, %s357
      %p361 = pneg %p355
      %p362 = scmp.eq.s32.totalorder %s26, 1
      %p363 = por %p361, %p362
      %p364 = scmp.ne.s32.totalorder %s356, %s359
      %p365 = scmp.eq.s32.totalorder %s26, 0
      %p366 = por %p364, %p365
      %p367 = scmp.ne.s32.totalorder %s356, %s359
      %p368 = scmp.eq.s32.totalorder %s31, 1
      %p369 = por %p367, %p368
      %p370 = scmp.ne.s32.totalorder %s359, %s360
      %p371 = scmp.eq.s32.totalorder %s31, 0
      %p372 = por %p370, %p371
      %p373 = scmp.ne.s32.totalorder %s359, %s360
      %p374 = scmp.eq.s32.totalorder %s32, 1
      %p375 = por %p373, %p374
      %p377 = scmp.ne.s32.totalorder %s360, %s376
      %p378 = scmp.eq.s32.totalorder %s32, 0
      %p379 = por %p377, %p378
      %p380 = scmp.le.s32.totalorder 1, %s26
      %p381 = scmp.lt.s32.totalorder %s26, 3
      %p382 = pnand %p380, %p381
      %p383 = pneg %p382
      // Predicated region
      $region9: #{net_forward.1} parent=5 // pred_check
        _
      $region10: #{net_forward.1} parent=5 // pred_check_branch
        %385 = sbr.rel (%p382) target = $region12
      $region11: #{net_forward.1} parent=5 // pred_region
        %s386 = ssub.s32 %s26, 1
        // Predicated region
        $region13: #{net_forward.1} parent=11 // pred_check
          %p387 = pneg %p73
        $region14: #{net_forward.1} parent=11 // pred_check_branch
          %389 = sbr.rel (%p387) target = $region16
        $region15: #{net_forward.1} parent=11 // pred_region
          _
        $region16: #{net_forward.1} parent=11 // pred_fallthru
          _
        // Predicated region
        $region17: #{net_forward.1} parent=11 // pred_check
          %p390 = pneg %p94
        $region18: #{net_forward.1} parent=11 // pred_check_branch
          %392 = sbr.rel (%p390) target = $region20
        $region19: #{net_forward.1} parent=11 // pred_region
          _
        $region20: #{net_forward.1} parent=11 // pred_fallthru
          _
        // Predicated region
        $region21: #{net_forward.1} parent=11 // pred_check
          %p393 = pneg %p115
        $region22: #{net_forward.1} parent=11 // pred_check_branch
          %395 = sbr.rel (%p393) target = $region24
        $region23: #{net_forward.1} parent=11 // pred_region
          _
        $region24: #{net_forward.1} parent=11 // pred_fallthru
          _
        // Predicated region
        $region25: #{net_forward.1} parent=11 // pred_check
          %p396 = pneg %p136
        $region26: #{net_forward.1} parent=11 // pred_check_branch
          %398 = sbr.rel (%p396) target = $region28
        $region27: #{net_forward.1} parent=11 // pred_region
          %s400 = ssub.s32 4608, 4608
          %401 = vsyncadd [#allocation3], %s400
          %s402 = sshll.u32 [#allocation2], 4
          %s403 = int_to_ptr.vmem [resolvable:$true] %s402
          %408 = dma.hbm_to_vmem [thread:$0]  %s4, 4608, %s403, [#allocation3], 128, 128, 8
        $region28: #{net_forward.1} parent=11 // pred_fallthru
          _
        // Predicated region
        $region29: #{net_forward.1} parent=11 // pred_check
          %p409 = pneg %p157
        $region30: #{net_forward.1} parent=11 // pred_check_branch
          %411 = sbr.rel (%p409) target = $region32
        $region31: #{net_forward.1} parent=11 // pred_region
          _
        $region32: #{net_forward.1} parent=11 // pred_fallthru
          _
        // Predicated region
        $region33: #{net_forward.1} parent=11 // pred_check
          %p412 = pneg %p178
        $region34: #{net_forward.1} parent=11 // pred_check_branch
          %414 = sbr.rel (%p412) target = $region36
        $region35: #{net_forward.1} parent=11 // pred_region
          _
        $region36: #{net_forward.1} parent=11 // pred_fallthru
          _
        // Predicated region
        $region37: #{net_forward.1} parent=11 // pred_check
          %p415 = pneg %p199
        $region38: #{net_forward.1} parent=11 // pred_check_branch
          %417 = sbr.rel (%p415) target = $region40
        $region39: #{net_forward.1} parent=11 // pred_region
          %s419 = ssub.s32 128, 128
          %420 = vsyncadd [#allocation6], %s419
          %s421 = sshll.u32 [#allocation5], 4
          %s422 = int_to_ptr.vmem [resolvable:$true] %s421
          %427 = dma.hbm_to_vmem [thread:$0]  %s7, 128, %s422, [#allocation6], 64, 64, 4
        $region40: #{net_forward.1} parent=11 // pred_fallthru
          _
        // Predicated region
        $region41: #{net_forward.1} parent=11 // pred_check
          %p428 = pneg %p220
        $region42: #{net_forward.1} parent=11 // pred_check_branch
          %430 = sbr.rel (%p428) target = $region44
        $region43: #{net_forward.1} parent=11 // pred_region
          _
        $region44: #{net_forward.1} parent=11 // pred_fallthru
          _
        // Predicated region
        $region45: #{net_forward.1} parent=11 // pred_check
          %p431 = pneg %p241
        $region46: #{net_forward.1} parent=11 // pred_check_branch
          %433 = sbr.rel (%p431) target = $region48
        $region47: #{net_forward.1} parent=11 // pred_region
          %s435 = ssub.s32 4096, 4096
          %436 = vsyncadd [#allocation6], %s435
          %s437 = sshll.u32 [#allocation7], 4
          %s438 = int_to_ptr.vmem [resolvable:$true] %s437
          %443 = dma.hbm_to_vmem [thread:$0]  %s9, 4096, %s438, [#allocation6], 128, 128, 8
        $region48: #{net_forward.1} parent=11 // pred_fallthru
          _
        // Predicated region
        $region49: #{net_forward.1} parent=11 // pred_check
          %p444 = pneg %p262
        $region50: #{net_forward.1} parent=11 // pred_check_branch
          %446 = sbr.rel (%p444) target = $region52
        $region51: #{net_forward.1} parent=11 // pred_region
          _
        $region52: #{net_forward.1} parent=11 // pred_fallthru
          _
        // Predicated region
        $region53: #{net_forward.1} parent=11 // pred_check
          %p447 = pneg %p283
        $region54: #{net_forward.1} parent=11 // pred_check_branch
          %449 = sbr.rel (%p447) target = $region56
        $region55: #{net_forward.1} parent=11 // pred_region
          _
        $region56: #{net_forward.1} parent=11 // pred_fallthru
          _
        // Predicated region
        $region57: #{net_forward.1} parent=11 // pred_check
          %p450 = pneg %p304
        $region58: #{net_forward.1} parent=11 // pred_check_branch
          %452 = sbr.rel (%p450) target = $region60
        $region59: #{net_forward.1} parent=11 // pred_region
          _
        $region60: #{net_forward.1} parent=11 // pred_fallthru
          _
        // Predicated region
        $region61: #{net_forward.1} parent=11 // pred_check
          %p453 = pneg %p325
        $region62: #{net_forward.1} parent=11 // pred_check_branch
          %455 = sbr.rel (%p453) target = $region64
        $region63: #{net_forward.1} parent=11 // pred_region
          _
        $region64: #{net_forward.1} parent=11 // pred_fallthru
          _
        // Predicated region
        $region65: #{net_forward.1} parent=11 // pred_check
          %p456 = pneg %p346
        $region66: #{net_forward.1} parent=11 // pred_check_branch
          %458 = sbr.rel (%p456) target = $region68
        $region67: #{net_forward.1} parent=11 // pred_region
          _
        $region68: #{net_forward.1} parent=11 // pred_fallthru
          _
      $region12: #{net_forward.1} parent=5 // pred_fallthru
        _
      %p459 = scmp.lt.s32.totalorder %s26, 2
      // Predicated region
      $region69: #{net_forward.1} parent=5 // pred_check
        %p460 = pneg %p459
      $region70: #{net_forward.1} parent=5 // pred_check_branch
        %462 = sbr.rel (%p460) target = $region72
      $region71: #{net_forward.1} parent=5 // pred_region
        // Predicated region
        $region73: #{net_forward.1} parent=71 // pred_check
          %p463 = pneg %p46
        $region74: #{net_forward.1} parent=71 // pred_check_branch
          %465 = sbr.rel (%p463) target = $region76
        $region75: #{net_forward.1} parent=71 // pred_region
          %p466 = scmp.lt.s32.totalorder %s26, 1
          %s467 = scalar_select %p466, %s26, 1
          %s468 = smul.addr %s467, 4
          %s469 = smul.addr %s468, 8
          %s470 = scalar_lea.vmem %s0, %s469
        $region76: #{net_forward.1} parent=71 // pred_fallthru
          _
      $region72: #{net_forward.1} parent=5 // pred_fallthru
        _
      %p471 = scmp.le.s32.totalorder 1, %s26
      %p472 = scmp.lt.s32.totalorder %s26, 3
      %p473 = pnand %p471, %p472
      %p474 = pneg %p473
      // Predicated region
      $region77: #{net_forward.1} parent=5 // pred_check
        _
      $region78: #{net_forward.1} parent=5 // pred_check_branch
        %476 = sbr.rel (%p473) target = $region80
      $region79: #{net_forward.1} parent=5 // pred_region
        %s477 = ssub.s32 %s26, 1
        // Predicated region
        $region81: #{net_forward.1} parent=79 // pred_check
          %p478 = pneg %p136
        $region82: #{net_forward.1} parent=79 // pred_check_branch
          %480 = sbr.rel (%p478) target = $region84
        $region83: #{net_forward.1} parent=79 // pred_region
          %481 = dma.done [#allocation3], 4608
        $region84: #{net_forward.1} parent=79 // pred_fallthru
          _
        // Predicated region
        $region85: #{net_forward.1} parent=79 // pred_check
          %p482 = pneg %p199
        $region86: #{net_forward.1} parent=79 // pred_check_branch
          %484 = sbr.rel (%p482) target = $region88
        $region87: #{net_forward.1} parent=79 // pred_region
          %485 = dma.done [#allocation6], 128
        $region88: #{net_forward.1} parent=79 // pred_fallthru
          _
        // Predicated region
        $region89: #{net_forward.1} parent=79 // pred_check
          %p486 = pneg %p241
        $region90: #{net_forward.1} parent=79 // pred_check_branch
          %488 = sbr.rel (%p486) target = $region92
        $region91: #{net_forward.1} parent=79 // pred_region
          %489 = dma.done [#allocation6], 4096
        $region92: #{net_forward.1} parent=79 // pred_fallthru
          _
        %p490 = scmp.lt.s32.totalorder %s31, 1
        %s491 = scalar_select %p490, %s31, 1
        %s492 = smul.addr %s491, 4
        %s493 = smul.addr %s492, 8
        %s494 = scalar_lea.vmem %s0, %s493
        %p495 = pneg %p52
        %p496 = pneg %p49
        %p497 = pneg %p73
        %p498 = pneg %p70
        %p499 = pneg %p94
        %p500 = pneg %p91
        %p501 = pneg %p115
        %p502 = pneg %p112
        %p503 = pneg %p136
        %p504 = pneg %p133
        %p505 = pneg %p157
        %p506 = pneg %p154
        %p507 = pneg %p178
        %p508 = pneg %p175
        %p509 = pneg %p199
        %p510 = pneg %p196
        %p511 = pneg %p220
        %p512 = pneg %p217
        %p513 = pneg %p241
        %p514 = pneg %p238
        %p515 = pneg %p262
        %p516 = pneg %p259
        %p517 = pneg %p283
        %p518 = pneg %p280
        %p519 = pneg %p304
        %p520 = pneg %p301
        %p521 = pneg %p325
        %p522 = pneg %p322
        %p523 = pneg %p346
        %p524 = pneg %p343
        %p525 = pneg %p372
        %p526 = pneg %p369
        %s527 = sand.u32 %s359, 1
        %s528 = scalar_lea.sflag [#allocation4], %s527
        %s529 = sand.u32 %s359, 1
        %s530 = scalar_lea.vmem [#allocation8], %s529
        %p531 = scmp.lt.s32.totalorder %s31, 1
        %s532 = scalar_select %p531, %s31, 1
        %s533 = smul.addr %s532, 4
        %s534 = smul.addr %s533, 8
        %s535 = scalar_lea.vmem %s0, %s534
        %v536 = vld [vmem:[%s535] sm:$0xff]
        %v537 = vld [vmem:[%s535 + $0x8] sm:$0xff]
        %v538 = vld [vmem:[%s535 + $0x10] sm:$0xff]
        %v539 = vld [vmem:[%s535 + $0x18] sm:$0xf]
        %v540 = vld [vmem:[%s1] sm:$0xff]
        %v541 = vld [vmem:[%s1 + $0x8] sm:$0xff]
        %v542 = vld [vmem:[%s1 + $0x10] sm:$0xff]
        %v543 = vld [vmem:[%s1 + $0x18] sm:$0xff]
        %v544 = vld [vmem:[%s1 + $0x20] sm:$0xff]
        %v545 = vld [vmem:[%s1 + $0x28] sm:$0xff]
        %v546 = vld [vmem:[%s1 + $0x30] sm:$0xf]
        %v547 = vld [vmem:[%s1 + $0x38] sm:$0xf]
        %s548 = scalar_lea.vmem %s1, 64
        %v549 = vld [vmem:[%s548] sm:$0xff]
        %v550 = vld [vmem:[%s548 + $0x8] sm:$0xff]
        %v551 = vld [vmem:[%s548 + $0x10] sm:$0xff]
        %v552 = vld [vmem:[%s548 + $0x18] sm:$0xff]
        %v553 = vld [vmem:[%s548 + $0x20] sm:$0xff]
        %v554 = vld [vmem:[%s548 + $0x28] sm:$0xff]
        %v555 = vld [vmem:[%s548 + $0x30] sm:$0xf]
        %v556 = vld [vmem:[%s548 + $0x38] sm:$0xf]
        %vm561 = vcmask 1046528
        %v562 = vrot.slane %v536, 1
        %v563 = vrot.slane %v537, 1
        %v564 = vsel %vm561, %v562, %v563
        %v565 = vrot.slane %v538, 1
        %v566 = vsel %vm561, %v563, %v565
        %v567 = vrot.slane %v539, 1
        %v568 = vsel %vm561, %v565, %v567
        %vm569 = vcmask 228352
        %v570 = vsel %vm569, %v564, 0
        %v572 = vsel %vm569, %v566, 0
        %v574 = vsel %vm569, %v568, 0
        %vm576 = vcmask 1043456
        %v578 = vsel %vm576, %v555, 0
        %v581 = vsel %vm576, %v556, 0
        %583 = vmatprep.subr.mxu0 %v550
        %584 = vmatpush1.msra.mxu0 %v549
        %585 = vmatprep.subr.mxu0 %v552
        %586 = vmatpush1.msra.mxu0 %v551
        %587 = vmatprep.subr.mxu0 %v554
        %588 = vmatpush1.msra.mxu0 %v553
        %589 = vmatprep.subr.mxu0 %v581
        %590 = vmatpush1.msra.mxu0 %v578
        %591 = vmatprep.subr.mxu0 0.0
        %592 = vmatpush1.msra.mxu0 0.0
        %593 = vmatprep.subr.mxu0 0.0
        %594 = vmatpush1.msra.mxu0 0.0
        %595 = vmatprep.subr.mxu0 0.0
        %596 = vmatpush1.msra.mxu0 0.0
        %597 = vmatprep.subr.mxu0 0.0
        %598 = vmatpush1.msra.mxu0 0.0
        %599 = vmatprep.subr.mxu0 0.0
        %600 = vmatpush1.msra.mxu0 0.0
        %601 = vmatprep.subr.mxu0 0.0
        %602 = vmatpush1.msra.mxu0 0.0
        %603 = vmatprep.subr.mxu0 0.0
        %604 = vmatpush1.msra.mxu0 0.0
        %605 = vmatprep.subr.mxu0 0.0
        %606 = vmatpush1.msra.mxu0 0.0
        %607 = vmatprep.subr.mxu0 0.0
        %608 = vmatpush1.msra.mxu0 0.0
        %609 = vmatprep.subr.mxu0 0.0
        %610 = vmatpush1.msra.mxu0 0.0
        %611 = vmatprep.subr.mxu0 0.0
        %612 = vmatpush1.msra.mxu0 0.0
        %613 = vmatprep.subr.mxu0 0.0
        %614 = vmatpush1.msra.mxu0 0.0
        %615 = vmatprep.subr.mxu0 0.0
        %616 = vmatpush1.msra.mxu0 0.0
        %617 = vmatprep.subr.mxu0 0.0
        %618 = vmatpush1.msra.mxu0 0.0
        %619 = vmatprep.subr.mxu0 0.0
        %620 = vmatpush1.msra.mxu0 0.0
        %621 = vmatprep.subr.mxu0 0.0
        %622 = vmatpush1.msra.mxu0 0.0
        %623 = vmatprep.subr.mxu0 0.0
        %624 = vmatpush1.msra.mxu0 0.0
        %625 = vmatprep.subr.mxu0 0.0
        %626 = vmatpush1.msra.mxu0 0.0
        %627 = vmatprep.subr.mxu0 0.0
        %628 = vmatpush1.msra.mxu0 0.0
        %629 = vmatprep.subr.mxu0 0.0
        %630 = vmatpush1.msra.mxu0 0.0
        %631 = vmatprep.subr.mxu0 0.0
        %632 = vmatpush1.msra.mxu0 0.0
        %633 = vmatprep.subr.mxu0 0.0
        %634 = vmatpush1.msra.mxu0 0.0
        %635 = vmatprep.subr.mxu0 0.0
        %636 = vmatpush1.msra.mxu0 0.0
        %637 = vmatprep.subr.mxu0 0.0
        %638 = vmatpush1.msra.mxu0 0.0
        %639 = vmatprep.subr.mxu0 0.0
        %640 = vmatpush1.msra.mxu0 0.0
        %641 = vmatprep.subr.mxu0 0.0
        %642 = vmatpush1.msra.mxu0 0.0
        %643 = vmatprep.subr.mxu0 0.0
        %644 = vmatpush1.msra.mxu0 0.0
        %645 = vmatprep.subr.mxu0 0.0
        %646 = vmatpush1.msra.mxu0 0.0
        %647 = vmatprep.mubr.f32.mxu0 0.0
        %648 = vmatmul.mubr.f32.gmra.mrb[0].mxu0 %v570
        %v649 = vpop.f32.mrb[0].mxu0
        %v650 = vadd.f32 0.0, %v649
        %v651 = vpop.f32.mrb[0].mxu0
        %v652 = vadd.f32 0.0, %v651
        %653 = vmatprep.mubr.f32.mxu0 0.0
        %654 = vmatmul.mubr.f32.gmra.mrb[0].mxu0 %v572
        %v655 = vpop.f32.mrb[0].mxu0
        %v656 = vadd.f32 0.0, %v655
        %v657 = vpop.f32.mrb[0].mxu0
        %v658 = vadd.f32 0.0, %v657
        %659 = vmatprep.mubr.f32.mxu0 0.0
        %660 = vmatmul.mubr.f32.gmra.mrb[0].mxu0 %v574
        %v661 = vpop.f32.mrb[0].mxu0
        %v662 = vadd.f32 0.0, %v661
        %v663 = vpop.f32.mrb[0].mxu0
        %v664 = vadd.f32 0.0, %v663
        %665 = vdwg.mxu0
        %v666 = vsel %vm569, %v536, 0
        %v668 = vsel %vm569, %v537, 0
        %v670 = vsel %vm569, %v538, 0
        %v673 = vsel %vm576, %v546, 0
        %v676 = vsel %vm576, %v547, 0
        %678 = vmatprep.subr.mxu0 %v541
        %679 = vmatpush1.msra.mxu0 %v540
        %680 = vmatprep.subr.mxu0 %v543
        %681 = vmatpush1.msra.mxu0 %v542
        %682 = vmatprep.subr.mxu0 %v545
        %683 = vmatpush1.msra.mxu0 %v544
        %684 = vmatprep.subr.mxu0 %v676
        %685 = vmatpush1.msra.mxu0 %v673
        %686 = vmatprep.subr.mxu0 0.0
        %687 = vmatpush1.msra.mxu0 0.0
        %688 = vmatprep.subr.mxu0 0.0
        %689 = vmatpush1.msra.mxu0 0.0
        %690 = vmatprep.subr.mxu0 0.0
        %691 = vmatpush1.msra.mxu0 0.0
        %692 = vmatprep.subr.mxu0 0.0
        %693 = vmatpush1.msra.mxu0 0.0
        %694 = vmatprep.subr.mxu0 0.0
        %695 = vmatpush1.msra.mxu0 0.0
        %696 = vmatprep.subr.mxu0 0.0
        %697 = vmatpush1.msra.mxu0 0.0
        %698 = vmatprep.subr.mxu0 0.0
        %699 = vmatpush1.msra.mxu0 0.0
        %700 = vmatprep.subr.mxu0 0.0
        %701 = vmatpush1.msra.mxu0 0.0
        %702 = vmatprep.subr.mxu0 0.0
        %703 = vmatpush1.msra.mxu0 0.0
        %704 = vmatprep.subr.mxu0 0.0
        %705 = vmatpush1.msra.mxu0 0.0
        %706 = vmatprep.subr.mxu0 0.0
        %707 = vmatpush1.msra.mxu0 0.0
        %708 = vmatprep.subr.mxu0 0.0
        %709 = vmatpush1.msra.mxu0 0.0
        %710 = vmatprep.subr.mxu0 0.0
        %711 = vmatpush1.msra.mxu0 0.0
        %712 = vmatprep.subr.mxu0 0.0
        %713 = vmatpush1.msra.mxu0 0.0
        %714 = vmatprep.subr.mxu0 0.0
        %715 = vmatpush1.msra.mxu0 0.0
        %716 = vmatprep.subr.mxu0 0.0
        %717 = vmatpush1.msra.mxu0 0.0
        %718 = vmatprep.subr.mxu0 0.0
        %719 = vmatpush1.msra.mxu0 0.0
        %720 = vmatprep.subr.mxu0 0.0
        %721 = vmatpush1.msra.mxu0 0.0
        %722 = vmatprep.subr.mxu0 0.0
        %723 = vmatpush1.msra.mxu0 0.0
        %724 = vmatprep.subr.mxu0 0.0
        %725 = vmatpush1.msra.mxu0 0.0
        %726 = vmatprep.subr.mxu0 0.0
        %727 = vmatpush1.msra.mxu0 0.0
        %728 = vmatprep.subr.mxu0 0.0
        %729 = vmatpush1.msra.mxu0 0.0
        %730 = vmatprep.subr.mxu0 0.0
        %731 = vmatpush1.msra.mxu0 0.0
        %732 = vmatprep.subr.mxu0 0.0
        %733 = vmatpush1.msra.mxu0 0.0
        %734 = vmatprep.subr.mxu0 0.0
        %735 = vmatpush1.msra.mxu0 0.0
        %736 = vmatprep.subr.mxu0 0.0
        %737 = vmatpush1.msra.mxu0 0.0
        %738 = vmatprep.subr.mxu0 0.0
        %739 = vmatpush1.msra.mxu0 0.0
        %740 = vmatprep.subr.mxu0 0.0
        %741 = vmatpush1.msra.mxu0 0.0
        %742 = vmatprep.mubr.f32.mxu0 0.0
        %743 = vmatmul.mubr.f32.gmra.mrb[0].mxu0 %v666
        %v744 = vpop.f32.mrb[0].mxu0
        %v745 = vadd.f32 %v650, %v744
        %v746 = vpop.f32.mrb[0].mxu0
        %v747 = vadd.f32 %v652, %v746
        %748 = vmatprep.mubr.f32.mxu0 0.0
        %749 = vmatmul.mubr.f32.gmra.mrb[0].mxu0 %v668
        %v750 = vpop.f32.mrb[0].mxu0
        %v751 = vadd.f32 %v656, %v750
        %v752 = vpop.f32.mrb[0].mxu0
        %v753 = vadd.f32 %v658, %v752
        %754 = vmatprep.mubr.f32.mxu0 0.0
        %755 = vmatmul.mubr.f32.gmra.mrb[0].mxu0 %v670
        %v756 = vpop.f32.mrb[0].mxu0
        %v757 = vadd.f32 %v662, %v756
        %v758 = vpop.f32.mrb[0].mxu0
        %v759 = vadd.f32 %v664, %v758
        %760 = vdwg.mxu0
        %s761 = scalar_lea.vmem %s1, 128
        %v762 = vld [vmem:[%s761] sm:$0xff]
        %v763 = vld [vmem:[%s761 + $0x8] sm:$0xff]
        %v764 = vld [vmem:[%s761 + $0x10] sm:$0xff]
        %v765 = vld [vmem:[%s761 + $0x18] sm:$0xff]
        %v766 = vld [vmem:[%s761 + $0x20] sm:$0xff]
        %v767 = vld [vmem:[%s761 + $0x28] sm:$0xff]
        %v768 = vld [vmem:[%s761 + $0x30] sm:$0xf]
        %v769 = vld [vmem:[%s761 + $0x38] sm:$0xf]
        %vm770 = vcmask 1045504
        %v771 = vrot.slane %v536, 2
        %v772 = vrot.slane %v537, 2
        %v773 = vsel %vm770, %v771, %v772
        %v774 = vrot.slane %v538, 2
        %v775 = vsel %vm770, %v772, %v774
        %v776 = vrot.slane %v539, 2
        %v777 = vsel %vm770, %v774, %v776
        %v778 = vsel %vm569, %v773, 0
        %v780 = vsel %vm569, %v775, 0
        %v782 = vsel %vm569, %v777, 0
        %v785 = vsel %vm576, %v768, 0
        %v788 = vsel %vm576, %v769, 0
        %790 = vmatprep.subr.mxu0 %v763
        %791 = vmatpush1.msra.mxu0 %v762
        %792 = vmatprep.subr.mxu0 %v765
        %793 = vmatpush1.msra.mxu0 %v764
        %794 = vmatprep.subr.mxu0 %v767
        %795 = vmatpush1.msra.mxu0 %v766
        %796 = vmatprep.subr.mxu0 %v788
        %797 = vmatpush1.msra.mxu0 %v785
        %798 = vmatprep.subr.mxu0 0.0
        %799 = vmatpush1.msra.mxu0 0.0
        %800 = vmatprep.subr.mxu0 0.0
        %801 = vmatpush1.msra.mxu0 0.0
        %802 = vmatprep.subr.mxu0 0.0
        %803 = vmatpush1.msra.mxu0 0.0
        %804 = vmatprep.subr.mxu0 0.0
        %805 = vmatpush1.msra.mxu0 0.0
        %806 = vmatprep.subr.mxu0 0.0
        %807 = vmatpush1.msra.mxu0 0.0
        %808 = vmatprep.subr.mxu0 0.0
        %809 = vmatpush1.msra.mxu0 0.0
        %810 = vmatprep.subr.mxu0 0.0
        %811 = vmatpush1.msra.mxu0 0.0
        %812 = vmatprep.subr.mxu0 0.0
        %813 = vmatpush1.msra.mxu0 0.0
        %814 = vmatprep.subr.mxu0 0.0
        %815 = vmatpush1.msra.mxu0 0.0
        %816 = vmatprep.subr.mxu0 0.0
        %817 = vmatpush1.msra.mxu0 0.0
        %818 = vmatprep.subr.mxu0 0.0
        %819 = vmatpush1.msra.mxu0 0.0
        %820 = vmatprep.subr.mxu0 0.0
        %821 = vmatpush1.msra.mxu0 0.0
        %822 = vmatprep.subr.mxu0 0.0
        %823 = vmatpush1.msra.mxu0 0.0
        %824 = vmatprep.subr.mxu0 0.0
        %825 = vmatpush1.msra.mxu0 0.0
        %826 = vmatprep.subr.mxu0 0.0
        %827 = vmatpush1.msra.mxu0 0.0
        %828 = vmatprep.subr.mxu0 0.0
        %829 = vmatpush1.msra.mxu0 0.0
        %830 = vmatprep.subr.mxu0 0.0
        %831 = vmatpush1.msra.mxu0 0.0
        %832 = vmatprep.subr.mxu0 0.0
        %833 = vmatpush1.msra.mxu0 0.0
        %834 = vmatprep.subr.mxu0 0.0
        %835 = vmatpush1.msra.mxu0 0.0
        %836 = vmatprep.subr.mxu0 0.0
        %837 = vmatpush1.msra.mxu0 0.0
        %838 = vmatprep.subr.mxu0 0.0
        %839 = vmatpush1.msra.mxu0 0.0
        %840 = vmatprep.subr.mxu0 0.0
        %841 = vmatpush1.msra.mxu0 0.0
        %842 = vmatprep.subr.mxu0 0.0
        %843 = vmatpush1.msra.mxu0 0.0
        %844 = vmatprep.subr.mxu0 0.0
        %845 = vmatpush1.msra.mxu0 0.0
        %846 = vmatprep.subr.mxu0 0.0
        %847 = vmatpush1.msra.mxu0 0.0
        %848 = vmatprep.subr.mxu0 0.0
        %849 = vmatpush1.msra.mxu0 0.0
        %850 = vmatprep.subr.mxu0 0.0
        %851 = vmatpush1.msra.mxu0 0.0
        %852 = vmatprep.subr.mxu0 0.0
        %853 = vmatpush1.msra.mxu0 0.0
        %854 = vmatprep.mubr.f32.mxu0 0.0
        %855 = vmatmul.mubr.f32.gmra.mrb[0].mxu0 %v778
        %v856 = vpop.f32.mrb[0].mxu0
        %v857 = vadd.f32 0.0, %v856
        %v858 = vpop.f32.mrb[0].mxu0
        %v859 = vadd.f32 0.0, %v858
        %860 = vmatprep.mubr.f32.mxu0 0.0
        %861 = vmatmul.mubr.f32.gmra.mrb[0].mxu0 %v780
        %v862 = vpop.f32.mrb[0].mxu0
        %v863 = vadd.f32 0.0, %v862
        %v864 = vpop.f32.mrb[0].mxu0
        %v865 = vadd.f32 0.0, %v864
        %866 = vmatprep.mubr.f32.mxu0 0.0
        %867 = vmatmul.mubr.f32.gmra.mrb[0].mxu0 %v782
        %v868 = vpop.f32.mrb[0].mxu0
        %v869 = vadd.f32 0.0, %v868
        %v870 = vpop.f32.mrb[0].mxu0
        %v871 = vadd.f32 0.0, %v870
        %872 = vdwg.mxu0
        %v873 = vadd.f32 %v745, %v857
        %v874 = vadd.f32 %v747, %v859
        %v875 = vadd.f32 %v751, %v863
        %v876 = vadd.f32 %v753, %v865
        %v877 = vadd.f32 %v757, %v869
        %v878 = vadd.f32 %v759, %v871
        %s879 = scalar_lea.vmem %s1, 192
        %v880 = vld [vmem:[%s879] sm:$0xff]
        %v881 = vld [vmem:[%s879 + $0x8] sm:$0xff]
        %v882 = vld [vmem:[%s879 + $0x10] sm:$0xff]
        %v883 = vld [vmem:[%s879 + $0x18] sm:$0xff]
        %v884 = vld [vmem:[%s879 + $0x20] sm:$0xff]
        %v885 = vld [vmem:[%s879 + $0x28] sm:$0xff]
        %v886 = vld [vmem:[%s879 + $0x30] sm:$0xf]
        %v887 = vld [vmem:[%s879 + $0x38] sm:$0xf]
        %vm888 = vcmask 1044480
        %v889 = vrot.slane %v536, 3
        %v890 = vrot.slane %v537, 3
        %v891 = vsel %vm888, %v889, %v890
        %v892 = vrot.slane %v538, 3
        %v893 = vsel %vm888, %v890, %v892
        %v894 = vrot.slane %v539, 3
        %v895 = vsel %vm888, %v892, %v894
        %v896 = vsel %vm569, %v891, 0
        %v898 = vsel %vm569, %v893, 0
        %v900 = vsel %vm569, %v895, 0
        %v903 = vsel %vm576, %v886, 0
        %v906 = vsel %vm576, %v887, 0
        %908 = vmatprep.subr.mxu0 %v881
        %909 = vmatpush1.msra.mxu0 %v880
        %910 = vmatprep.subr.mxu0 %v883
        %911 = vmatpush1.msra.mxu0 %v882
        %912 = vmatprep.subr.mxu0 %v885
        %913 = vmatpush1.msra.mxu0 %v884
        %914 = vmatprep.subr.mxu0 %v906
        %915 = vmatpush1.msra.mxu0 %v903
        %916 = vmatprep.subr.mxu0 0.0
        %917 = vmatpush1.msra.mxu0 0.0
        %918 = vmatprep.subr.mxu0 0.0
        %919 = vmatpush1.msra.mxu0 0.0
        %920 = vmatprep.subr.mxu0 0.0
        %921 = vmatpush1.msra.mxu0 0.0
        %922 = vmatprep.subr.mxu0 0.0
        %923 = vmatpush1.msra.mxu0 0.0
        %924 = vmatprep.subr.mxu0 0.0
        %925 = vmatpush1.msra.mxu0 0.0
        %926 = vmatprep.subr.mxu0 0.0
        %927 = vmatpush1.msra.mxu0 0.0
        %928 = vmatprep.subr.mxu0 0.0
        %929 = vmatpush1.msra.mxu0 0.0
        %930 = vmatprep.subr.mxu0 0.0
        %931 = vmatpush1.msra.mxu0 0.0
        %932 = vmatprep.subr.mxu0 0.0
        %933 = vmatpush1.msra.mxu0 0.0
        %934 = vmatprep.subr.mxu0 0.0
        %935 = vmatpush1.msra.mxu0 0.0
        %936 = vmatprep.subr.mxu0 0.0
        %937 = vmatpush1.msra.mxu0 0.0
        %938 = vmatprep.subr.mxu0 0.0
        %939 = vmatpush1.msra.mxu0 0.0
        %940 = vmatprep.subr.mxu0 0.0
        %941 = vmatpush1.msra.mxu0 0.0
        %942 = vmatprep.subr.mxu0 0.0
        %943 = vmatpush1.msra.mxu0 0.0
        %944 = vmatprep.subr.mxu0 0.0
        %945 = vmatpush1.msra.mxu0 0.0
        %946 = vmatprep.subr.mxu0 0.0
        %947 = vmatpush1.msra.mxu0 0.0
        %948 = vmatprep.subr.mxu0 0.0
        %949 = vmatpush1.msra.mxu0 0.0
        %950 = vmatprep.subr.mxu0 0.0
        %951 = vmatpush1.msra.mxu0 0.0
        %952 = vmatprep.subr.mxu0 0.0
        %953 = vmatpush1.msra.mxu0 0.0
        %954 = vmatprep.subr.mxu0 0.0
        %955 = vmatpush1.msra.mxu0 0.0
        %956 = vmatprep.subr.mxu0 0.0
        %957 = vmatpush1.msra.mxu0 0.0
        %958 = vmatprep.subr.mxu0 0.0
        %959 = vmatpush1.msra.mxu0 0.0
        %960 = vmatprep.subr.mxu0 0.0
        %961 = vmatpush1.msra.mxu0 0.0
        %962 = vmatprep.subr.mxu0 0.0
        %963 = vmatpush1.msra.mxu0 0.0
        %964 = vmatprep.subr.mxu0 0.0
        %965 = vmatpush1.msra.mxu0 0.0
        %966 = vmatprep.subr.mxu0 0.0
        %967 = vmatpush1.msra.mxu0 0.0
        %968 = vmatprep.subr.mxu0 0.0
        %969 = vmatpush1.msra.mxu0 0.0
        %970 = vmatprep.subr.mxu0 0.0
        %971 = vmatpush1.msra.mxu0 0.0
        %972 = vmatprep.mubr.f32.mxu0 0.0
        %973 = vmatmul.mubr.f32.gmra.mrb[0].mxu0 %v896
        %v974 = vpop.f32.mrb[0].mxu0
        %v975 = vadd.f32 0.0, %v974
        %v976 = vpop.f32.mrb[0].mxu0
        %v977 = vadd.f32 0.0, %v976
        %978 = vmatprep.mubr.f32.mxu0 0.0
        %979 = vmatmul.mubr.f32.gmra.mrb[0].mxu0 %v898
        %v980 = vpop.f32.mrb[0].mxu0
        %v981 = vadd.f32 0.0, %v980
        %v982 = vpop.f32.mrb[0].mxu0
        %v983 = vadd.f32 0.0, %v982
        %984 = vmatprep.mubr.f32.mxu0 0.0
        %985 = vmatmul.mubr.f32.gmra.mrb[0].mxu0 %v900
        %v986 = vpop.f32.mrb[0].mxu0
        %v987 = vadd.f32 0.0, %v986
        %v988 = vpop.f32.mrb[0].mxu0
        %v989 = vadd.f32 0.0, %v988
        %990 = vdwg.mxu0
        %v991 = vadd.f32 %v873, %v975
        %v992 = vadd.f32 %v874, %v977
        %v993 = vadd.f32 %v875, %v981
        %v994 = vadd.f32 %v876, %v983
        %v995 = vadd.f32 %v877, %v987
        %v996 = vadd.f32 %v878, %v989
        %s997 = scalar_lea.vmem %s1, 256
        %v998 = vld [vmem:[%s997] sm:$0xff]
        %v999 = vld [vmem:[%s997 + $0x8] sm:$0xff]
        %v1000 = vld [vmem:[%s997 + $0x10] sm:$0xff]
        %v1001 = vld [vmem:[%s997 + $0x18] sm:$0xff]
        %v1002 = vld [vmem:[%s997 + $0x20] sm:$0xff]
        %v1003 = vld [vmem:[%s997 + $0x28] sm:$0xff]
        %v1004 = vld [vmem:[%s997 + $0x30] sm:$0xf]
        %v1005 = vld [vmem:[%s997 + $0x38] sm:$0xf]
        %v1006 = vrot.slane %v536, 4
        %v1007 = vrot.slane %v537, 4
        %v1008 = vsel %vm576, %v1006, %v1007
        %v1009 = vrot.slane %v538, 4
        %v1010 = vsel %vm576, %v1007, %v1009
        %v1011 = vrot.slane %v539, 4
        %v1012 = vsel %vm576, %v1009, %v1011
        %v1013 = vsel %vm569, %v1008, 0
        %v1015 = vsel %vm569, %v1010, 0
        %v1017 = vsel %vm569, %v1012, 0
        %v1020 = vsel %vm576, %v1004, 0
        %v1023 = vsel %vm576, %v1005, 0
        %1025 = vmatprep.subr.mxu0 %v999
        %1026 = vmatpush1.msra.mxu0 %v998
        %1027 = vmatprep.subr.mxu0 %v1001
        %1028 = vmatpush1.msra.mxu0 %v1000
        %1029 = vmatprep.subr.mxu0 %v1003
        %1030 = vmatpush1.msra.mxu0 %v1002
        %1031 = vmatprep.subr.mxu0 %v1023
        %1032 = vmatpush1.msra.mxu0 %v1020
        %1033 = vmatprep.subr.mxu0 0.0
        %1034 = vmatpush1.msra.mxu0 0.0
        %1035 = vmatprep.subr.mxu0 0.0
        %1036 = vmatpush1.msra.mxu0 0.0
        %1037 = vmatprep.subr.mxu0 0.0
        %1038 = vmatpush1.msra.mxu0 0.0
        %1039 = vmatprep.subr.mxu0 0.0
        %1040 = vmatpush1.msra.mxu0 0.0
        %1041 = vmatprep.subr.mxu0 0.0
        %1042 = vmatpush1.msra.mxu0 0.0
        %1043 = vmatprep.subr.mxu0 0.0
        %1044 = vmatpush1.msra.mxu0 0.0
        %1045 = vmatprep.subr.mxu0 0.0
        %1046 = vmatpush1.msra.mxu0 0.0
        %1047 = vmatprep.subr.mxu0 0.0
        %1048 = vmatpush1.msra.mxu0 0.0
        %1049 = vmatprep.subr.mxu0 0.0
        %1050 = vmatpush1.msra.mxu0 0.0
        %1051 = vmatprep.subr.mxu0 0.0
        %1052 = vmatpush1.msra.mxu0 0.0
        %1053 = vmatprep.subr.mxu0 0.0
        %1054 = vmatpush1.msra.mxu0 0.0
        %1055 = vmatprep.subr.mxu0 0.0
        %1056 = vmatpush1.msra.mxu0 0.0
        %1057 = vmatprep.subr.mxu0 0.0
        %1058 = vmatpush1.msra.mxu0 0.0
        %1059 = vmatprep.subr.mxu0 0.0
        %1060 = vmatpush1.msra.mxu0 0.0
        %1061 = vmatprep.subr.mxu0 0.0
        %1062 = vmatpush1.msra.mxu0 0.0
        %1063 = vmatprep.subr.mxu0 0.0
        %1064 = vmatpush1.msra.mxu0 0.0
        %1065 = vmatprep.subr.mxu0 0.0
        %1066 = vmatpush1.msra.mxu0 0.0
        %1067 = vmatprep.subr.mxu0 0.0
        %1068 = vmatpush1.msra.mxu0 0.0
        %1069 = vmatprep.subr.mxu0 0.0
        %1070 = vmatpush1.msra.mxu0 0.0
        %1071 = vmatprep.subr.mxu0 0.0
        %1072 = vmatpush1.msra.mxu0 0.0
        %1073 = vmatprep.subr.mxu0 0.0
        %1074 = vmatpush1.msra.mxu0 0.0
        %1075 = vmatprep.subr.mxu0 0.0
        %1076 = vmatpush1.msra.mxu0 0.0
        %1077 = vmatprep.subr.mxu0 0.0
        %1078 = vmatpush1.msra.mxu0 0.0
        %1079 = vmatprep.subr.mxu0 0.0
        %1080 = vmatpush1.msra.mxu0 0.0
        %1081 = vmatprep.subr.mxu0 0.0
        %1082 = vmatpush1.msra.mxu0 0.0
        %1083 = vmatprep.subr.mxu0 0.0
        %1084 = vmatpush1.msra.mxu0 0.0
        %1085 = vmatprep.subr.mxu0 0.0
        %1086 = vmatpush1.msra.mxu0 0.0
        %1087 = vmatprep.subr.mxu0 0.0
        %1088 = vmatpush1.msra.mxu0 0.0
        %1089 = vmatprep.mubr.f32.mxu0 0.0
        %1090 = vmatmul.mubr.f32.gmra.mrb[0].mxu0 %v1013
        %v1091 = vpop.f32.mrb[0].mxu0
        %v1092 = vadd.f32 0.0, %v1091
        %v1093 = vpop.f32.mrb[0].mxu0
        %v1094 = vadd.f32 0.0, %v1093
        %1095 = vmatprep.mubr.f32.mxu0 0.0
        %1096 = vmatmul.mubr.f32.gmra.mrb[0].mxu0 %v1015
        %v1097 = vpop.f32.mrb[0].mxu0
        %v1098 = vadd.f32 0.0, %v1097
        %v1099 = vpop.f32.mrb[0].mxu0
        %v1100 = vadd.f32 0.0, %v1099
        %1101 = vmatprep.mubr.f32.mxu0 0.0
        %1102 = vmatmul.mubr.f32.gmra.mrb[0].mxu0 %v1017
        %v1103 = vpop.f32.mrb[0].mxu0
        %v1104 = vadd.f32 0.0, %v1103
        %v1105 = vpop.f32.mrb[0].mxu0
        %v1106 = vadd.f32 0.0, %v1105
        %1107 = vdwg.mxu0
        %v1108 = vadd.f32 %v991, %v1092
        %v1109 = vadd.f32 %v992, %v1094
        %v1110 = vadd.f32 %v993, %v1098
        %v1111 = vadd.f32 %v994, %v1100
        %v1112 = vadd.f32 %v995, %v1104
        %v1113 = vadd.f32 %v996, %v1106
        %v1114 = vld [vmem:[%s2] sm:$0x3]
        %v1116 = vlaneseq
        %v1117 = vshrl.u32 %v1116, 7
        %v1118 = vsub.s32 0, %v1117
        %v1119 = vrot.slane %v1114, %v1118
        %v1120 = vlaneseq
        %v1121 = vshrl.u32 %v1120, 7
        %v1122 = vsub.s32 1, %v1121
        %v1123 = vrot.slane %v1114, %v1122
        %v1126 = vadd.f32 %v1108, %v1119
        %v1127 = vadd.f32 %v1109, %v1123
        %v1128 = vadd.f32 %v1110, %v1119
        %v1129 = vadd.f32 %v1111, %v1123
        %v1130 = vadd.f32 %v1112, %v1119
        %v1131 = vadd.f32 %v1113, %v1123
        %v1132 = vmax.f32 %v1126, 0.0
        %v1133 = vmax.f32 %v1127, 0.0
        %v1134 = vmax.f32 %v1128, 0.0
        %v1135 = vmax.f32 %v1129, 0.0
        %v1136 = vmax.f32 %v1130, 0.0
        %v1137 = vmax.f32 %v1131, 0.0
        %v1138 = vld [vmem:[%s3] sm:$0xff]
        %v1139 = vld [vmem:[%s3 + $0x8] sm:$0xf]
        %vm1140 = vcmask 195584
        %v1142 = vsel %vm1140, %v1138, 0
        %v1145 = vsel %vm1140, %v1139, 0
        %1147 = vmatprep.subr.mxu0 %v1133
        %1148 = vmatpush1.msra.mxu0 %v1132
        %1149 = vmatprep.subr.mxu0 %v1135
        %1150 = vmatpush1.msra.mxu0 %v1134
        %1151 = vmatprep.subr.mxu0 %v1137
        %1152 = vmatpush1.msra.mxu0 %v1136
        %1153 = vmatprep.subr.mxu0 0.0
        %1154 = vmatpush1.msra.mxu0 0.0
        %1155 = vmatprep.subr.mxu0 0.0
        %1156 = vmatpush1.msra.mxu0 0.0
        %1157 = vmatprep.subr.mxu0 0.0
        %1158 = vmatpush1.msra.mxu0 0.0
        %1159 = vmatprep.subr.mxu0 0.0
        %1160 = vmatpush1.msra.mxu0 0.0
        %1161 = vmatprep.subr.mxu0 0.0
        %1162 = vmatpush1.msra.mxu0 0.0
        %1163 = vmatprep.subr.mxu0 0.0
        %1164 = vmatpush1.msra.mxu0 0.0
        %1165 = vmatprep.subr.mxu0 0.0
        %1166 = vmatpush1.msra.mxu0 0.0
        %1167 = vmatprep.subr.mxu0 0.0
        %1168 = vmatpush1.msra.mxu0 0.0
        %1169 = vmatprep.subr.mxu0 0.0
        %1170 = vmatpush1.msra.mxu0 0.0
        %1171 = vmatprep.subr.mxu0 0.0
        %1172 = vmatpush1.msra.mxu0 0.0
        %1173 = vmatprep.subr.mxu0 0.0
        %1174 = vmatpush1.msra.mxu0 0.0
        %1175 = vmatprep.subr.mxu0 0.0
        %1176 = vmatpush1.msra.mxu0 0.0
        %1177 = vmatprep.subr.mxu0 0.0
        %1178 = vmatpush1.msra.mxu0 0.0
        %1179 = vmatprep.subr.mxu0 0.0
        %1180 = vmatpush1.msra.mxu0 0.0
        %1181 = vmatprep.subr.mxu0 0.0
        %1182 = vmatpush1.msra.mxu0 0.0
        %1183 = vmatprep.subr.mxu0 0.0
        %1184 = vmatpush1.msra.mxu0 0.0
        %1185 = vmatprep.subr.mxu0 0.0
        %1186 = vmatpush1.msra.mxu0 0.0
        %1187 = vmatprep.subr.mxu0 0.0
        %1188 = vmatpush1.msra.mxu0 0.0
        %1189 = vmatprep.subr.mxu0 0.0
        %1190 = vmatpush1.msra.mxu0 0.0
        %1191 = vmatprep.subr.mxu0 0.0
        %1192 = vmatpush1.msra.mxu0 0.0
        %1193 = vmatprep.subr.mxu0 0.0
        %1194 = vmatpush1.msra.mxu0 0.0
        %1195 = vmatprep.subr.mxu0 0.0
        %1196 = vmatpush1.msra.mxu0 0.0
        %1197 = vmatprep.subr.mxu0 0.0
        %1198 = vmatpush1.msra.mxu0 0.0
        %1199 = vmatprep.subr.mxu0 0.0
        %1200 = vmatpush1.msra.mxu0 0.0
        %1201 = vmatprep.subr.mxu0 0.0
        %1202 = vmatpush1.msra.mxu0 0.0
        %1203 = vmatprep.subr.mxu0 0.0
        %1204 = vmatpush1.msra.mxu0 0.0
        %1205 = vmatprep.subr.mxu0 0.0
        %1206 = vmatpush1.msra.mxu0 0.0
        %1207 = vmatprep.subr.mxu0 0.0
        %1208 = vmatpush1.msra.mxu0 0.0
        %1209 = vmatprep.subr.mxu0 0.0
        %1210 = vmatpush1.msra.mxu0 0.0
        %1211 = vmatprep.mubr.f32.mxu0 0.0
        %1212 = vmatmul.mubr.f32.gmra.mrb[0].mxu0 %v1142
        %v1213 = vpop.f32.mrb[0].mxu0
        %v1214 = vadd.f32 0.0, %v1213
        %v1215 = vpop.f32.mrb[0].mxu0
        %v1216 = vadd.f32 0.0, %v1215
        %1217 = vmatprep.mubr.f32.mxu0 0.0
        %1218 = vmatmul.mubr.f32.gmra.mrb[0].mxu0 %v1145
        %v1219 = vpop.f32.mrb[0].mxu0
        %v1220 = vadd.f32 0.0, %v1219
        %v1221 = vpop.f32.mrb[0].mxu0
        %v1222 = vadd.f32 0.0, %v1221
        %1223 = vdwg.mxu0
        %s1224 = scalar_lea.vmem %s3, 16
        %v1225 = vld [vmem:[%s1224] sm:$0xff]
        %v1226 = vld [vmem:[%s1224 + $0x8] sm:$0xf]
        %v1228 = vsel %vm1140, %v1225, 0
        %v1231 = vsel %vm1140, %v1226, 0
        %1233 = vmatprep.subr.mxu0 %v1133
        %1234 = vmatpush1.msra.mxu0 %v1132
        %1235 = vmatprep.subr.mxu0 %v1135
        %1236 = vmatpush1.msra.mxu0 %v1134
        %1237 = vmatprep.subr.mxu0 %v1137
        %1238 = vmatpush1.msra.mxu0 %v1136
        %1239 = vmatprep.subr.mxu0 0.0
        %1240 = vmatpush1.msra.mxu0 0.0
        %1241 = vmatprep.subr.mxu0 0.0
        %1242 = vmatpush1.msra.mxu0 0.0
        %1243 = vmatprep.subr.mxu0 0.0
        %1244 = vmatpush1.msra.mxu0 0.0
        %1245 = vmatprep.subr.mxu0 0.0
        %1246 = vmatpush1.msra.mxu0 0.0
        %1247 = vmatprep.subr.mxu0 0.0
        %1248 = vmatpush1.msra.mxu0 0.0
        %1249 = vmatprep.subr.mxu0 0.0
        %1250 = vmatpush1.msra.mxu0 0.0
        %1251 = vmatprep.subr.mxu0 0.0
        %1252 = vmatpush1.msra.mxu0 0.0
        %1253 = vmatprep.subr.mxu0 0.0
        %1254 = vmatpush1.msra.mxu0 0.0
        %1255 = vmatprep.subr.mxu0 0.0
        %1256 = vmatpush1.msra.mxu0 0.0
        %1257 = vmatprep.subr.mxu0 0.0
        %1258 = vmatpush1.msra.mxu0 0.0
        %1259 = vmatprep.subr.mxu0 0.0
        %1260 = vmatpush1.msra.mxu0 0.0
        %1261 = vmatprep.subr.mxu0 0.0
        %1262 = vmatpush1.msra.mxu0 0.0
        %1263 = vmatprep.subr.mxu0 0.0
        %1264 = vmatpush1.msra.mxu0 0.0
        %1265 = vmatprep.subr.mxu0 0.0
        %1266 = vmatpush1.msra.mxu0 0.0
        %1267 = vmatprep.subr.mxu0 0.0
        %1268 = vmatpush1.msra.mxu0 0.0
        %1269 = vmatprep.subr.mxu0 0.0
        %1270 = vmatpush1.msra.mxu0 0.0
        %1271 = vmatprep.subr.mxu0 0.0
        %1272 = vmatpush1.msra.mxu0 0.0
        %1273 = vmatprep.subr.mxu0 0.0
        %1274 = vmatpush1.msra.mxu0 0.0
        %1275 = vmatprep.subr.mxu0 0.0
        %1276 = vmatpush1.msra.mxu0 0.0
        %1277 = vmatprep.subr.mxu0 0.0
        %1278 = vmatpush1.msra.mxu0 0.0
        %1279 = vmatprep.subr.mxu0 0.0
        %1280 = vmatpush1.msra.mxu0 0.0
        %1281 = vmatprep.subr.mxu0 0.0
        %1282 = vmatpush1.msra.mxu0 0.0
        %1283 = vmatprep.subr.mxu0 0.0
        %1284 = vmatpush1.msra.mxu0 0.0
        %1285 = vmatprep.subr.mxu0 0.0
        %1286 = vmatpush1.msra.mxu0 0.0
        %1287 = vmatprep.subr.mxu0 0.0
        %1288 = vmatpush1.msra.mxu0 0.0
        %1289 = vmatprep.subr.mxu0 0.0
        %1290 = vmatpush1.msra.mxu0 0.0
        %1291 = vmatprep.subr.mxu0 0.0
        %1292 = vmatpush1.msra.mxu0 0.0
        %1293 = vmatprep.subr.mxu0 0.0
        %1294 = vmatpush1.msra.mxu0 0.0
        %1295 = vmatprep.subr.mxu0 0.0
        %1296 = vmatpush1.msra.mxu0 0.0
        %1297 = vmatprep.mubr.f32.mxu0 0.0
        %1298 = vmatmul.mubr.f32.gmra.mrb[0].mxu0 %v1228
        %v1299 = vpop.f32.mrb[0].mxu0
        %v1300 = vadd.f32 0.0, %v1299
        %v1301 = vpop.f32.mrb[0].mxu0
        %v1302 = vadd.f32 0.0, %v1301
        %1303 = vmatprep.mubr.f32.mxu0 0.0
        %1304 = vmatmul.mubr.f32.gmra.mrb[0].mxu0 %v1231
        %v1305 = vpop.f32.mrb[0].mxu0
        %v1306 = vadd.f32 0.0, %v1305
        %v1307 = vpop.f32.mrb[0].mxu0
        %v1308 = vadd.f32 0.0, %v1307
        %1309 = vdwg.mxu0
        %v1310 = vmax.f32 %v1214, %v1300
        %v1311 = vmax.f32 %v1216, %v1302
        %v1312 = vmax.f32 %v1220, %v1306
        %v1313 = vmax.f32 %v1222, %v1308
        %v1314 = vld [vmem:[#allocation2] sm:$0xff]
        %v1315 = vld [vmem:[#allocation2 + $0x8] sm:$0xff]
        %v1316 = vld [vmem:[#allocation2 + $0x10] sm:$0xff]
        %v1317 = vld [vmem:[#allocation2 + $0x18] sm:$0xff]
        %v1318 = vld [vmem:[#allocation2 + $0x20] sm:$0xff]
        %v1319 = vld [vmem:[#allocation2 + $0x28] sm:$0xff]
        %v1320 = vld [vmem:[#allocation2 + $0x30] sm:$0xff]
        %v1321 = vld [vmem:[#allocation2 + $0x38] sm:$0xff]
        %v1322 = vld [vmem:[#allocation2 + $0x40] sm:$0xff]
        %v1323 = vld [vmem:[#allocation2 + $0x48] sm:$0xff]
        %v1324 = vld [vmem:[#allocation2 + $0x50] sm:$0xff]
        %v1325 = vld [vmem:[#allocation2 + $0x58] sm:$0xff]
        %v1326 = vld [vmem:[#allocation2 + $0x60] sm:$0xff]
        %v1327 = vld [vmem:[#allocation2 + $0x68] sm:$0xff]
        %v1328 = vld [vmem:[#allocation2 + $0x70] sm:$0xff]
        %v1329 = vld [vmem:[#allocation2 + $0x78] sm:$0xff]
        %v1330 = vld [vmem:[#allocation2 + $0x80] sm:$0xff]
        %v1331 = vld [vmem:[#allocation2 + $0x88] sm:$0xff]
        %vm1332 = vcmask 130048
        %v1334 = vsel %vm1332, %v1311, 0
        %v1337 = vsel %vm1332, %v1313, 0
        %1339 = vmatprep.subr.mxu0 0.0
        %1340 = vmatpush1.msra.mxu0 %v1314
        %1341 = vmatprep.subr.mxu0 0.0
        %1342 = vmatpush1.msra.mxu0 %v1315
        %1343 = vmatprep.subr.mxu0 0.0
        %1344 = vmatpush1.msra.mxu0 %v1316
        %1345 = vmatprep.subr.mxu0 0.0
        %1346 = vmatpush1.msra.mxu0 %v1317
        %1347 = vmatprep.subr.mxu0 0.0
        %1348 = vmatpush1.msra.mxu0 %v1318
        %1349 = vmatprep.subr.mxu0 0.0
        %1350 = vmatpush1.msra.mxu0 %v1319
        %1351 = vmatprep.subr.mxu0 0.0
        %1352 = vmatpush1.msra.mxu0 %v1320
        %1353 = vmatprep.subr.mxu0 0.0
        %1354 = vmatpush1.msra.mxu0 %v1321
        %1355 = vmatprep.subr.mxu0 0.0
        %1356 = vmatpush1.msra.mxu0 %v1322
        %1357 = vmatprep.subr.mxu0 0.0
        %1358 = vmatpush1.msra.mxu0 %v1323
        %1359 = vmatprep.subr.mxu0 0.0
        %1360 = vmatpush1.msra.mxu0 %v1324
        %1361 = vmatprep.subr.mxu0 0.0
        %1362 = vmatpush1.msra.mxu0 %v1325
        %1363 = vmatprep.subr.mxu0 0.0
        %1364 = vmatpush1.msra.mxu0 %v1326
        %1365 = vmatprep.subr.mxu0 0.0
        %1366 = vmatpush1.msra.mxu0 %v1327
        %1367 = vmatprep.subr.mxu0 0.0
        %1368 = vmatpush1.msra.mxu0 %v1328
        %1369 = vmatprep.subr.mxu0 0.0
        %1370 = vmatpush1.msra.mxu0 %v1329
        %1371 = vmatprep.subr.mxu0 0.0
        %1372 = vmatpush1.msra.mxu0 %v1330
        %1373 = vmatprep.subr.mxu0 0.0
        %1374 = vmatpush1.msra.mxu0 %v1331
        %1375 = vmatprep.subr.mxu0 0.0
        %1376 = vmatpush1.msra.mxu0 0.0
        %1377 = vmatprep.subr.mxu0 0.0
        %1378 = vmatpush1.msra.mxu0 0.0
        %1379 = vmatprep.subr.mxu0 0.0
        %1380 = vmatpush1.msra.mxu0 0.0
        %1381 = vmatprep.subr.mxu0 0.0
        %1382 = vmatpush1.msra.mxu0 0.0
        %1383 = vmatprep.subr.mxu0 0.0
        %1384 = vmatpush1.msra.mxu0 0.0
        %1385 = vmatprep.subr.mxu0 0.0
        %1386 = vmatpush1.msra.mxu0 0.0
        %1387 = vmatprep.subr.mxu0 0.0
        %1388 = vmatpush1.msra.mxu0 0.0
        %1389 = vmatprep.subr.mxu0 0.0
        %1390 = vmatpush1.msra.mxu0 0.0
        %1391 = vmatprep.subr.mxu0 0.0
        %1392 = vmatpush1.msra.mxu0 0.0
        %1393 = vmatprep.subr.mxu0 0.0
        %1394 = vmatpush1.msra.mxu0 0.0
        %1395 = vmatprep.subr.mxu0 0.0
        %1396 = vmatpush1.msra.mxu0 0.0
        %1397 = vmatprep.subr.mxu0 0.0
        %1398 = vmatpush1.msra.mxu0 0.0
        %1399 = vmatprep.subr.mxu0 0.0
        %1400 = vmatpush1.msra.mxu0 0.0
        %1401 = vmatprep.subr.mxu0 0.0
        %1402 = vmatpush1.msra.mxu0 0.0
        %1403 = vmatprep.mubr.f32.mxu0 %v1334
        %1404 = vmatmul.mubr.f32.gmra.mrb[0].mxu0 %v1310
        %v1405 = vpop.f32.mrb[0].mxu0
        %v1406 = vadd.f32 0.0, %v1405
        %v1407 = vpop.f32.mrb[0].mxu0
        %1408 = vmatprep.mubr.f32.mxu0 %v1337
        %1409 = vmatmul.mubr.f32.gmra.mrb[0].mxu0 %v1312
        %v1410 = vpop.f32.mrb[0].mxu0
        %v1411 = vadd.f32 0.0, %v1410
        %v1412 = vpop.f32.mrb[0].mxu0
        %1413 = vdwg.mxu0
        %s1414 = scalar_lea.vmem [#allocation2], 144
        %v1415 = vld [vmem:[%s1414] sm:$0xff]
        %v1416 = vld [vmem:[%s1414 + $0x8] sm:$0xff]
        %v1417 = vld [vmem:[%s1414 + $0x10] sm:$0xff]
        %v1418 = vld [vmem:[%s1414 + $0x18] sm:$0xff]
        %v1419 = vld [vmem:[%s1414 + $0x20] sm:$0xff]
        %v1420 = vld [vmem:[%s1414 + $0x28] sm:$0xff]
        %v1421 = vld [vmem:[%s1414 + $0x30] sm:$0xff]
        %v1422 = vld [vmem:[%s1414 + $0x38] sm:$0xff]
        %v1423 = vld [vmem:[%s1414 + $0x40] sm:$0xff]
        %v1424 = vld [vmem:[%s1414 + $0x48] sm:$0xff]
        %v1425 = vld [vmem:[%s1414 + $0x50] sm:$0xff]
        %v1426 = vld [vmem:[%s1414 + $0x58] sm:$0xff]
        %v1427 = vld [vmem:[%s1414 + $0x60] sm:$0xff]
        %v1428 = vld [vmem:[%s1414 + $0x68] sm:$0xff]
        %v1429 = vld [vmem:[%s1414 + $0x70] sm:$0xff]
        %v1430 = vld [vmem:[%s1414 + $0x78] sm:$0xff]
        %v1431 = vld [vmem:[%s1414 + $0x80] sm:$0xff]
        %v1432 = vld [vmem:[%s1414 + $0x88] sm:$0xff]
        %1433 = vmatprep.subr.mxu0 0.0
        %1434 = vmatpush1.msra.mxu0 %v1415
        %1435 = vmatprep.subr.mxu0 0.0
        %1436 = vmatpush1.msra.mxu0 %v1416
        %1437 = vmatprep.subr.mxu0 0.0
        %1438 = vmatpush1.msra.mxu0 %v1417
        %1439 = vmatprep.subr.mxu0 0.0
        %1440 = vmatpush1.msra.mxu0 %v1418
        %1441 = vmatprep.subr.mxu0 0.0
        %1442 = vmatpush1.msra.mxu0 %v1419
        %1443 = vmatprep.subr.mxu0 0.0
        %1444 = vmatpush1.msra.mxu0 %v1420
        %1445 = vmatprep.subr.mxu0 0.0
        %1446 = vmatpush1.msra.mxu0 %v1421
        %1447 = vmatprep.subr.mxu0 0.0
        %1448 = vmatpush1.msra.mxu0 %v1422
        %1449 = vmatprep.subr.mxu0 0.0
        %1450 = vmatpush1.msra.mxu0 %v1423
        %1451 = vmatprep.subr.mxu0 0.0
        %1452 = vmatpush1.msra.mxu0 %v1424
        %1453 = vmatprep.subr.mxu0 0.0
        %1454 = vmatpush1.msra.mxu0 %v1425
        %1455 = vmatprep.subr.mxu0 0.0
        %1456 = vmatpush1.msra.mxu0 %v1426
        %1457 = vmatprep.subr.mxu0 0.0
        %1458 = vmatpush1.msra.mxu0 %v1427
        %1459 = vmatprep.subr.mxu0 0.0
        %1460 = vmatpush1.msra.mxu0 %v1428
        %1461 = vmatprep.subr.mxu0 0.0
        %1462 = vmatpush1.msra.mxu0 %v1429
        %1463 = vmatprep.subr.mxu0 0.0
        %1464 = vmatpush1.msra.mxu0 %v1430
        %1465 = vmatprep.subr.mxu0 0.0
        %1466 = vmatpush1.msra.mxu0 %v1431
        %1467 = vmatprep.subr.mxu0 0.0
        %1468 = vmatpush1.msra.mxu0 %v1432
        %1469 = vmatprep.subr.mxu0 0.0
        %1470 = vmatpush1.msra.mxu0 0.0
        %1471 = vmatprep.subr.mxu0 0.0
        %1472 = vmatpush1.msra.mxu0 0.0
        %1473 = vmatprep.subr.mxu0 0.0
        %1474 = vmatpush1.msra.mxu0 0.0
        %1475 = vmatprep.subr.mxu0 0.0
        %1476 = vmatpush1.msra.mxu0 0.0
        %1477 = vmatprep.subr.mxu0 0.0
        %1478 = vmatpush1.msra.mxu0 0.0
        %1479 = vmatprep.subr.mxu0 0.0
        %1480 = vmatpush1.msra.mxu0 0.0
        %1481 = vmatprep.subr.mxu0 0.0
        %1482 = vmatpush1.msra.mxu0 0.0
        %1483 = vmatprep.subr.mxu0 0.0
        %1484 = vmatpush1.msra.mxu0 0.0
        %1485 = vmatprep.subr.mxu0 0.0
        %1486 = vmatpush1.msra.mxu0 0.0
        %1487 = vmatprep.subr.mxu0 0.0
        %1488 = vmatpush1.msra.mxu0 0.0
        %1489 = vmatprep.subr.mxu0 0.0
        %1490 = vmatpush1.msra.mxu0 0.0
        %1491 = vmatprep.subr.mxu0 0.0
        %1492 = vmatpush1.msra.mxu0 0.0
        %1493 = vmatprep.subr.mxu0 0.0
        %1494 = vmatpush1.msra.mxu0 0.0
        %1495 = vmatprep.subr.mxu0 0.0
        %1496 = vmatpush1.msra.mxu0 0.0
        %1497 = vmatprep.mubr.f32.mxu0 %v1334
        %1498 = vmatmul.mubr.f32.gmra.mrb[0].mxu0 %v1310
        %v1499 = vpop.f32.mrb[0].mxu0
        %v1500 = vadd.f32 0.0, %v1499
        %v1501 = vpop.f32.mrb[0].mxu0
        %1502 = vmatprep.mubr.f32.mxu0 %v1337
        %1503 = vmatmul.mubr.f32.gmra.mrb[0].mxu0 %v1312
        %v1504 = vpop.f32.mrb[0].mxu0
        %v1505 = vadd.f32 0.0, %v1504
        %v1506 = vpop.f32.mrb[0].mxu0
        %1507 = vdwg.mxu0
        %v1508 = vmax.f32 %v1406, %v1500
        %v1509 = vmax.f32 %v1411, %v1505
        %v1510 = vld [vmem:[%s5] sm:$0xff]
        %v1511 = vld [vmem:[%s5 + $0x8] sm:$0xff]
        %v1512 = vld [vmem:[%s5 + $0x10] sm:$0xff]
        %v1513 = vld [vmem:[%s5 + $0x18] sm:$0xff]
        %v1514 = vld [vmem:[%s5 + $0x20] sm:$0xff]
        %v1515 = vld [vmem:[%s5 + $0x28] sm:$0xff]
        %v1516 = vld [vmem:[%s5 + $0x30] sm:$0xff]
        %v1517 = vld [vmem:[%s5 + $0x38] sm:$0xff]
        %v1518 = vld [vmem:[%s5 + $0x40] sm:$0xff]
        %s1519 = scalar_lea.vmem %s5, 72
        %v1520 = vld [vmem:[%s1519] sm:$0xff]
        %v1521 = vld [vmem:[%s1519 + $0x8] sm:$0xff]
        %v1522 = vld [vmem:[%s1519 + $0x10] sm:$0xff]
        %v1523 = vld [vmem:[%s1519 + $0x18] sm:$0xff]
        %v1524 = vld [vmem:[%s1519 + $0x20] sm:$0xff]
        %v1525 = vld [vmem:[%s1519 + $0x28] sm:$0xff]
        %v1526 = vld [vmem:[%s1519 + $0x30] sm:$0xff]
        %v1527 = vld [vmem:[%s1519 + $0x38] sm:$0xff]
        %v1528 = vld [vmem:[%s1519 + $0x40] sm:$0xff]
        %v1531 = vrot.slane %v1508, 1
        %v1532 = vrot.slane %v1509, 1
        %v1533 = vsel %vm561, %v1531, %v1532
        %vm1534 = vcmask 588800
        %v1535 = vsel %vm1534, %v1533, 0
        %1537 = vmatprep.subr.mxu0 0.0
        %1538 = vmatpush1.msra.mxu0 %v1520
        %1539 = vmatprep.subr.mxu0 0.0
        %1540 = vmatpush1.msra.mxu0 %v1521
        %1541 = vmatprep.subr.mxu0 0.0
        %1542 = vmatpush1.msra.mxu0 %v1522
        %1543 = vmatprep.subr.mxu0 0.0
        %1544 = vmatpush1.msra.mxu0 %v1523
        %1545 = vmatprep.subr.mxu0 0.0
        %1546 = vmatpush1.msra.mxu0 %v1524
        %1547 = vmatprep.subr.mxu0 0.0
        %1548 = vmatpush1.msra.mxu0 %v1525
        %1549 = vmatprep.subr.mxu0 0.0
        %1550 = vmatpush1.msra.mxu0 %v1526
        %1551 = vmatprep.subr.mxu0 0.0
        %1552 = vmatpush1.msra.mxu0 %v1527
        %1553 = vmatprep.subr.mxu0 0.0
        %1554 = vmatpush1.msra.mxu0 %v1528
        %1555 = vmatprep.subr.mxu0 0.0
        %1556 = vmatpush1.msra.mxu0 0.0
        %1557 = vmatprep.subr.mxu0 0.0
        %1558 = vmatpush1.msra.mxu0 0.0
        %1559 = vmatprep.subr.mxu0 0.0
        %1560 = vmatpush1.msra.mxu0 0.0
        %1561 = vmatprep.subr.mxu0 0.0
        %1562 = vmatpush1.msra.mxu0 0.0
        %1563 = vmatprep.subr.mxu0 0.0
        %1564 = vmatpush1.msra.mxu0 0.0
        %1565 = vmatprep.subr.mxu0 0.0
        %1566 = vmatpush1.msra.mxu0 0.0
        %1567 = vmatprep.subr.mxu0 0.0
        %1568 = vmatpush1.msra.mxu0 0.0
        %1569 = vmatprep.subr.mxu0 0.0
        %1570 = vmatpush1.msra.mxu0 0.0
        %1571 = vmatprep.subr.mxu0 0.0
        %1572 = vmatpush1.msra.mxu0 0.0
        %1573 = vmatprep.subr.mxu0 0.0
        %1574 = vmatpush1.msra.mxu0 0.0
        %1575 = vmatprep.subr.mxu0 0.0
        %1576 = vmatpush1.msra.mxu0 0.0
        %1577 = vmatprep.subr.mxu0 0.0
        %1578 = vmatpush1.msra.mxu0 0.0
        %1579 = vmatprep.subr.mxu0 0.0
        %1580 = vmatpush1.msra.mxu0 0.0
        %1581 = vmatprep.subr.mxu0 0.0
        %1582 = vmatpush1.msra.mxu0 0.0
        %1583 = vmatprep.subr.mxu0 0.0
        %1584 = vmatpush1.msra.mxu0 0.0
        %1585 = vmatprep.subr.mxu0 0.0
        %1586 = vmatpush1.msra.mxu0 0.0
        %1587 = vmatprep.subr.mxu0 0.0
        %1588 = vmatpush1.msra.mxu0 0.0
        %1589 = vmatprep.subr.mxu0 0.0
        %1590 = vmatpush1.msra.mxu0 0.0
        %1591 = vmatprep.subr.mxu0 0.0
        %1592 = vmatpush1.msra.mxu0 0.0
        %1593 = vmatprep.subr.mxu0 0.0
        %1594 = vmatpush1.msra.mxu0 0.0
        %1595 = vmatprep.subr.mxu0 0.0
        %1596 = vmatpush1.msra.mxu0 0.0
        %1597 = vmatprep.subr.mxu0 0.0
        %1598 = vmatpush1.msra.mxu0 0.0
        %1599 = vmatprep.subr.mxu0 0.0
        %1600 = vmatpush1.msra.mxu0 0.0
        %1601 = vmatprep.mubr.f32.mxu0 0.0
        %1602 = vmatmul.mubr.f32.gmra.mrb[0].mxu0 %v1535
        %v1603 = vpop.f32.mrb[0].mxu0
        %v1604 = vadd.f32 0.0, %v1603
        %v1605 = vpop.f32.mrb[0].mxu0
        %1606 = vdwg.mxu0
        %v1607 = vsel %vm1534, %v1508, 0
        %1609 = vmatprep.subr.mxu0 0.0
        %1610 = vmatpush1.msra.mxu0 %v1510
        %1611 = vmatprep.subr.mxu0 0.0
        %1612 = vmatpush1.msra.mxu0 %v1511
        %1613 = vmatprep.subr.mxu0 0.0
        %1614 = vmatpush1.msra.mxu0 %v1512
        %1615 = vmatprep.subr.mxu0 0.0
        %1616 = vmatpush1.msra.mxu0 %v1513
        %1617 = vmatprep.subr.mxu0 0.0
        %1618 = vmatpush1.msra.mxu0 %v1514
        %1619 = vmatprep.subr.mxu0 0.0
        %1620 = vmatpush1.msra.mxu0 %v1515
        %1621 = vmatprep.subr.mxu0 0.0
        %1622 = vmatpush1.msra.mxu0 %v1516
        %1623 = vmatprep.subr.mxu0 0.0
        %1624 = vmatpush1.msra.mxu0 %v1517
        %1625 = vmatprep.subr.mxu0 0.0
        %1626 = vmatpush1.msra.mxu0 %v1518
        %1627 = vmatprep.subr.mxu0 0.0
        %1628 = vmatpush1.msra.mxu0 0.0
        %1629 = vmatprep.subr.mxu0 0.0
        %1630 = vmatpush1.msra.mxu0 0.0
        %1631 = vmatprep.subr.mxu0 0.0
        %1632 = vmatpush1.msra.mxu0 0.0
        %1633 = vmatprep.subr.mxu0 0.0
        %1634 = vmatpush1.msra.mxu0 0.0
        %1635 = vmatprep.subr.mxu0 0.0
        %1636 = vmatpush1.msra.mxu0 0.0
        %1637 = vmatprep.subr.mxu0 0.0
        %1638 = vmatpush1.msra.mxu0 0.0
        %1639 = vmatprep.subr.mxu0 0.0
        %1640 = vmatpush1.msra.mxu0 0.0
        %1641 = vmatprep.subr.mxu0 0.0
        %1642 = vmatpush1.msra.mxu0 0.0
        %1643 = vmatprep.subr.mxu0 0.0
        %1644 = vmatpush1.msra.mxu0 0.0
        %1645 = vmatprep.subr.mxu0 0.0
        %1646 = vmatpush1.msra.mxu0 0.0
        %1647 = vmatprep.subr.mxu0 0.0
        %1648 = vmatpush1.msra.mxu0 0.0
        %1649 = vmatprep.subr.mxu0 0.0
        %1650 = vmatpush1.msra.mxu0 0.0
        %1651 = vmatprep.subr.mxu0 0.0
        %1652 = vmatpush1.msra.mxu0 0.0
        %1653 = vmatprep.subr.mxu0 0.0
        %1654 = vmatpush1.msra.mxu0 0.0
        %1655 = vmatprep.subr.mxu0 0.0
        %1656 = vmatpush1.msra.mxu0 0.0
        %1657 = vmatprep.subr.mxu0 0.0
        %1658 = vmatpush1.msra.mxu0 0.0
        %1659 = vmatprep.subr.mxu0 0.0
        %1660 = vmatpush1.msra.mxu0 0.0
        %1661 = vmatprep.subr.mxu0 0.0
        %1662 = vmatpush1.msra.mxu0 0.0
        %1663 = vmatprep.subr.mxu0 0.0
        %1664 = vmatpush1.msra.mxu0 0.0
        %1665 = vmatprep.subr.mxu0 0.0
        %1666 = vmatpush1.msra.mxu0 0.0
        %1667 = vmatprep.subr.mxu0 0.0
        %1668 = vmatpush1.msra.mxu0 0.0
        %1669 = vmatprep.subr.mxu0 0.0
        %1670 = vmatpush1.msra.mxu0 0.0
        %1671 = vmatprep.subr.mxu0 0.0
        %1672 = vmatpush1.msra.mxu0 0.0
        %1673 = vmatprep.mubr.f32.mxu0 0.0
        %1674 = vmatmul.mubr.f32.gmra.mrb[0].mxu0 %v1607
        %v1675 = vpop.f32.mrb[0].mxu0
        %v1676 = vadd.f32 %v1604, %v1675
        %v1677 = vpop.f32.mrb[0].mxu0
        %1678 = vdwg.mxu0
        %s1679 = scalar_lea.vmem %s5, 144
        %v1680 = vld [vmem:[%s1679] sm:$0xff]
        %v1681 = vld [vmem:[%s1679 + $0x8] sm:$0xff]
        %v1682 = vld [vmem:[%s1679 + $0x10] sm:$0xff]
        %v1683 = vld [vmem:[%s1679 + $0x18] sm:$0xff]
        %v1684 = vld [vmem:[%s1679 + $0x20] sm:$0xff]
        %v1685 = vld [vmem:[%s1679 + $0x28] sm:$0xff]
        %v1686 = vld [vmem:[%s1679 + $0x30] sm:$0xff]
        %v1687 = vld [vmem:[%s1679 + $0x38] sm:$0xff]
        %v1688 = vld [vmem:[%s1679 + $0x40] sm:$0xff]
        %v1689 = vrot.slane %v1508, 2
        %v1690 = vrot.slane %v1509, 2
        %v1691 = vsel %vm770, %v1689, %v1690
        %v1692 = vsel %vm1534, %v1691, 0
        %1694 = vmatprep.subr.mxu0 0.0
        %1695 = vmatpush1.msra.mxu0 %v1680
        %1696 = vmatprep.subr.mxu0 0.0
        %1697 = vmatpush1.msra.mxu0 %v1681
        %1698 = vmatprep.subr.mxu0 0.0
        %1699 = vmatpush1.msra.mxu0 %v1682
        %1700 = vmatprep.subr.mxu0 0.0
        %1701 = vmatpush1.msra.mxu0 %v1683
        %1702 = vmatprep.subr.mxu0 0.0
        %1703 = vmatpush1.msra.mxu0 %v1684
        %1704 = vmatprep.subr.mxu0 0.0
        %1705 = vmatpush1.msra.mxu0 %v1685
        %1706 = vmatprep.subr.mxu0 0.0
        %1707 = vmatpush1.msra.mxu0 %v1686
        %1708 = vmatprep.subr.mxu0 0.0
        %1709 = vmatpush1.msra.mxu0 %v1687
        %1710 = vmatprep.subr.mxu0 0.0
        %1711 = vmatpush1.msra.mxu0 %v1688
        %1712 = vmatprep.subr.mxu0 0.0
        %1713 = vmatpush1.msra.mxu0 0.0
        %1714 = vmatprep.subr.mxu0 0.0
        %1715 = vmatpush1.msra.mxu0 0.0
        %1716 = vmatprep.subr.mxu0 0.0
        %1717 = vmatpush1.msra.mxu0 0.0
        %1718 = vmatprep.subr.mxu0 0.0
        %1719 = vmatpush1.msra.mxu0 0.0
        %1720 = vmatprep.subr.mxu0 0.0
        %1721 = vmatpush1.msra.mxu0 0.0
        %1722 = vmatprep.subr.mxu0 0.0
        %1723 = vmatpush1.msra.mxu0 0.0
        %1724 = vmatprep.subr.mxu0 0.0
        %1725 = vmatpush1.msra.mxu0 0.0
        %1726 = vmatprep.subr.mxu0 0.0
        %1727 = vmatpush1.msra.mxu0 0.0
        %1728 = vmatprep.subr.mxu0 0.0
        %1729 = vmatpush1.msra.mxu0 0.0
        %1730 = vmatprep.subr.mxu0 0.0
        %1731 = vmatpush1.msra.mxu0 0.0
        %1732 = vmatprep.subr.mxu0 0.0
        %1733 = vmatpush1.msra.mxu0 0.0
        %1734 = vmatprep.subr.mxu0 0.0
        %1735 = vmatpush1.msra.mxu0 0.0
        %1736 = vmatprep.subr.mxu0 0.0
        %1737 = vmatpush1.msra.mxu0 0.0
        %1738 = vmatprep.subr.mxu0 0.0
        %1739 = vmatpush1.msra.mxu0 0.0
        %1740 = vmatprep.subr.mxu0 0.0
        %1741 = vmatpush1.msra.mxu0 0.0
        %1742 = vmatprep.subr.mxu0 0.0
        %1743 = vmatpush1.msra.mxu0 0.0
        %1744 = vmatprep.subr.mxu0 0.0
        %1745 = vmatpush1.msra.mxu0 0.0
        %1746 = vmatprep.subr.mxu0 0.0
        %1747 = vmatpush1.msra.mxu0 0.0
        %1748 = vmatprep.subr.mxu0 0.0
        %1749 = vmatpush1.msra.mxu0 0.0
        %1750 = vmatprep.subr.mxu0 0.0
        %1751 = vmatpush1.msra.mxu0 0.0
        %1752 = vmatprep.subr.mxu0 0.0
        %1753 = vmatpush1.msra.mxu0 0.0
        %1754 = vmatprep.subr.mxu0 0.0
        %1755 = vmatpush1.msra.mxu0 0.0
        %1756 = vmatprep.subr.mxu0 0.0
        %1757 = vmatpush1.msra.mxu0 0.0
        %1758 = vmatprep.mubr.f32.mxu0 0.0
        %1759 = vmatmul.mubr.f32.gmra.mrb[0].mxu0 %v1692
        %v1760 = vpop.f32.mrb[0].mxu0
        %v1761 = vadd.f32 0.0, %v1760
        %v1762 = vpop.f32.mrb[0].mxu0
        %1763 = vdwg.mxu0
        %v1764 = vadd.f32 %v1676, %v1761
        %s1765 = scalar_lea.vmem %s5, 216
        %v1766 = vld [vmem:[%s1765] sm:$0xff]
        %v1767 = vld [vmem:[%s1765 + $0x8] sm:$0xff]
        %v1768 = vld [vmem:[%s1765 + $0x10] sm:$0xff]
        %v1769 = vld [vmem:[%s1765 + $0x18] sm:$0xff]
        %v1770 = vld [vmem:[%s1765 + $0x20] sm:$0xff]
        %v1771 = vld [vmem:[%s1765 + $0x28] sm:$0xff]
        %v1772 = vld [vmem:[%s1765 + $0x30] sm:$0xff]
        %v1773 = vld [vmem:[%s1765 + $0x38] sm:$0xff]
        %v1774 = vld [vmem:[%s1765 + $0x40] sm:$0xff]
        %v1775 = vrot.slane %v1508, 3
        %v1776 = vrot.slane %v1509, 3
        %v1777 = vsel %vm888, %v1775, %v1776
        %v1778 = vsel %vm1534, %v1777, 0
        %1780 = vmatprep.subr.mxu0 0.0
        %1781 = vmatpush1.msra.mxu0 %v1766
        %1782 = vmatprep.subr.mxu0 0.0
        %1783 = vmatpush1.msra.mxu0 %v1767
        %1784 = vmatprep.subr.mxu0 0.0
        %1785 = vmatpush1.msra.mxu0 %v1768
        %1786 = vmatprep.subr.mxu0 0.0
        %1787 = vmatpush1.msra.mxu0 %v1769
        %1788 = vmatprep.subr.mxu0 0.0
        %1789 = vmatpush1.msra.mxu0 %v1770
        %1790 = vmatprep.subr.mxu0 0.0
        %1791 = vmatpush1.msra.mxu0 %v1771
        %1792 = vmatprep.subr.mxu0 0.0
        %1793 = vmatpush1.msra.mxu0 %v1772
        %1794 = vmatprep.subr.mxu0 0.0
        %1795 = vmatpush1.msra.mxu0 %v1773
        %1796 = vmatprep.subr.mxu0 0.0
        %1797 = vmatpush1.msra.mxu0 %v1774
        %1798 = vmatprep.subr.mxu0 0.0
        %1799 = vmatpush1.msra.mxu0 0.0
        %1800 = vmatprep.subr.mxu0 0.0
        %1801 = vmatpush1.msra.mxu0 0.0
        %1802 = vmatprep.subr.mxu0 0.0
        %1803 = vmatpush1.msra.mxu0 0.0
        %1804 = vmatprep.subr.mxu0 0.0
        %1805 = vmatpush1.msra.mxu0 0.0
        %1806 = vmatprep.subr.mxu0 0.0
        %1807 = vmatpush1.msra.mxu0 0.0
        %1808 = vmatprep.subr.mxu0 0.0
        %1809 = vmatpush1.msra.mxu0 0.0
        %1810 = vmatprep.subr.mxu0 0.0
        %1811 = vmatpush1.msra.mxu0 0.0
        %1812 = vmatprep.subr.mxu0 0.0
        %1813 = vmatpush1.msra.mxu0 0.0
        %1814 = vmatprep.subr.mxu0 0.0
        %1815 = vmatpush1.msra.mxu0 0.0
        %1816 = vmatprep.subr.mxu0 0.0
        %1817 = vmatpush1.msra.mxu0 0.0
        %1818 = vmatprep.subr.mxu0 0.0
        %1819 = vmatpush1.msra.mxu0 0.0
        %1820 = vmatprep.subr.mxu0 0.0
        %1821 = vmatpush1.msra.mxu0 0.0
        %1822 = vmatprep.subr.mxu0 0.0
        %1823 = vmatpush1.msra.mxu0 0.0
        %1824 = vmatprep.subr.mxu0 0.0
        %1825 = vmatpush1.msra.mxu0 0.0
        %1826 = vmatprep.subr.mxu0 0.0
        %1827 = vmatpush1.msra.mxu0 0.0
        %1828 = vmatprep.subr.mxu0 0.0
        %1829 = vmatpush1.msra.mxu0 0.0
        %1830 = vmatprep.subr.mxu0 0.0
        %1831 = vmatpush1.msra.mxu0 0.0
        %1832 = vmatprep.subr.mxu0 0.0
        %1833 = vmatpush1.msra.mxu0 0.0
        %1834 = vmatprep.subr.mxu0 0.0
        %1835 = vmatpush1.msra.mxu0 0.0
        %1836 = vmatprep.subr.mxu0 0.0
        %1837 = vmatpush1.msra.mxu0 0.0
        %1838 = vmatprep.subr.mxu0 0.0
        %1839 = vmatpush1.msra.mxu0 0.0
        %1840 = vmatprep.subr.mxu0 0.0
        %1841 = vmatpush1.msra.mxu0 0.0
        %1842 = vmatprep.subr.mxu0 0.0
        %1843 = vmatpush1.msra.mxu0 0.0
        %1844 = vmatprep.mubr.f32.mxu0 0.0
        %1845 = vmatmul.mubr.f32.gmra.mrb[0].mxu0 %v1778
        %v1846 = vpop.f32.mrb[0].mxu0
        %v1847 = vadd.f32 0.0, %v1846
        %v1848 = vpop.f32.mrb[0].mxu0
        %1849 = vdwg.mxu0
        %v1850 = vadd.f32 %v1764, %v1847
        %s1851 = scalar_lea.vmem %s5, 288
        %v1852 = vld [vmem:[%s1851] sm:$0xff]
        %v1853 = vld [vmem:[%s1851 + $0x8] sm:$0xff]
        %v1854 = vld [vmem:[%s1851 + $0x10] sm:$0xff]
        %v1855 = vld [vmem:[%s1851 + $0x18] sm:$0xff]
        %v1856 = vld [vmem:[%s1851 + $0x20] sm:$0xff]
        %v1857 = vld [vmem:[%s1851 + $0x28] sm:$0xff]
        %v1858 = vld [vmem:[%s1851 + $0x30] sm:$0xff]
        %v1859 = vld [vmem:[%s1851 + $0x38] sm:$0xff]
        %v1860 = vld [vmem:[%s1851 + $0x40] sm:$0xff]
        %v1861 = vrot.slane %v1508, 4
        %v1862 = vrot.slane %v1509, 4
        %v1863 = vsel %vm576, %v1861, %v1862
        %v1864 = vsel %vm1534, %v1863, 0
        %1866 = vmatprep.subr.mxu0 0.0
        %1867 = vmatpush1.msra.mxu0 %v1852
        %1868 = vmatprep.subr.mxu0 0.0
        %1869 = vmatpush1.msra.mxu0 %v1853
        %1870 = vmatprep.subr.mxu0 0.0
        %1871 = vmatpush1.msra.mxu0 %v1854
        %1872 = vmatprep.subr.mxu0 0.0
        %1873 = vmatpush1.msra.mxu0 %v1855
        %1874 = vmatprep.subr.mxu0 0.0
        %1875 = vmatpush1.msra.mxu0 %v1856
        %1876 = vmatprep.subr.mxu0 0.0
        %1877 = vmatpush1.msra.mxu0 %v1857
        %1878 = vmatprep.subr.mxu0 0.0
        %1879 = vmatpush1.msra.mxu0 %v1858
        %1880 = vmatprep.subr.mxu0 0.0
        %1881 = vmatpush1.msra.mxu0 %v1859
        %1882 = vmatprep.subr.mxu0 0.0
        %1883 = vmatpush1.msra.mxu0 %v1860
        %1884 = vmatprep.subr.mxu0 0.0
        %1885 = vmatpush1.msra.mxu0 0.0
        %1886 = vmatprep.subr.mxu0 0.0
        %1887 = vmatpush1.msra.mxu0 0.0
        %1888 = vmatprep.subr.mxu0 0.0
        %1889 = vmatpush1.msra.mxu0 0.0
        %1890 = vmatprep.subr.mxu0 0.0
        %1891 = vmatpush1.msra.mxu0 0.0
        %1892 = vmatprep.subr.mxu0 0.0
        %1893 = vmatpush1.msra.mxu0 0.0
        %1894 = vmatprep.subr.mxu0 0.0
        %1895 = vmatpush1.msra.mxu0 0.0
        %1896 = vmatprep.subr.mxu0 0.0
        %1897 = vmatpush1.msra.mxu0 0.0
        %1898 = vmatprep.subr.mxu0 0.0
        %1899 = vmatpush1.msra.mxu0 0.0
        %1900 = vmatprep.subr.mxu0 0.0
        %1901 = vmatpush1.msra.mxu0 0.0
        %1902 = vmatprep.subr.mxu0 0.0
        %1903 = vmatpush1.msra.mxu0 0.0
        %1904 = vmatprep.subr.mxu0 0.0
        %1905 = vmatpush1.msra.mxu0 0.0
        %1906 = vmatprep.subr.mxu0 0.0
        %1907 = vmatpush1.msra.mxu0 0.0
        %1908 = vmatprep.subr.mxu0 0.0
        %1909 = vmatpush1.msra.mxu0 0.0
        %1910 = vmatprep.subr.mxu0 0.0
        %1911 = vmatpush1.msra.mxu0 0.0
        %1912 = vmatprep.subr.mxu0 0.0
        %1913 = vmatpush1.msra.mxu0 0.0
        %1914 = vmatprep.subr.mxu0 0.0
        %1915 = vmatpush1.msra.mxu0 0.0
        %1916 = vmatprep.subr.mxu0 0.0
        %1917 = vmatpush1.msra.mxu0 0.0
        %1918 = vmatprep.subr.mxu0 0.0
        %1919 = vmatpush1.msra.mxu0 0.0
        %1920 = vmatprep.subr.mxu0 0.0
        %1921 = vmatpush1.msra.mxu0 0.0
        %1922 = vmatprep.subr.mxu0 0.0
        %1923 = vmatpush1.msra.mxu0 0.0
        %1924 = vmatprep.subr.mxu0 0.0
        %1925 = vmatpush1.msra.mxu0 0.0
        %1926 = vmatprep.subr.mxu0 0.0
        %1927 = vmatpush1.msra.mxu0 0.0
        %1928 = vmatprep.subr.mxu0 0.0
        %1929 = vmatpush1.msra.mxu0 0.0
        %1930 = vmatprep.mubr.f32.mxu0 0.0
        %1931 = vmatmul.mubr.f32.gmra.mrb[0].mxu0 %v1864
        %v1932 = vpop.f32.mrb[0].mxu0
        %v1933 = vadd.f32 0.0, %v1932
        %v1934 = vpop.f32.mrb[0].mxu0
        %1935 = vdwg.mxu0
        %v1936 = vadd.f32 %v1850, %v1933
        %v1937 = vld [vmem:[%s6] sm:$0x1]
        %v1939 = vlaneseq
        %v1940 = vshrl.u32 %v1939, 7
        %v1941 = vsub.s32 0, %v1940
        %v1942 = vrot.slane %v1937, %v1941
        %v1944 = vadd.f32 %v1936, %v1942
        %v1945 = vmax.f32 %v1944, 0.0
        %v1946 = vld [vmem:[#allocation5] sm:$0xf]
        %vm1947 = vcmask 64512
        %v1949 = vsel %vm1947, %v1946, 0
        %1951 = vmatprep.subr.mxu0 0.0
        %1952 = vmatpush1.msra.mxu0 %v1945
        %1953 = vmatprep.subr.mxu0 0.0
        %1954 = vmatpush1.msra.mxu0 0.0
        %1955 = vmatprep.subr.mxu0 0.0
        %1956 = vmatpush1.msra.mxu0 0.0
        %1957 = vmatprep.subr.mxu0 0.0
        %1958 = vmatpush1.msra.mxu0 0.0
        %1959 = vmatprep.subr.mxu0 0.0
        %1960 = vmatpush1.msra.mxu0 0.0
        %1961 = vmatprep.subr.mxu0 0.0
        %1962 = vmatpush1.msra.mxu0 0.0
        %1963 = vmatprep.subr.mxu0 0.0
        %1964 = vmatpush1.msra.mxu0 0.0
        %1965 = vmatprep.subr.mxu0 0.0
        %1966 = vmatpush1.msra.mxu0 0.0
        %1967 = vmatprep.subr.mxu0 0.0
        %1968 = vmatpush1.msra.mxu0 0.0
        %1969 = vmatprep.subr.mxu0 0.0
        %1970 = vmatpush1.msra.mxu0 0.0
        %1971 = vmatprep.subr.mxu0 0.0
        %1972 = vmatpush1.msra.mxu0 0.0
        %1973 = vmatprep.subr.mxu0 0.0
        %1974 = vmatpush1.msra.mxu0 0.0
        %1975 = vmatprep.subr.mxu0 0.0
        %1976 = vmatpush1.msra.mxu0 0.0
        %1977 = vmatprep.subr.mxu0 0.0
        %1978 = vmatpush1.msra.mxu0 0.0
        %1979 = vmatprep.subr.mxu0 0.0
        %1980 = vmatpush1.msra.mxu0 0.0
        %1981 = vmatprep.subr.mxu0 0.0
        %1982 = vmatpush1.msra.mxu0 0.0
        %1983 = vmatprep.subr.mxu0 0.0
        %1984 = vmatpush1.msra.mxu0 0.0
        %1985 = vmatprep.subr.mxu0 0.0
        %1986 = vmatpush1.msra.mxu0 0.0
        %1987 = vmatprep.subr.mxu0 0.0
        %1988 = vmatpush1.msra.mxu0 0.0
        %1989 = vmatprep.subr.mxu0 0.0
        %1990 = vmatpush1.msra.mxu0 0.0
        %1991 = vmatprep.subr.mxu0 0.0
        %1992 = vmatpush1.msra.mxu0 0.0
        %1993 = vmatprep.subr.mxu0 0.0
        %1994 = vmatpush1.msra.mxu0 0.0
        %1995 = vmatprep.subr.mxu0 0.0
        %1996 = vmatpush1.msra.mxu0 0.0
        %1997 = vmatprep.subr.mxu0 0.0
        %1998 = vmatpush1.msra.mxu0 0.0
        %1999 = vmatprep.subr.mxu0 0.0
        %2000 = vmatpush1.msra.mxu0 0.0
        %2001 = vmatprep.subr.mxu0 0.0
        %2002 = vmatpush1.msra.mxu0 0.0
        %2003 = vmatprep.subr.mxu0 0.0
        %2004 = vmatpush1.msra.mxu0 0.0
        %2005 = vmatprep.subr.mxu0 0.0
        %2006 = vmatpush1.msra.mxu0 0.0
        %2007 = vmatprep.subr.mxu0 0.0
        %2008 = vmatpush1.msra.mxu0 0.0
        %2009 = vmatprep.subr.mxu0 0.0
        %2010 = vmatpush1.msra.mxu0 0.0
        %2011 = vmatprep.subr.mxu0 0.0
        %2012 = vmatpush1.msra.mxu0 0.0
        %2013 = vmatprep.subr.mxu0 0.0
        %2014 = vmatpush1.msra.mxu0 0.0
        %2015 = vmatprep.mubr.f32.mxu0 0.0
        %2016 = vmatmul.mubr.f32.gmra.mrb[0].mxu0 %v1949
        %v2017 = vpop.f32.mrb[0].mxu0
        %v2018 = vadd.f32 0.0, %v2017
        %v2019 = vpop.f32.mrb[0].mxu0
        %2020 = vdwg.mxu0
        %s2021 = scalar_lea.vmem [#allocation5], 4
        %v2022 = vld [vmem:[%s2021] sm:$0xf]
        %v2024 = vsel %vm1947, %v2022, 0
        %2026 = vmatprep.subr.mxu0 0.0
        %2027 = vmatpush1.msra.mxu0 %v1945
        %2028 = vmatprep.subr.mxu0 0.0
        %2029 = vmatpush1.msra.mxu0 0.0
        %2030 = vmatprep.subr.mxu0 0.0
        %2031 = vmatpush1.msra.mxu0 0.0
        %2032 = vmatprep.subr.mxu0 0.0
        %2033 = vmatpush1.msra.mxu0 0.0
        %2034 = vmatprep.subr.mxu0 0.0
        %2035 = vmatpush1.msra.mxu0 0.0
        %2036 = vmatprep.subr.mxu0 0.0
        %2037 = vmatpush1.msra.mxu0 0.0
        %2038 = vmatprep.subr.mxu0 0.0
        %2039 = vmatpush1.msra.mxu0 0.0
        %2040 = vmatprep.subr.mxu0 0.0
        %2041 = vmatpush1.msra.mxu0 0.0
        %2042 = vmatprep.subr.mxu0 0.0
        %2043 = vmatpush1.msra.mxu0 0.0
        %2044 = vmatprep.subr.mxu0 0.0
        %2045 = vmatpush1.msra.mxu0 0.0
        %2046 = vmatprep.subr.mxu0 0.0
        %2047 = vmatpush1.msra.mxu0 0.0
        %2048 = vmatprep.subr.mxu0 0.0
        %2049 = vmatpush1.msra.mxu0 0.0
        %2050 = vmatprep.subr.mxu0 0.0
        %2051 = vmatpush1.msra.mxu0 0.0
        %2052 = vmatprep.subr.mxu0 0.0
        %2053 = vmatpush1.msra.mxu0 0.0
        %2054 = vmatprep.subr.mxu0 0.0
        %2055 = vmatpush1.msra.mxu0 0.0
        %2056 = vmatprep.subr.mxu0 0.0
        %2057 = vmatpush1.msra.mxu0 0.0
        %2058 = vmatprep.subr.mxu0 0.0
        %2059 = vmatpush1.msra.mxu0 0.0
        %2060 = vmatprep.subr.mxu0 0.0
        %2061 = vmatpush1.msra.mxu0 0.0
        %2062 = vmatprep.subr.mxu0 0.0
        %2063 = vmatpush1.msra.mxu0 0.0
        %2064 = vmatprep.subr.mxu0 0.0
        %2065 = vmatpush1.msra.mxu0 0.0
        %2066 = vmatprep.subr.mxu0 0.0
        %2067 = vmatpush1.msra.mxu0 0.0
        %2068 = vmatprep.subr.mxu0 0.0
        %2069 = vmatpush1.msra.mxu0 0.0
        %2070 = vmatprep.subr.mxu0 0.0
        %2071 = vmatpush1.msra.mxu0 0.0
        %2072 = vmatprep.subr.mxu0 0.0
        %2073 = vmatpush1.msra.mxu0 0.0
        %2074 = vmatprep.subr.mxu0 0.0
        %2075 = vmatpush1.msra.mxu0 0.0
        %2076 = vmatprep.subr.mxu0 0.0
        %2077 = vmatpush1.msra.mxu0 0.0
        %2078 = vmatprep.subr.mxu0 0.0
        %2079 = vmatpush1.msra.mxu0 0.0
        %2080 = vmatprep.subr.mxu0 0.0
        %2081 = vmatpush1.msra.mxu0 0.0
        %2082 = vmatprep.subr.mxu0 0.0
        %2083 = vmatpush1.msra.mxu0 0.0
        %2084 = vmatprep.subr.mxu0 0.0
        %2085 = vmatpush1.msra.mxu0 0.0
        %2086 = vmatprep.subr.mxu0 0.0
        %2087 = vmatpush1.msra.mxu0 0.0
        %2088 = vmatprep.subr.mxu0 0.0
        %2089 = vmatpush1.msra.mxu0 0.0
        %2090 = vmatprep.mubr.f32.mxu0 0.0
        %2091 = vmatmul.mubr.f32.gmra.mrb[0].mxu0 %v2024
        %v2092 = vpop.f32.mrb[0].mxu0
        %v2093 = vadd.f32 0.0, %v2092
        %v2094 = vpop.f32.mrb[0].mxu0
        %2095 = vdwg.mxu0
        %v2096 = vmax.f32 %v2018, %v2093
        %v2097 = vld [vmem:[%s8] sm:$0xff]
        %v2098 = vld [vmem:[%s8 + $0x8] sm:$0xff]
        %v2099 = vld [vmem:[%s8 + $0x10] sm:$0xff]
        %v2100 = vld [vmem:[%s8 + $0x18] sm:$0xff]
        %v2101 = vld [vmem:[%s8 + $0x20] sm:$0xff]
        %v2102 = vld [vmem:[%s8 + $0x28] sm:$0xff]
        %v2103 = vld [vmem:[%s8 + $0x30] sm:$0xff]
        %v2104 = vld [vmem:[%s8 + $0x38] sm:$0xff]
        %v2105 = vld [vmem:[%s8 + $0x40] sm:$0xff]
        %v2106 = vld [vmem:[%s8 + $0x48] sm:$0xff]
        %v2107 = vld [vmem:[%s8 + $0x50] sm:$0xff]
        %v2108 = vld [vmem:[%s8 + $0x58] sm:$0xff]
        %v2109 = vld [vmem:[%s8 + $0x60] sm:$0xff]
        %v2110 = vld [vmem:[%s8 + $0x68] sm:$0xff]
        %v2111 = vld [vmem:[%s8 + $0x70] sm:$0xff]
        %v2112 = vld [vmem:[%s8 + $0x78] sm:$0xff]
        %2113 = vmatprep.subr.mxu0 0.0
        %2114 = vmatpush1.msra.mxu0 %v2097
        %2115 = vmatprep.subr.mxu0 0.0
        %2116 = vmatpush1.msra.mxu0 %v2098
        %2117 = vmatprep.subr.mxu0 0.0
        %2118 = vmatpush1.msra.mxu0 %v2099
        %2119 = vmatprep.subr.mxu0 0.0
        %2120 = vmatpush1.msra.mxu0 %v2100
        %2121 = vmatprep.subr.mxu0 0.0
        %2122 = vmatpush1.msra.mxu0 %v2101
        %2123 = vmatprep.subr.mxu0 0.0
        %2124 = vmatpush1.msra.mxu0 %v2102
        %2125 = vmatprep.subr.mxu0 0.0
        %2126 = vmatpush1.msra.mxu0 %v2103
        %2127 = vmatprep.subr.mxu0 0.0
        %2128 = vmatpush1.msra.mxu0 %v2104
        %2129 = vmatprep.subr.mxu0 0.0
        %2130 = vmatpush1.msra.mxu0 %v2105
        %2131 = vmatprep.subr.mxu0 0.0
        %2132 = vmatpush1.msra.mxu0 %v2106
        %2133 = vmatprep.subr.mxu0 0.0
        %2134 = vmatpush1.msra.mxu0 %v2107
        %2135 = vmatprep.subr.mxu0 0.0
        %2136 = vmatpush1.msra.mxu0 %v2108
        %2137 = vmatprep.subr.mxu0 0.0
        %2138 = vmatpush1.msra.mxu0 %v2109
        %2139 = vmatprep.subr.mxu0 0.0
        %2140 = vmatpush1.msra.mxu0 %v2110
        %2141 = vmatprep.subr.mxu0 0.0
        %2142 = vmatpush1.msra.mxu0 %v2111
        %2143 = vmatprep.subr.mxu0 0.0
        %2144 = vmatpush1.msra.mxu0 %v2112
        %2145 = vmatprep.subr.mxu0 0.0
        %2146 = vmatpush1.msra.mxu0 0.0
        %2147 = vmatprep.subr.mxu0 0.0
        %2148 = vmatpush1.msra.mxu0 0.0
        %2149 = vmatprep.subr.mxu0 0.0
        %2150 = vmatpush1.msra.mxu0 0.0
        %2151 = vmatprep.subr.mxu0 0.0
        %2152 = vmatpush1.msra.mxu0 0.0
        %2153 = vmatprep.subr.mxu0 0.0
        %2154 = vmatpush1.msra.mxu0 0.0
        %2155 = vmatprep.subr.mxu0 0.0
        %2156 = vmatpush1.msra.mxu0 0.0
        %2157 = vmatprep.subr.mxu0 0.0
        %2158 = vmatpush1.msra.mxu0 0.0
        %2159 = vmatprep.subr.mxu0 0.0
        %2160 = vmatpush1.msra.mxu0 0.0
        %2161 = vmatprep.subr.mxu0 0.0
        %2162 = vmatpush1.msra.mxu0 0.0
        %2163 = vmatprep.subr.mxu0 0.0
        %2164 = vmatpush1.msra.mxu0 0.0
        %2165 = vmatprep.subr.mxu0 0.0
        %2166 = vmatpush1.msra.mxu0 0.0
        %2167 = vmatprep.subr.mxu0 0.0
        %2168 = vmatpush1.msra.mxu0 0.0
        %2169 = vmatprep.subr.mxu0 0.0
        %2170 = vmatpush1.msra.mxu0 0.0
        %2171 = vmatprep.subr.mxu0 0.0
        %2172 = vmatpush1.msra.mxu0 0.0
        %2173 = vmatprep.subr.mxu0 0.0
        %2174 = vmatpush1.msra.mxu0 0.0
        %2175 = vmatprep.subr.mxu0 0.0
        %2176 = vmatpush1.msra.mxu0 0.0
        %2177 = vmatprep.mubr.f32.mxu0 0.0
        %2178 = vmatmul.mubr.f32.gmra.mrb[0].mxu0 %v2096
        %v2179 = vpop.f32.mrb[0].mxu0
        %v2180 = vadd.f32 0.0, %v2179
        %v2181 = vpop.f32.mrb[0].mxu0
        %2182 = vdwg.mxu0
        %s2183 = scalar_lea.vmem %s8, 128
        %v2184 = vld [vmem:[%s2183] sm:$0xff]
        %v2185 = vld [vmem:[%s2183 + $0x8] sm:$0xff]
        %v2186 = vld [vmem:[%s2183 + $0x10] sm:$0xff]
        %v2187 = vld [vmem:[%s2183 + $0x18] sm:$0xff]
        %v2188 = vld [vmem:[%s2183 + $0x20] sm:$0xff]
        %v2189 = vld [vmem:[%s2183 + $0x28] sm:$0xff]
        %v2190 = vld [vmem:[%s2183 + $0x30] sm:$0xff]
        %v2191 = vld [vmem:[%s2183 + $0x38] sm:$0xff]
        %v2192 = vld [vmem:[%s2183 + $0x40] sm:$0xff]
        %v2193 = vld [vmem:[%s2183 + $0x48] sm:$0xff]
        %v2194 = vld [vmem:[%s2183 + $0x50] sm:$0xff]
        %v2195 = vld [vmem:[%s2183 + $0x58] sm:$0xff]
        %v2196 = vld [vmem:[%s2183 + $0x60] sm:$0xff]
        %v2197 = vld [vmem:[%s2183 + $0x68] sm:$0xff]
        %v2198 = vld [vmem:[%s2183 + $0x70] sm:$0xff]
        %v2199 = vld [vmem:[%s2183 + $0x78] sm:$0xff]
        %2200 = vmatprep.subr.mxu0 0.0
        %2201 = vmatpush1.msra.mxu0 %v2184
        %2202 = vmatprep.subr.mxu0 0.0
        %2203 = vmatpush1.msra.mxu0 %v2185
        %2204 = vmatprep.subr.mxu0 0.0
        %2205 = vmatpush1.msra.mxu0 %v2186
        %2206 = vmatprep.subr.mxu0 0.0
        %2207 = vmatpush1.msra.mxu0 %v2187
        %2208 = vmatprep.subr.mxu0 0.0
        %2209 = vmatpush1.msra.mxu0 %v2188
        %2210 = vmatprep.subr.mxu0 0.0
        %2211 = vmatpush1.msra.mxu0 %v2189
        %2212 = vmatprep.subr.mxu0 0.0
        %2213 = vmatpush1.msra.mxu0 %v2190
        %2214 = vmatprep.subr.mxu0 0.0
        %2215 = vmatpush1.msra.mxu0 %v2191
        %2216 = vmatprep.subr.mxu0 0.0
        %2217 = vmatpush1.msra.mxu0 %v2192
        %2218 = vmatprep.subr.mxu0 0.0
        %2219 = vmatpush1.msra.mxu0 %v2193
        %2220 = vmatprep.subr.mxu0 0.0
        %2221 = vmatpush1.msra.mxu0 %v2194
        %2222 = vmatprep.subr.mxu0 0.0
        %2223 = vmatpush1.msra.mxu0 %v2195
        %2224 = vmatprep.subr.mxu0 0.0
        %2225 = vmatpush1.msra.mxu0 %v2196
        %2226 = vmatprep.subr.mxu0 0.0
        %2227 = vmatpush1.msra.mxu0 %v2197
        %2228 = vmatprep.subr.mxu0 0.0
        %2229 = vmatpush1.msra.mxu0 %v2198
        %2230 = vmatprep.subr.mxu0 0.0
        %2231 = vmatpush1.msra.mxu0 %v2199
        %2232 = vmatprep.subr.mxu0 0.0
        %2233 = vmatpush1.msra.mxu0 0.0
        %2234 = vmatprep.subr.mxu0 0.0
        %2235 = vmatpush1.msra.mxu0 0.0
        %2236 = vmatprep.subr.mxu0 0.0
        %2237 = vmatpush1.msra.mxu0 0.0
        %2238 = vmatprep.subr.mxu0 0.0
        %2239 = vmatpush1.msra.mxu0 0.0
        %2240 = vmatprep.subr.mxu0 0.0
        %2241 = vmatpush1.msra.mxu0 0.0
        %2242 = vmatprep.subr.mxu0 0.0
        %2243 = vmatpush1.msra.mxu0 0.0
        %2244 = vmatprep.subr.mxu0 0.0
        %2245 = vmatpush1.msra.mxu0 0.0
        %2246 = vmatprep.subr.mxu0 0.0
        %2247 = vmatpush1.msra.mxu0 0.0
        %2248 = vmatprep.subr.mxu0 0.0
        %2249 = vmatpush1.msra.mxu0 0.0
        %2250 = vmatprep.subr.mxu0 0.0
        %2251 = vmatpush1.msra.mxu0 0.0
        %2252 = vmatprep.subr.mxu0 0.0
        %2253 = vmatpush1.msra.mxu0 0.0
        %2254 = vmatprep.subr.mxu0 0.0
        %2255 = vmatpush1.msra.mxu0 0.0
        %2256 = vmatprep.subr.mxu0 0.0
        %2257 = vmatpush1.msra.mxu0 0.0
        %2258 = vmatprep.subr.mxu0 0.0
        %2259 = vmatpush1.msra.mxu0 0.0
        %2260 = vmatprep.subr.mxu0 0.0
        %2261 = vmatpush1.msra.mxu0 0.0
        %2262 = vmatprep.subr.mxu0 0.0
        %2263 = vmatpush1.msra.mxu0 0.0
        %2264 = vmatprep.mubr.f32.mxu0 0.0
        %2265 = vmatmul.mubr.f32.gmra.mrb[0].mxu0 %v2096
        %v2266 = vpop.f32.mrb[0].mxu0
        %v2267 = vadd.f32 0.0, %v2266
        %v2268 = vpop.f32.mrb[0].mxu0
        %2269 = vdwg.mxu0
        %v2270 = vmax.f32 %v2180, %v2267
        %v2271 = vld [vmem:[#allocation7] sm:$0xff]
        %v2272 = vld [vmem:[#allocation7 + $0x8] sm:$0xff]
        %v2273 = vld [vmem:[#allocation7 + $0x10] sm:$0xff]
        %v2274 = vld [vmem:[#allocation7 + $0x18] sm:$0xff]
        %v2275 = vld [vmem:[#allocation7 + $0x20] sm:$0xff]
        %v2276 = vld [vmem:[#allocation7 + $0x28] sm:$0xff]
        %v2277 = vld [vmem:[#allocation7 + $0x30] sm:$0xff]
        %v2278 = vld [vmem:[#allocation7 + $0x38] sm:$0xff]
        %s2279 = scalar_lea.vmem [#allocation7], 64
        %v2280 = vld [vmem:[%s2279] sm:$0xff]
        %v2281 = vld [vmem:[%s2279 + $0x8] sm:$0xff]
        %v2282 = vld [vmem:[%s2279 + $0x10] sm:$0xff]
        %v2283 = vld [vmem:[%s2279 + $0x18] sm:$0xff]
        %v2284 = vld [vmem:[%s2279 + $0x20] sm:$0xff]
        %v2285 = vld [vmem:[%s2279 + $0x28] sm:$0xff]
        %v2286 = vld [vmem:[%s2279 + $0x30] sm:$0xff]
        %v2287 = vld [vmem:[%s2279 + $0x38] sm:$0xff]
        %v2289 = vrot.slane %v2270, 1
        %vm2290 = vcmask 523264
        %v2291 = vsel %vm2290, %v2289, 0
        %2293 = vmatprep.subr.mxu0 0.0
        %2294 = vmatpush1.msra.mxu0 %v2280
        %2295 = vmatprep.subr.mxu0 0.0
        %2296 = vmatpush1.msra.mxu0 %v2281
        %2297 = vmatprep.subr.mxu0 0.0
        %2298 = vmatpush1.msra.mxu0 %v2282
        %2299 = vmatprep.subr.mxu0 0.0
        %2300 = vmatpush1.msra.mxu0 %v2283
        %2301 = vmatprep.subr.mxu0 0.0
        %2302 = vmatpush1.msra.mxu0 %v2284
        %2303 = vmatprep.subr.mxu0 0.0
        %2304 = vmatpush1.msra.mxu0 %v2285
        %2305 = vmatprep.subr.mxu0 0.0
        %2306 = vmatpush1.msra.mxu0 %v2286
        %2307 = vmatprep.subr.mxu0 0.0
        %2308 = vmatpush1.msra.mxu0 %v2287
        %2309 = vmatprep.subr.mxu0 0.0
        %2310 = vmatpush1.msra.mxu0 0.0
        %2311 = vmatprep.subr.mxu0 0.0
        %2312 = vmatpush1.msra.mxu0 0.0
        %2313 = vmatprep.subr.mxu0 0.0
        %2314 = vmatpush1.msra.mxu0 0.0
        %2315 = vmatprep.subr.mxu0 0.0
        %2316 = vmatpush1.msra.mxu0 0.0
        %2317 = vmatprep.subr.mxu0 0.0
        %2318 = vmatpush1.msra.mxu0 0.0
        %2319 = vmatprep.subr.mxu0 0.0
        %2320 = vmatpush1.msra.mxu0 0.0
        %2321 = vmatprep.subr.mxu0 0.0
        %2322 = vmatpush1.msra.mxu0 0.0
        %2323 = vmatprep.subr.mxu0 0.0
        %2324 = vmatpush1.msra.mxu0 0.0
        %2325 = vmatprep.subr.mxu0 0.0
        %2326 = vmatpush1.msra.mxu0 0.0
        %2327 = vmatprep.subr.mxu0 0.0
        %2328 = vmatpush1.msra.mxu0 0.0
        %2329 = vmatprep.subr.mxu0 0.0
        %2330 = vmatpush1.msra.mxu0 0.0
        %2331 = vmatprep.subr.mxu0 0.0
        %2332 = vmatpush1.msra.mxu0 0.0
        %2333 = vmatprep.subr.mxu0 0.0
        %2334 = vmatpush1.msra.mxu0 0.0
        %2335 = vmatprep.subr.mxu0 0.0
        %2336 = vmatpush1.msra.mxu0 0.0
        %2337 = vmatprep.subr.mxu0 0.0
        %2338 = vmatpush1.msra.mxu0 0.0
        %2339 = vmatprep.subr.mxu0 0.0
        %2340 = vmatpush1.msra.mxu0 0.0
        %2341 = vmatprep.subr.mxu0 0.0
        %2342 = vmatpush1.msra.mxu0 0.0
        %2343 = vmatprep.subr.mxu0 0.0
        %2344 = vmatpush1.msra.mxu0 0.0
        %2345 = vmatprep.subr.mxu0 0.0
        %2346 = vmatpush1.msra.mxu0 0.0
        %2347 = vmatprep.subr.mxu0 0.0
        %2348 = vmatpush1.msra.mxu0 0.0
        %2349 = vmatprep.subr.mxu0 0.0
        %2350 = vmatpush1.msra.mxu0 0.0
        %2351 = vmatprep.subr.mxu0 0.0
        %2352 = vmatpush1.msra.mxu0 0.0
        %2353 = vmatprep.subr.mxu0 0.0
        %2354 = vmatpush1.msra.mxu0 0.0
        %2355 = vmatprep.subr.mxu0 0.0
        %2356 = vmatpush1.msra.mxu0 0.0
        %2357 = vmatprep.mubr.f32.mxu0 0.0
        %2358 = vmatmul.mubr.f32.gmra.mrb[0].mxu0 %v2291
        %v2359 = vpop.f32.mrb[0].mxu0
        %v2360 = vadd.f32 0.0, %v2359
        %v2361 = vpop.f32.mrb[0].mxu0
        %2362 = vdwg.mxu0
        %v2363 = vsel %vm2290, %v2270, 0
        %2365 = vmatprep.subr.mxu0 0.0
        %2366 = vmatpush1.msra.mxu0 %v2271
        %2367 = vmatprep.subr.mxu0 0.0
        %2368 = vmatpush1.msra.mxu0 %v2272
        %2369 = vmatprep.subr.mxu0 0.0
        %2370 = vmatpush1.msra.mxu0 %v2273
        %2371 = vmatprep.subr.mxu0 0.0
        %2372 = vmatpush1.msra.mxu0 %v2274
        %2373 = vmatprep.subr.mxu0 0.0
        %2374 = vmatpush1.msra.mxu0 %v2275
        %2375 = vmatprep.subr.mxu0 0.0
        %2376 = vmatpush1.msra.mxu0 %v2276
        %2377 = vmatprep.subr.mxu0 0.0
        %2378 = vmatpush1.msra.mxu0 %v2277
        %2379 = vmatprep.subr.mxu0 0.0
        %2380 = vmatpush1.msra.mxu0 %v2278
        %2381 = vmatprep.subr.mxu0 0.0
        %2382 = vmatpush1.msra.mxu0 0.0
        %2383 = vmatprep.subr.mxu0 0.0
        %2384 = vmatpush1.msra.mxu0 0.0
        %2385 = vmatprep.subr.mxu0 0.0
        %2386 = vmatpush1.msra.mxu0 0.0
        %2387 = vmatprep.subr.mxu0 0.0
        %2388 = vmatpush1.msra.mxu0 0.0
        %2389 = vmatprep.subr.mxu0 0.0
        %2390 = vmatpush1.msra.mxu0 0.0
        %2391 = vmatprep.subr.mxu0 0.0
        %2392 = vmatpush1.msra.mxu0 0.0
        %2393 = vmatprep.subr.mxu0 0.0
        %2394 = vmatpush1.msra.mxu0 0.0
        %2395 = vmatprep.subr.mxu0 0.0
        %2396 = vmatpush1.msra.mxu0 0.0
        %2397 = vmatprep.subr.mxu0 0.0
        %2398 = vmatpush1.msra.mxu0 0.0
        %2399 = vmatprep.subr.mxu0 0.0
        %2400 = vmatpush1.msra.mxu0 0.0
        %2401 = vmatprep.subr.mxu0 0.0
        %2402 = vmatpush1.msra.mxu0 0.0
        %2403 = vmatprep.subr.mxu0 0.0
        %2404 = vmatpush1.msra.mxu0 0.0
        %2405 = vmatprep.subr.mxu0 0.0
        %2406 = vmatpush1.msra.mxu0 0.0
        %2407 = vmatprep.subr.mxu0 0.0
        %2408 = vmatpush1.msra.mxu0 0.0
        %2409 = vmatprep.subr.mxu0 0.0
        %2410 = vmatpush1.msra.mxu0 0.0
        %2411 = vmatprep.subr.mxu0 0.0
        %2412 = vmatpush1.msra.mxu0 0.0
        %2413 = vmatprep.subr.mxu0 0.0
        %2414 = vmatpush1.msra.mxu0 0.0
        %2415 = vmatprep.subr.mxu0 0.0
        %2416 = vmatpush1.msra.mxu0 0.0
        %2417 = vmatprep.subr.mxu0 0.0
        %2418 = vmatpush1.msra.mxu0 0.0
        %2419 = vmatprep.subr.mxu0 0.0
        %2420 = vmatpush1.msra.mxu0 0.0
        %2421 = vmatprep.subr.mxu0 0.0
        %2422 = vmatpush1.msra.mxu0 0.0
        %2423 = vmatprep.subr.mxu0 0.0
        %2424 = vmatpush1.msra.mxu0 0.0
        %2425 = vmatprep.subr.mxu0 0.0
        %2426 = vmatpush1.msra.mxu0 0.0
        %2427 = vmatprep.subr.mxu0 0.0
        %2428 = vmatpush1.msra.mxu0 0.0
        %2429 = vmatprep.mubr.f32.mxu0 0.0
        %2430 = vmatmul.mubr.f32.gmra.mrb[0].mxu0 %v2363
        %v2431 = vpop.f32.mrb[0].mxu0
        %v2432 = vadd.f32 %v2360, %v2431
        %v2433 = vpop.f32.mrb[0].mxu0
        %2434 = vdwg.mxu0
        %s2435 = scalar_lea.vmem [#allocation7], 128
        %v2436 = vld [vmem:[%s2435] sm:$0xff]
        %v2437 = vld [vmem:[%s2435 + $0x8] sm:$0xff]
        %v2438 = vld [vmem:[%s2435 + $0x10] sm:$0xff]
        %v2439 = vld [vmem:[%s2435 + $0x18] sm:$0xff]
        %v2440 = vld [vmem:[%s2435 + $0x20] sm:$0xff]
        %v2441 = vld [vmem:[%s2435 + $0x28] sm:$0xff]
        %v2442 = vld [vmem:[%s2435 + $0x30] sm:$0xff]
        %v2443 = vld [vmem:[%s2435 + $0x38] sm:$0xff]
        %v2444 = vrot.slane %v2270, 2
        %v2445 = vsel %vm2290, %v2444, 0
        %2447 = vmatprep.subr.mxu0 0.0
        %2448 = vmatpush1.msra.mxu0 %v2436
        %2449 = vmatprep.subr.mxu0 0.0
        %2450 = vmatpush1.msra.mxu0 %v2437
        %2451 = vmatprep.subr.mxu0 0.0
        %2452 = vmatpush1.msra.mxu0 %v2438
        %2453 = vmatprep.subr.mxu0 0.0
        %2454 = vmatpush1.msra.mxu0 %v2439
        %2455 = vmatprep.subr.mxu0 0.0
        %2456 = vmatpush1.msra.mxu0 %v2440
        %2457 = vmatprep.subr.mxu0 0.0
        %2458 = vmatpush1.msra.mxu0 %v2441
        %2459 = vmatprep.subr.mxu0 0.0
        %2460 = vmatpush1.msra.mxu0 %v2442
        %2461 = vmatprep.subr.mxu0 0.0
        %2462 = vmatpush1.msra.mxu0 %v2443
        %2463 = vmatprep.subr.mxu0 0.0
        %2464 = vmatpush1.msra.mxu0 0.0
        %2465 = vmatprep.subr.mxu0 0.0
        %2466 = vmatpush1.msra.mxu0 0.0
        %2467 = vmatprep.subr.mxu0 0.0
        %2468 = vmatpush1.msra.mxu0 0.0
        %2469 = vmatprep.subr.mxu0 0.0
        %2470 = vmatpush1.msra.mxu0 0.0
        %2471 = vmatprep.subr.mxu0 0.0
        %2472 = vmatpush1.msra.mxu0 0.0
        %2473 = vmatprep.subr.mxu0 0.0
        %2474 = vmatpush1.msra.mxu0 0.0
        %2475 = vmatprep.subr.mxu0 0.0
        %2476 = vmatpush1.msra.mxu0 0.0
        %2477 = vmatprep.subr.mxu0 0.0
        %2478 = vmatpush1.msra.mxu0 0.0
        %2479 = vmatprep.subr.mxu0 0.0
        %2480 = vmatpush1.msra.mxu0 0.0
        %2481 = vmatprep.subr.mxu0 0.0
        %2482 = vmatpush1.msra.mxu0 0.0
        %2483 = vmatprep.subr.mxu0 0.0
        %2484 = vmatpush1.msra.mxu0 0.0
        %2485 = vmatprep.subr.mxu0 0.0
        %2486 = vmatpush1.msra.mxu0 0.0
        %2487 = vmatprep.subr.mxu0 0.0
        %2488 = vmatpush1.msra.mxu0 0.0
        %2489 = vmatprep.subr.mxu0 0.0
        %2490 = vmatpush1.msra.mxu0 0.0
        %2491 = vmatprep.subr.mxu0 0.0
        %2492 = vmatpush1.msra.mxu0 0.0
        %2493 = vmatprep.subr.mxu0 0.0
        %2494 = vmatpush1.msra.mxu0 0.0
        %2495 = vmatprep.subr.mxu0 0.0
        %2496 = vmatpush1.msra.mxu0 0.0
        %2497 = vmatprep.subr.mxu0 0.0
        %2498 = vmatpush1.msra.mxu0 0.0
        %2499 = vmatprep.subr.mxu0 0.0
        %2500 = vmatpush1.msra.mxu0 0.0
        %2501 = vmatprep.subr.mxu0 0.0
        %2502 = vmatpush1.msra.mxu0 0.0
        %2503 = vmatprep.subr.mxu0 0.0
        %2504 = vmatpush1.msra.mxu0 0.0
        %2505 = vmatprep.subr.mxu0 0.0
        %2506 = vmatpush1.msra.mxu0 0.0
        %2507 = vmatprep.subr.mxu0 0.0
        %2508 = vmatpush1.msra.mxu0 0.0
        %2509 = vmatprep.subr.mxu0 0.0
        %2510 = vmatpush1.msra.mxu0 0.0
        %2511 = vmatprep.mubr.f32.mxu0 0.0
        %2512 = vmatmul.mubr.f32.gmra.mrb[0].mxu0 %v2445
        %v2513 = vpop.f32.mrb[0].mxu0
        %v2514 = vadd.f32 0.0, %v2513
        %v2515 = vpop.f32.mrb[0].mxu0
        %2516 = vdwg.mxu0
        %v2517 = vadd.f32 %v2432, %v2514
        %s2518 = scalar_lea.vmem [#allocation7], 192
        %v2519 = vld [vmem:[%s2518] sm:$0xff]
        %v2520 = vld [vmem:[%s2518 + $0x8] sm:$0xff]
        %v2521 = vld [vmem:[%s2518 + $0x10] sm:$0xff]
        %v2522 = vld [vmem:[%s2518 + $0x18] sm:$0xff]
        %v2523 = vld [vmem:[%s2518 + $0x20] sm:$0xff]
        %v2524 = vld [vmem:[%s2518 + $0x28] sm:$0xff]
        %v2525 = vld [vmem:[%s2518 + $0x30] sm:$0xff]
        %v2526 = vld [vmem:[%s2518 + $0x38] sm:$0xff]
        %v2527 = vrot.slane %v2270, 3
        %v2528 = vsel %vm2290, %v2527, 0
        %2530 = vmatprep.subr.mxu0 0.0
        %2531 = vmatpush1.msra.mxu0 %v2519
        %2532 = vmatprep.subr.mxu0 0.0
        %2533 = vmatpush1.msra.mxu0 %v2520
        %2534 = vmatprep.subr.mxu0 0.0
        %2535 = vmatpush1.msra.mxu0 %v2521
        %2536 = vmatprep.subr.mxu0 0.0
        %2537 = vmatpush1.msra.mxu0 %v2522
        %2538 = vmatprep.subr.mxu0 0.0
        %2539 = vmatpush1.msra.mxu0 %v2523
        %2540 = vmatprep.subr.mxu0 0.0
        %2541 = vmatpush1.msra.mxu0 %v2524
        %2542 = vmatprep.subr.mxu0 0.0
        %2543 = vmatpush1.msra.mxu0 %v2525
        %2544 = vmatprep.subr.mxu0 0.0
        %2545 = vmatpush1.msra.mxu0 %v2526
        %2546 = vmatprep.subr.mxu0 0.0
        %2547 = vmatpush1.msra.mxu0 0.0
        %2548 = vmatprep.subr.mxu0 0.0
        %2549 = vmatpush1.msra.mxu0 0.0
        %2550 = vmatprep.subr.mxu0 0.0
        %2551 = vmatpush1.msra.mxu0 0.0
        %2552 = vmatprep.subr.mxu0 0.0
        %2553 = vmatpush1.msra.mxu0 0.0
        %2554 = vmatprep.subr.mxu0 0.0
        %2555 = vmatpush1.msra.mxu0 0.0
        %2556 = vmatprep.subr.mxu0 0.0
        %2557 = vmatpush1.msra.mxu0 0.0
        %2558 = vmatprep.subr.mxu0 0.0
        %2559 = vmatpush1.msra.mxu0 0.0
        %2560 = vmatprep.subr.mxu0 0.0
        %2561 = vmatpush1.msra.mxu0 0.0
        %2562 = vmatprep.subr.mxu0 0.0
        %2563 = vmatpush1.msra.mxu0 0.0
        %2564 = vmatprep.subr.mxu0 0.0
        %2565 = vmatpush1.msra.mxu0 0.0
        %2566 = vmatprep.subr.mxu0 0.0
        %2567 = vmatpush1.msra.mxu0 0.0
        %2568 = vmatprep.subr.mxu0 0.0
        %2569 = vmatpush1.msra.mxu0 0.0
        %2570 = vmatprep.subr.mxu0 0.0
        %2571 = vmatpush1.msra.mxu0 0.0
        %2572 = vmatprep.subr.mxu0 0.0
        %2573 = vmatpush1.msra.mxu0 0.0
        %2574 = vmatprep.subr.mxu0 0.0
        %2575 = vmatpush1.msra.mxu0 0.0
        %2576 = vmatprep.subr.mxu0 0.0
        %2577 = vmatpush1.msra.mxu0 0.0
        %2578 = vmatprep.subr.mxu0 0.0
        %2579 = vmatpush1.msra.mxu0 0.0
        %2580 = vmatprep.subr.mxu0 0.0
        %2581 = vmatpush1.msra.mxu0 0.0
        %2582 = vmatprep.subr.mxu0 0.0
        %2583 = vmatpush1.msra.mxu0 0.0
        %2584 = vmatprep.subr.mxu0 0.0
        %2585 = vmatpush1.msra.mxu0 0.0
        %2586 = vmatprep.subr.mxu0 0.0
        %2587 = vmatpush1.msra.mxu0 0.0
        %2588 = vmatprep.subr.mxu0 0.0
        %2589 = vmatpush1.msra.mxu0 0.0
        %2590 = vmatprep.subr.mxu0 0.0
        %2591 = vmatpush1.msra.mxu0 0.0
        %2592 = vmatprep.subr.mxu0 0.0
        %2593 = vmatpush1.msra.mxu0 0.0
        %2594 = vmatprep.mubr.f32.mxu0 0.0
        %2595 = vmatmul.mubr.f32.gmra.mrb[0].mxu0 %v2528
        %v2596 = vpop.f32.mrb[0].mxu0
        %v2597 = vadd.f32 0.0, %v2596
        %v2598 = vpop.f32.mrb[0].mxu0
        %2599 = vdwg.mxu0
        %v2600 = vadd.f32 %v2517, %v2597
        %v2601 = vld [vmem:[%s10] sm:$0x1]
        %v2602 = vadd.f32 %v2600, %v2601
        %v2603 = vmax.f32 %v2602, 0.0
        %v2604 = vld [vmem:[%s11] sm:$0xff]
        %v2605 = vld [vmem:[%s11 + $0x8] sm:$0xff]
        %v2606 = vld [vmem:[%s11 + $0x10] sm:$0xff]
        %v2607 = vld [vmem:[%s11 + $0x18] sm:$0xff]
        %v2608 = vld [vmem:[%s11 + $0x20] sm:$0xff]
        %v2609 = vld [vmem:[%s11 + $0x28] sm:$0xff]
        %v2610 = vld [vmem:[%s11 + $0x30] sm:$0xff]
        %v2611 = vld [vmem:[%s11 + $0x38] sm:$0xff]
        %v2612 = vld [vmem:[%s11 + $0x40] sm:$0xff]
        %v2613 = vld [vmem:[%s11 + $0x48] sm:$0xff]
        %v2614 = vld [vmem:[%s11 + $0x50] sm:$0xff]
        %v2615 = vld [vmem:[%s11 + $0x58] sm:$0xff]
        %v2616 = vld [vmem:[%s11 + $0x60] sm:$0xff]
        %v2617 = vld [vmem:[%s11 + $0x68] sm:$0xff]
        %v2618 = vld [vmem:[%s11 + $0x70] sm:$0xff]
        %v2619 = vld [vmem:[%s12] sm:$0x1]
        %vm2620 = vcmask 982016
        %v2622 = vsel %vm2620, %v2603, 0
        %2624 = vmatprep.subr.mxu0 0.0
        %2625 = vmatpush1.msra.mxu0 %v2604
        %2626 = vmatprep.subr.mxu0 0.0
        %2627 = vmatpush1.msra.mxu0 %v2605
        %2628 = vmatprep.subr.mxu0 0.0
        %2629 = vmatpush1.msra.mxu0 %v2606
        %2630 = vmatprep.subr.mxu0 0.0
        %2631 = vmatpush1.msra.mxu0 %v2607
        %2632 = vmatprep.subr.mxu0 0.0
        %2633 = vmatpush1.msra.mxu0 %v2608
        %2634 = vmatprep.subr.mxu0 0.0
        %2635 = vmatpush1.msra.mxu0 %v2609
        %2636 = vmatprep.subr.mxu0 0.0
        %2637 = vmatpush1.msra.mxu0 %v2610
        %2638 = vmatprep.subr.mxu0 0.0
        %2639 = vmatpush1.msra.mxu0 %v2611
        %2640 = vmatprep.subr.mxu0 0.0
        %2641 = vmatpush1.msra.mxu0 %v2612
        %2642 = vmatprep.subr.mxu0 0.0
        %2643 = vmatpush1.msra.mxu0 %v2613
        %2644 = vmatprep.subr.mxu0 0.0
        %2645 = vmatpush1.msra.mxu0 %v2614
        %2646 = vmatprep.subr.mxu0 0.0
        %2647 = vmatpush1.msra.mxu0 %v2615
        %2648 = vmatprep.subr.mxu0 0.0
        %2649 = vmatpush1.msra.mxu0 %v2616
        %2650 = vmatprep.subr.mxu0 0.0
        %2651 = vmatpush1.msra.mxu0 %v2617
        %2652 = vmatprep.subr.mxu0 0.0
        %2653 = vmatpush1.msra.mxu0 %v2618
        %2654 = vmatprep.subr.mxu0 0.0
        %2655 = vmatpush1.msra.mxu0 0.0
        %2656 = vmatprep.subr.mxu0 0.0
        %2657 = vmatpush1.msra.mxu0 0.0
        %2658 = vmatprep.subr.mxu0 0.0
        %2659 = vmatpush1.msra.mxu0 0.0
        %2660 = vmatprep.subr.mxu0 0.0
        %2661 = vmatpush1.msra.mxu0 0.0
        %2662 = vmatprep.subr.mxu0 0.0
        %2663 = vmatpush1.msra.mxu0 0.0
        %2664 = vmatprep.subr.mxu0 0.0
        %2665 = vmatpush1.msra.mxu0 0.0
        %2666 = vmatprep.subr.mxu0 0.0
        %2667 = vmatpush1.msra.mxu0 0.0
        %2668 = vmatprep.subr.mxu0 0.0
        %2669 = vmatpush1.msra.mxu0 0.0
        %2670 = vmatprep.subr.mxu0 0.0
        %2671 = vmatpush1.msra.mxu0 0.0
        %2672 = vmatprep.subr.mxu0 0.0
        %2673 = vmatpush1.msra.mxu0 0.0
        %2674 = vmatprep.subr.mxu0 0.0
        %2675 = vmatpush1.msra.mxu0 0.0
        %2676 = vmatprep.subr.mxu0 0.0
        %2677 = vmatpush1.msra.mxu0 0.0
        %2678 = vmatprep.subr.mxu0 0.0
        %2679 = vmatpush1.msra.mxu0 0.0
        %2680 = vmatprep.subr.mxu0 0.0
        %2681 = vmatpush1.msra.mxu0 0.0
        %2682 = vmatprep.subr.mxu0 0.0
        %2683 = vmatpush1.msra.mxu0 0.0
        %2684 = vmatprep.subr.mxu0 0.0
        %2685 = vmatpush1.msra.mxu0 0.0
        %2686 = vmatprep.subr.mxu0 0.0
        %2687 = vmatpush1.msra.mxu0 0.0
        %2688 = vmatprep.mubr.f32.mxu0 0.0
        %2689 = vmatmul.mubr.f32.gmra.mrb[0].mxu0 %v2622
        %v2690 = vpop.f32.mrb[0].mxu0
        %v2691 = vadd.f32 %v2619, %v2690
        %v2692 = vpop.f32.mrb[0].mxu0
        %2693 = vdwg.mxu0
        %v2694 = vmax.f32 %v2691, 0.0
        %v2695 = vld [vmem:[%s13] sm:$0xff]
        %v2696 = vld [vmem:[%s13 + $0x8] sm:$0xff]
        %v2697 = vld [vmem:[%s13 + $0x10] sm:$0xff]
        %v2698 = vld [vmem:[%s13 + $0x18] sm:$0xff]
        %v2699 = vld [vmem:[%s13 + $0x20] sm:$0xff]
        %v2700 = vld [vmem:[%s13 + $0x28] sm:$0xff]
        %v2701 = vld [vmem:[%s13 + $0x30] sm:$0xff]
        %v2702 = vld [vmem:[%s13 + $0x38] sm:$0xff]
        %v2703 = vld [vmem:[%s13 + $0x40] sm:$0xff]
        %v2704 = vld [vmem:[%s13 + $0x48] sm:$0xff]
        %v2705 = vld [vmem:[%s13 + $0x50] sm:$0xf]
        %v2706 = vld [vmem:[%s14] sm:$0x1]
        %vm2707 = vcmask 687104
        %v2709 = vsel %vm2707, %v2694, 0
        %v2712 = vsel %vm576, %v2705, 0
        %2714 = vmatprep.subr.mxu0 0.0
        %2715 = vmatpush1.msra.mxu0 %v2695
        %2716 = vmatprep.subr.mxu0 0.0
        %2717 = vmatpush1.msra.mxu0 %v2696
        %2718 = vmatprep.subr.mxu0 0.0
        %2719 = vmatpush1.msra.mxu0 %v2697
        %2720 = vmatprep.subr.mxu0 0.0
        %2721 = vmatpush1.msra.mxu0 %v2698
        %2722 = vmatprep.subr.mxu0 0.0
        %2723 = vmatpush1.msra.mxu0 %v2699
        %2724 = vmatprep.subr.mxu0 0.0
        %2725 = vmatpush1.msra.mxu0 %v2700
        %2726 = vmatprep.subr.mxu0 0.0
        %2727 = vmatpush1.msra.mxu0 %v2701
        %2728 = vmatprep.subr.mxu0 0.0
        %2729 = vmatpush1.msra.mxu0 %v2702
        %2730 = vmatprep.subr.mxu0 0.0
        %2731 = vmatpush1.msra.mxu0 %v2703
        %2732 = vmatprep.subr.mxu0 0.0
        %2733 = vmatpush1.msra.mxu0 %v2704
        %2734 = vmatprep.subr.mxu0 0.0
        %2735 = vmatpush1.msra.mxu0 %v2712
        %2736 = vmatprep.subr.mxu0 0.0
        %2737 = vmatpush1.msra.mxu0 0.0
        %2738 = vmatprep.subr.mxu0 0.0
        %2739 = vmatpush1.msra.mxu0 0.0
        %2740 = vmatprep.subr.mxu0 0.0
        %2741 = vmatpush1.msra.mxu0 0.0
        %2742 = vmatprep.subr.mxu0 0.0
        %2743 = vmatpush1.msra.mxu0 0.0
        %2744 = vmatprep.subr.mxu0 0.0
        %2745 = vmatpush1.msra.mxu0 0.0
        %2746 = vmatprep.subr.mxu0 0.0
        %2747 = vmatpush1.msra.mxu0 0.0
        %2748 = vmatprep.subr.mxu0 0.0
        %2749 = vmatpush1.msra.mxu0 0.0
        %2750 = vmatprep.subr.mxu0 0.0
        %2751 = vmatpush1.msra.mxu0 0.0
        %2752 = vmatprep.subr.mxu0 0.0
        %2753 = vmatpush1.msra.mxu0 0.0
        %2754 = vmatprep.subr.mxu0 0.0
        %2755 = vmatpush1.msra.mxu0 0.0
        %2756 = vmatprep.subr.mxu0 0.0
        %2757 = vmatpush1.msra.mxu0 0.0
        %2758 = vmatprep.subr.mxu0 0.0
        %2759 = vmatpush1.msra.mxu0 0.0
        %2760 = vmatprep.subr.mxu0 0.0
        %2761 = vmatpush1.msra.mxu0 0.0
        %2762 = vmatprep.subr.mxu0 0.0
        %2763 = vmatpush1.msra.mxu0 0.0
        %2764 = vmatprep.subr.mxu0 0.0
        %2765 = vmatpush1.msra.mxu0 0.0
        %2766 = vmatprep.subr.mxu0 0.0
        %2767 = vmatpush1.msra.mxu0 0.0
        %2768 = vmatprep.subr.mxu0 0.0
        %2769 = vmatpush1.msra.mxu0 0.0
        %2770 = vmatprep.subr.mxu0 0.0
        %2771 = vmatpush1.msra.mxu0 0.0
        %2772 = vmatprep.subr.mxu0 0.0
        %2773 = vmatpush1.msra.mxu0 0.0
        %2774 = vmatprep.subr.mxu0 0.0
        %2775 = vmatpush1.msra.mxu0 0.0
        %2776 = vmatprep.subr.mxu0 0.0
        %2777 = vmatpush1.msra.mxu0 0.0
        %2778 = vmatprep.mubr.f32.mxu0 0.0
        %2779 = vmatmul.mubr.f32.gmra.mrb[0].mxu0 %v2709
        %v2780 = vpop.f32.mrb[0].mxu0
        %v2781 = vadd.f32 %v2706, %v2780
        %v2782 = vpop.f32.mrb[0].mxu0
        %2783 = vdwg.mxu0
        %vm2784 = vcmask 73728
        %2785 = vst.msk [vmem:[%s530] sm:$0x1] %vm2784, %v2781
        %s2786 = sand.u32 %s359, 1
        %s2787 = scalar_lea.sflag [#allocation4], %s2786
        %s2788 = sand.u32 %s359, 1
        %s2789 = scalar_lea.vmem [#allocation8], %s2788
        // Predicated region
        $region93: #{net_forward.1} parent=79 // pred_check
          %p2790 = pneg %p369
        $region94: #{net_forward.1} parent=79 // pred_check_branch
          %2792 = sbr.rel (%p2790) target = $region96
        $region95: #{net_forward.1} parent=79 // pred_region
          %s2794 = ssub.s32 16, 16
          %2795 = vsyncadd %s2787, %s2794
          %s2796 = smul.addr %s31, 16
          %s2797 = scalar_lea.hbm %s15, %s2796
          %s2799 = sshll.u32 %s2789, 4
          %s2800 = int_to_ptr.vmem [resolvable:$true] %s2799
          %2802 = dma.vmem_to_hbm [thread:$0]  %s2800, 16, %s2797, %s2787
        $region96: #{net_forward.1} parent=79 // pred_fallthru
          _
      $region80: #{net_forward.1} parent=5 // pred_fallthru
        _
      %p2803 = scmp.le.s32.totalorder 2, %s26
      // Predicated region
      $region97: #{net_forward.1} parent=5 // pred_check
        %p2804 = pneg %p2803
      $region98: #{net_forward.1} parent=5 // pred_check_branch
        %2806 = sbr.rel (%p2804) target = $region100
      $region99: #{net_forward.1} parent=5 // pred_region
        %s2807 = ssub.s32 %s26, 2
        // Predicated region
        $region101: #{net_forward.1} parent=99 // pred_check
          %p2808 = pneg %p375
        $region102: #{net_forward.1} parent=99 // pred_check_branch
          %2810 = sbr.rel (%p2808) target = $region104
        $region103: #{net_forward.1} parent=99 // pred_region
          %s2811 = sand.u32 %s360, 1
          %s2812 = scalar_lea.sflag [#allocation4], %s2811
          %s2813 = sand.u32 %s360, 1
          %s2814 = scalar_lea.vmem [#allocation8], %s2813
          %2815 = dma.done %s2812, 16
        $region104: #{net_forward.1} parent=99 // pred_fallthru
          _
      $region100: #{net_forward.1} parent=5 // pred_fallthru
        _
    $region6: #{net_forward.1} parent=1 // loop_footer
      %s30 = sadd.s32 1, %s26
    $region7: #{net_forward.1} parent=1 // loop_footer_branch
      %25 = sbr.rel target = $region3
    $region8: #{net_forward.1} parent=1 // loop_exit
      _
    %2816 = vsyncpa [#allocation3], 1
    %s2817 = scalar_lea.sflag [#allocation3], 1
    %2818 = vsyncpa %s2817, 1
    %2819 = vsyncpa [#allocation6], 1
    %2820 = vsyncpa [#allocation4], 1
    %s2821 = scalar_lea.sflag [#allocation4], 1
    %2822 = vsyncpa %s2821, 1

</llo_original>
